<compile_context>
chip_gen: v5e
topology: v5e:2x2
jax: 0.10.0
libtpu: 0.0.40
codegen_flags: <defaults>
</compile_context>

<pallas_src>
import numpy as np
import jax
import jax.numpy as jnp
from jax.experimental import pallas as pl
from jax.experimental.pallas import tpu as pltpu

# ----------------------------- config constants ------------------------------
B = 2
H = W = 16               # c.density_map_h / c.density_map_w
CHANNELS = 1             # c.channels
N_FEAT = 8               # condition_dim (c.n_feat)
FILTERS = 16             # a.args.filters
N_COUPLING_BLOCKS = 2    # c.n_coupling_blocks
LEVELS = 1               # c.levels (one Haar downsampling)
CLAMP_ALPHA = 1.9        # c.clamp_alpha

C_FLOW = CHANNELS * 4 ** LEVELS      # flow channels after Haar (=4)
L1 = C_FLOW // 2                     # GLOW split_len1 (=2)
L2 = C_FLOW - L1                     # GLOW split_len2 (=2)
HO = H // 2                          # spatial after Haar / feat extractor (=8)
WO = W // 2
HP = HO + 2                          # padded spatial (=10), 1-px conv border
LANES_PER_IMG = 128                  # per-image 128-aligned lane chunk (100 real + 28 pad)
NPIX = B * LANES_PER_IMG             # flat pixel/lane axis (=256, full vregs)
K_FE = 3 * 3 * 3                     # feat-extractor im2col depth (=27)
K_FE_PAD = 32                        # padded to a sublane multiple (+ bias/mask row)
EXT_PAD = 16                         # zero apron for the in-kernel shifted-slice im2col
CPAD = 8                             # sublane padding of the 2-channel flow halves
N_SUB = 2 * N_COUPLING_BLOCKS        # 4 coupling subnets

_VMEM = pl.BlockSpec(memory_space=pltpu.MemorySpace.VMEM)


# ------------------------------- fused kernel ---------------------------------
def _cowflow_kernel(acts_ref, fe_w_ref, mix_ref, w1_ref, w2_ref, w3_ref, b_ref, z_ref):
    f32 = jnp.float32
    acts = acts_ref[...]                       # (48, NPIX) consolidated activation slab
    mask = acts[40:41, :]                      # (1, NPIX) interior-pixel indicator

    # ---- feature extractor (.features stand-in): 3x3/s2 conv + ReLU as one matmul ----
    # fe bias rides on the mask row of the patches, so the border stays exactly zero.
    feat = jnp.maximum(
        jnp.dot(fe_w_ref[...], acts[0:K_FE_PAD, :], preferred_element_type=f32), 0.0)

    def im2col(x):
        # 3x3 taps of a zero-bordered (C, NPIX) map, stacked on sublanes -> (9*C, NPIX).
        # The 1-px zero border + per-image zero lane padding makes every interior tap
        # read in-image data; border/pad output columns are masked downstream.
        # TODO(synk): the per-tap lane shifts could become pltpu.roll XLU rotations
        # (the circular wrap lands in zero padding) once the roll shift sign is verified.
        zp = jnp.zeros((x.shape[0], EXT_PAD), f32)
        ext = jnp.concatenate([zp, x, zp], axis=1)            # (C, NPIX + 2*EXT_PAD)
        taps = []
        for di in (-1, 0, 1):
            for dj in (-1, 0, 1):
                off = di * HP + dj
                taps.append(ext[:, EXT_PAD + off: EXT_PAD + off + NPIX])
        return jnp.concatenate(taps, axis=0)                  # (9*C, NPIX)

    # condition taps are loop-invariant: build ONCE, shared by all 4 conv1 calls
    feat_i2c = im2col(feat)                                   # (72, NPIX)

    def glow_e(s):
        # e(s) = exp(clamp * 0.636 * atan(s / clamp)).
        # TODO(synk): jnp.arctan has no guaranteed Mosaic lowering; use an odd minimax
        # polynomial (A&S 4.4.47 + range reduction, |err| < 1e-5 rad) instead.
        v = s * (1.0 / CLAMP_ALPHA)
        t = jnp.abs(v)
        tc = jnp.maximum(t, 1.0)
        inv = pl.reciprocal(tc, approx=True)                  # EUP slot (free next to exp)
        inv = inv * (2.0 - tc * inv)                          # one Newton step (~1e-7 rel)
        r = jnp.where(t > 1.0, inv, t)
        r2 = r * r
        p = r * (0.9998660 + r2 * (-0.3302995 + r2 * (0.1801410
                 + r2 * (-0.0851330 + r2 * 0.0208351))))
        p = jnp.where(t > 1.0, 1.5707963267948966 - p, p)
        p = jnp.where(v < 0.0, -p, p)
        return jnp.exp((CLAMP_ALPHA * 0.636) * p)

    def subnet(x_i2c, n):
        # sub_conv2d (batchnorm deleted): conv3x3 -> ReLU -> conv1x1 -> ReLU -> conv3x3.
        # conv1: ONE fused matmul over [x taps | condition taps]   (K = 144)
        # conv3: ONE fused matmul producing both s and t           (K = 288)
        bn = b_ref[n]                                          # (64, 1)
        i2c = jnp.concatenate([x_i2c, feat_i2c], axis=0)       # (144, NPIX), 8-aligned cat
        h = jnp.dot(w1_ref[n], i2c, preferred_element_type=f32) + bn[0:FILTERS]
        h = jnp.maximum(h, 0.0) * mask                         # (16, NPIX)
        h = jnp.dot(w2_ref[n], h, preferred_element_type=f32) + bn[FILTERS:3 * FILTERS]
        h = jnp.maximum(h, 0.0) * mask                         # (32, NPIX)
        st = jnp.dot(w3_ref[n], im2col(h), preferred_element_type=f32) + bn[48:64]
        return st[0:CPAD, :], st[CPAD:2 * CPAD, :]             # s, t (8-row padded)

    # Flow state is carried as two 8-sublane-padded halves; block 0's mixing matrix folds
    # the Haar butterfly, so its input is just the quadrant-tap rows of the slab.
    pp = acts[32:48, :]
    y1 = y2 = None
    for k in range(N_COUPLING_BLOCKS):
        if k > 0:
            pp = jnp.concatenate([y1, y2], axis=0)             # whole-vreg (8+8) concat
        # Fixed1x1Conv (+ Haar for k=0): one (16,16) channel-mix matmul, split 8-aligned
        x12 = jnp.dot(mix_ref[k], pp, preferred_element_type=f32)
        x1, x2 = x12[0:CPAD, :], x12[CPAD:2 * CPAD, :]
        # GLOWCouplingBlock (conditional on feats)
        s2, t2 = subnet(im2col(x2), 2 * k)
        y1 = (glow_e(s2) * x1 + t2) * mask
        s1, t1 = subnet(im2col(y1), 2 * k + 1)
        y2 = (glow_e(s1) * x2 + t1) * mask

    z_ref[0:CPAD, :] = y1                                      # 8-aligned full-lane stores
    z_ref[CPAD:2 * CPAD, :] = y2


# ------------------------------ wrapper-side prep ------------------------------
def _flat(x):
    """(C,B,HO,WO) interior map -> (C,NPIX): 1-px zero border, per-image 128-lane chunk."""
    xp = jnp.pad(x, ((0, 0), (0, 0), (1, 1), (1, 1)))          # (C,B,HP,HP)
    xp = xp.reshape(x.shape[0], B, HP * HP)
    xp = jnp.pad(xp, ((0, 0), (0, 0), (0, LANES_PER_IMG - HP * HP)))
    return xp.reshape(x.shape[0], NPIX)


def _build_acts(images, labels):
    """Consolidated activation slab (48, NPIX):
       rows 0..26  fe im2col taps (3x3/stride-2/pad-1, tap-major / cin-minor)
       row  27     interior mask (carries the fe bias)
       rows 28..31 zero
       rows 32..35 Haar 2x2 quadrant taps of labels.unsqueeze(1), rows 36..39 zero
       rows 40..47 interior mask (replicated)."""
    mask = _flat(jnp.ones((1, B, HO, WO), jnp.float32))        # (1, NPIX)

    xp = jnp.pad(images, ((0, 0), (0, 0), (1, 1), (1, 1)))     # (B,3,18,18)
    taps = []
    for di in range(3):
        for dj in range(3):
            taps.append(xp[:, :, di:di + 2 * HO - 1:2, dj:dj + 2 * WO - 1:2])
    p = jnp.stack(taps, 0)                                     # (9,B,3,HO,WO)
    p = jnp.transpose(p, (0, 2, 1, 3, 4)).reshape(K_FE, B, HO, WO)
    fe = jnp.concatenate(
        [_flat(p), mask, jnp.zeros((K_FE_PAD - K_FE - 1, NPIX), jnp.float32)], 0)

    a = labels[:, 0::2, 0::2]
    bq = labels[:, 0::2, 1::2]
    cq = labels[:, 1::2, 0::2]
    dq = labels[:, 1::2, 1::2]
    hq = _flat(jnp.stack([a, bq, cq, dq], 0))                  # (4, NPIX)
    hq = jnp.concatenate([hq, jnp.zeros((4, NPIX), jnp.float32)], 0)

    return jnp.concatenate([fe, hq, jnp.broadcast_to(mask, (8, NPIX))], 0)


def cowflow_forward(packed, images, labels):
    acts = _build_acts(images, labels)
    z16 = pl.pallas_call(
        _cowflow_kernel,
        out_shape=jax.ShapeDtypeStruct((2 * CPAD, NPIX), jnp.float32),
        in_specs=[_VMEM] * 7,
        out_specs=_VMEM,
    )(acts, packed['fe_w'], packed['mix'], packed['w1'],
      packed['w2'], packed['w3'], packed['b'])
    # drop the lane padding, the conv apron and the sublane padding; return NCHW
    z = z16.reshape(2 * CPAD, B, LANES_PER_IMG)[:, :, :HP * HP].reshape(2 * CPAD, B, HP, HP)
    z = z[:, :, 1:1 + HO, 1:1 + WO]
    z = jnp.concatenate([z[0:L1], z[CPAD:CPAD + L2]], axis=0)  # (C_FLOW, B, HO, WO)
    return jnp.transpose(z, (1, 0, 2, 3))


# ------------------------------ parameter init ---------------------------------
def random_orthog(n, rng):
    w = rng.standard_normal((n, n))
    w = w + w.T
    u, _, _ = np.linalg.svd(w)
    return jnp.asarray(u, jnp.float32)


def init_params(seed=0):
    """Raw parameters in PyTorch layout (Cout, Cin, kh, kw)."""
    rng = np.random.default_rng(seed)

    def conv_w(cout, cin, k):
        # u.init_weights is external; approximated by a small deterministic normal init.
        return jnp.asarray(0.05 * rng.standard_normal((cout, cin, k, k)), jnp.float32)

    params = {
        'fe_w': conv_w(N_FEAT, 3, 3),
        'fe_b': jnp.zeros((N_FEAT,), jnp.float32),
        'blocks': [],
    }

    def subnet_params(din, dout):
        return {
            'w1': conv_w(FILTERS, din, 3), 'b1': jnp.zeros((FILTERS,), jnp.float32),
            'w2': conv_w(2 * FILTERS, FILTERS, 1), 'b2': jnp.zeros((2 * FILTERS,), jnp.float32),
            # sub_conv2d: conv3 weight zeroed, bias filled with 0.0
            'w3': jnp.zeros((dout, 2 * FILTERS, 3, 3), jnp.float32),
            'b3': jnp.zeros((dout,), jnp.float32),
        }

    for _ in range(N_COUPLING_BLOCKS):
        params['blocks'].append({
            'M': random_orthog(C_FLOW, rng),
            'subnet1': subnet_params(L1 + N_FEAT, 2 * L2),
            'subnet2': subnet_params(L2 + N_FEAT, 2 * L1),
        })
    # TODO(synk): classification_head (resnet18/vgg16) is built in __init__ but never used
    # in forward(); omitted.
    return params


def pack_params(raw):
    """Pack raw PyTorch-layout params into the kernel's consolidated slabs."""
    haar = 0.5 * np.array([[1, 1, 1, 1],
                           [1, -1, 1, -1],
                           [1, 1, -1, -1],
                           [1, -1, -1, 1]], dtype=np.float32)   # FrEIA Haar, fac_fwd = 0.5

    # feature-extractor weight (8, 32): cols tap-major / cin-minor; bias on the mask row
    fe_w = np.zeros((N_FEAT, K_FE_PAD), np.float32)
    fe_w[:, :K_FE] = np.transpose(np.asarray(raw['fe_w']), (0, 2, 3, 1)).reshape(N_FEAT, K_FE)
    fe_w[:, K_FE] = np.asarray(raw['fe_b'])

    # per-block channel-mix matrices (16,16): rows 0..7 -> x1, rows 8..15 -> x2;
    # cols 0..7 read half-1 of the carried state, cols 8..15 read half-2.
    # Block 0 folds the Haar butterfly and reads the raw quadrant taps (cols 0..3).
    mix = np.zeros((N_COUPLING_BLOCKS, 2 * CPAD, 2 * CPAD), np.float32)
    for k, blk in enumerate(raw['blocks']):
        mt = np.asarray(blk['M']).T                 # Fixed1x1Conv: y = M^T x
        if k == 0:
            mh = mt @ haar
            mix[k, 0:L1, 0:C_FLOW] = mh[0:L1]
            mix[k, CPAD:CPAD + L2, 0:C_FLOW] = mh[L1:]
        else:
            mix[k, 0:L1, 0:L1] = mt[0:L1, 0:L1]
            mix[k, 0:L1, CPAD:CPAD + L2] = mt[0:L1, L1:]
            mix[k, CPAD:CPAD + L2, 0:L1] = mt[L1:, 0:L1]
            mix[k, CPAD:CPAD + L2, CPAD:CPAD + L2] = mt[L1:, L1:]

    w1 = np.zeros((N_SUB, FILTERS, 9 * CPAD * 2), np.float32)        # (4, 16, 144)
    w2 = np.zeros((N_SUB, 2 * FILTERS, FILTERS), np.float32)         # (4, 32, 16)
    w3 = np.zeros((N_SUB, 2 * CPAD, 9 * 2 * FILTERS), np.float32)    # (4, 16, 288)
    bb = np.zeros((N_SUB, 64, 1), np.float32)                        # b1 | b2 | b3(s,t)

    for k, blk in enumerate(raw['blocks']):
        for j, (name, xin, half) in enumerate((('subnet2', L2, L1), ('subnet1', L1, L2))):
            n = 2 * k + j
            sp = blk[name]
            rw1 = np.asarray(sp['w1'])              # (FILTERS, xin + N_FEAT, 3, 3)
            rw3 = np.asarray(sp['w3'])              # (2*half, 2*FILTERS, 3, 3)
            for t in range(9):
                kh, kw = t // 3, t % 3
                # conv1 columns: [x taps (8-row padded) | condition taps]
                w1[n, :, CPAD * t:CPAD * t + xin] = rw1[:, :xin, kh, kw]
                w1[n, :, 9 * CPAD + CPAD * t:9 * CPAD + CPAD * t + N_FEAT] = rw1[:, xin:, kh, kw]
                # conv3 fused: rows 0..1 -> s, rows 8..9 -> t
                w3[n, 0:half, 2 * FILTERS * t:2 * FILTERS * (t + 1)] = rw3[:half, :, kh, kw]
                w3[n, CPAD:CPAD + half, 2 * FILTERS * t:2 * FILTERS * (t + 1)] = rw3[half:, :, kh, kw]
            w2[n] = np.asarray(sp['w2'])[:, :, 0, 0]
            bb[n, 0:FILTERS, 0] = np.asarray(sp['b1'])
            bb[n, FILTERS:3 * FILTERS, 0] = np.asarray(sp['b2'])
            rb3 = np.asarray(sp['b3'])
            bb[n, 48:48 + half, 0] = rb3[:half]
            bb[n, 56:56 + half, 0] = rb3[half:]

    return {'fe_w': jnp.asarray(fe_w), 'mix': jnp.asarray(mix),
            'w1': jnp.asarray(w1), 'w2': jnp.asarray(w2),
            'w3': jnp.asarray(w3), 'b': jnp.asarray(bb)}


# ----------------------------------- main ---------------------------------------
if __name__ == "__main__":
    key = jax.random.PRNGKey(0)
    k_img, k_lab = jax.random.split(key)
    images = jax.random.normal(k_img, (B, 3, H, W), jnp.float32)   # NCHW images
    labels = jax.random.uniform(k_lab, (B, H, W), jnp.float32)     # density maps

    packed = pack_params(init_params(0))
    fwd = jax.jit(lambda imgs, lbls: cowflow_forward(packed, imgs, lbls))
    z = fwd(images, labels)
    jax.block_until_ready(z)
    assert z.shape == (B, CHANNELS * 4 ** LEVELS, H // 2, W // 2)
    assert bool(jnp.all(jnp.isfinite(z)))
    print("KERNEL_OK")
</pallas_src>

<mosaic_0001>
module attributes {stable_mosaic.version = 11 : i64} {
  func.func @_cowflow_kernel(%arg0: memref<48x256xf32, #tpu.memory_space<vmem>>, %arg1: memref<8x32xf32, #tpu.memory_space<vmem>>, %arg2: memref<2x16x16xf32, #tpu.memory_space<vmem>>, %arg3: memref<4x16x144xf32, #tpu.memory_space<vmem>>, %arg4: memref<4x32x16xf32, #tpu.memory_space<vmem>>, %arg5: memref<4x16x288xf32, #tpu.memory_space<vmem>>, %arg6: memref<4x64x1xf32, #tpu.memory_space<vmem>>, %arg7: memref<16x256xf32, #tpu.memory_space<vmem>>) attributes {dimension_semantics = [], scalar_prefetch = 0 : i64, scratch_operands = 0 : i64, tpu.core_type = #tpu.core_type<tc>} {
    %c0 = arith.constant 0 : index
    %c0_0 = arith.constant 0 : index
    %0 = vector.load %arg0[%c0, %c0_0] : memref<48x256xf32, #tpu.memory_space<vmem>>, vector<48x256xf32>
    %1 = vector.extract_strided_slice %0 {offsets = [40, 0], sizes = [1, 256], strides = [1, 1]} : vector<48x256xf32> to vector<1x256xf32>
    %c0_1 = arith.constant 0 : index
    %c0_2 = arith.constant 0 : index
    %2 = vector.load %arg1[%c0_1, %c0_2] : memref<8x32xf32, #tpu.memory_space<vmem>>, vector<8x32xf32>
    %3 = vector.extract_strided_slice %0 {offsets = [0, 0], sizes = [32, 256], strides = [1, 1]} : vector<48x256xf32> to vector<32x256xf32>
    %cst = arith.constant dense<0.000000e+00> : vector<8x256xf32>
    %4 = tpu.matmul %2, %3, %cst {dimension_numbers = #tpu.dot_dimension_numbers<[1], [0], [0], [1], [0, 0, 1, 1], [], []>} : vector<8x32xf32>, vector<32x256xf32>, vector<8x256xf32> -> vector<8x256xf32>
    %cst_3 = arith.constant 0.000000e+00 : f32
    %5 = vector.broadcast %cst_3 : f32 to vector<8x256xf32>
    %6 = arith.maximumf %4, %5 : vector<8x256xf32>
    %cst_4 = arith.constant 0.000000e+00 : f32
    %7 = vector.broadcast %cst_4 : f32 to vector<8x16xf32>
    %8 = tpu.concatenate %7, %6, %7 in 1 : vector<8x16xf32>, vector<8x256xf32>, vector<8x16xf32> -> vector<8x288xf32>
    %9 = vector.extract_strided_slice %8 {offsets = [0, 5], sizes = [8, 256], strides = [1, 1]} : vector<8x288xf32> to vector<8x256xf32>
    %10 = vector.extract_strided_slice %8 {offsets = [0, 6], sizes = [8, 256], strides = [1, 1]} : vector<8x288xf32> to vector<8x256xf32>
    %11 = vector.extract_strided_slice %8 {offsets = [0, 7], sizes = [8, 256], strides = [1, 1]} : vector<8x288xf32> to vector<8x256xf32>
    %12 = vector.extract_strided_slice %8 {offsets = [0, 15], sizes = [8, 256], strides = [1, 1]} : vector<8x288xf32> to vector<8x256xf32>
    %13 = vector.extract_strided_slice %8 {offsets = [0, 16], sizes = [8, 256], strides = [1, 1]} : vector<8x288xf32> to vector<8x256xf32>
    %14 = vector.extract_strided_slice %8 {offsets = [0, 17], sizes = [8, 256], strides = [1, 1]} : vector<8x288xf32> to vector<8x256xf32>
    %15 = vector.extract_strided_slice %8 {offsets = [0, 25], sizes = [8, 256], strides = [1, 1]} : vector<8x288xf32> to vector<8x256xf32>
    %16 = vector.extract_strided_slice %8 {offsets = [0, 26], sizes = [8, 256], strides = [1, 1]} : vector<8x288xf32> to vector<8x256xf32>
    %17 = vector.extract_strided_slice %8 {offsets = [0, 27], sizes = [8, 256], strides = [1, 1]} : vector<8x288xf32> to vector<8x256xf32>
    %18 = tpu.concatenate %9, %10, %11, %12, %13, %14, %15, %16, %17 in 0 : vector<8x256xf32>, vector<8x256xf32>, vector<8x256xf32>, vector<8x256xf32>, vector<8x256xf32>, vector<8x256xf32>, vector<8x256xf32>, vector<8x256xf32>, vector<8x256xf32> -> vector<72x256xf32>
    %19 = vector.extract_strided_slice %0 {offsets = [32, 0], sizes = [16, 256], strides = [1, 1]} : vector<48x256xf32> to vector<16x256xf32>
    %c0_5 = arith.constant 0 : index
    %c0_6 = arith.constant 0 : index
    %c0_7 = arith.constant 0 : index
    %20 = vector.load %arg2[%c0_5, %c0_6, %c0_7] : memref<2x16x16xf32, #tpu.memory_space<vmem>>, vector<1x16x16xf32>
    %21 = vector.shape_cast %20 : vector<1x16x16xf32> to vector<16x16xf32>
    %cst_8 = arith.constant dense<0.000000e+00> : vector<16x256xf32>
    %22 = tpu.matmul %21, %19, %cst_8 {dimension_numbers = #tpu.dot_dimension_numbers<[1], [0], [0], [1], [0, 0, 1, 1], [], []>} : vector<16x16xf32>, vector<16x256xf32>, vector<16x256xf32> -> vector<16x256xf32>
    %23 = vector.extract_strided_slice %22 {offsets = [0, 0], sizes = [8, 256], strides = [1, 1]} : vector<16x256xf32> to vector<8x256xf32>
    %24 = vector.extract_strided_slice %22 {offsets = [8, 0], sizes = [8, 256], strides = [1, 1]} : vector<16x256xf32> to vector<8x256xf32>
    %cst_9 = arith.constant 0.000000e+00 : f32
    %25 = vector.broadcast %cst_9 : f32 to vector<8x16xf32>
    %26 = tpu.concatenate %25, %24, %25 in 1 : vector<8x16xf32>, vector<8x256xf32>, vector<8x16xf32> -> vector<8x288xf32>
    %27 = vector.extract_strided_slice %26 {offsets = [0, 5], sizes = [8, 256], strides = [1, 1]} : vector<8x288xf32> to vector<8x256xf32>
    %28 = vector.extract_strided_slice %26 {offsets = [0, 6], sizes = [8, 256], strides = [1, 1]} : vector<8x288xf32> to vector<8x256xf32>
    %29 = vector.extract_strided_slice %26 {offsets = [0, 7], sizes = [8, 256], strides = [1, 1]} : vector<8x288xf32> to vector<8x256xf32>
    %30 = vector.extract_strided_slice %26 {offsets = [0, 15], sizes = [8, 256], strides = [1, 1]} : vector<8x288xf32> to vector<8x256xf32>
    %31 = vector.extract_strided_slice %26 {offsets = [0, 16], sizes = [8, 256], strides = [1, 1]} : vector<8x288xf32> to vector<8x256xf32>
    %32 = vector.extract_strided_slice %26 {offsets = [0, 17], sizes = [8, 256], strides = [1, 1]} : vector<8x288xf32> to vector<8x256xf32>
    %33 = vector.extract_strided_slice %26 {offsets = [0, 25], sizes = [8, 256], strides = [1, 1]} : vector<8x288xf32> to vector<8x256xf32>
    %34 = vector.extract_strided_slice %26 {offsets = [0, 26], sizes = [8, 256], strides = [1, 1]} : vector<8x288xf32> to vector<8x256xf32>
    %35 = vector.extract_strided_slice %26 {offsets = [0, 27], sizes = [8, 256], strides = [1, 1]} : vector<8x288xf32> to vector<8x256xf32>
    %36 = tpu.concatenate %27, %28, %29, %30, %31, %32, %33, %34, %35 in 0 : vector<8x256xf32>, vector<8x256xf32>, vector<8x256xf32>, vector<8x256xf32>, vector<8x256xf32>, vector<8x256xf32>, vector<8x256xf32>, vector<8x256xf32>, vector<8x256xf32> -> vector<72x256xf32>
    %c0_10 = arith.constant 0 : index
    %c0_11 = arith.constant 0 : index
    %c0_12 = arith.constant 0 : index
    %37 = vector.load %arg6[%c0_10, %c0_11, %c0_12] : memref<4x64x1xf32, #tpu.memory_space<vmem>>, vector<1x64x1xf32>
    %38 = vector.shape_cast %37 : vector<1x64x1xf32> to vector<64x1xf32>
    %39 = tpu.concatenate %36, %18 in 0 : vector<72x256xf32>, vector<72x256xf32> -> vector<144x256xf32>
    %c0_13 = arith.constant 0 : index
    %c0_14 = arith.constant 0 : index
    %c0_15 = arith.constant 0 : index
    %40 = vector.load %arg3[%c0_13, %c0_14, %c0_15] : memref<4x16x144xf32, #tpu.memory_space<vmem>>, vector<1x16x144xf32>
    %41 = vector.shape_cast %40 : vector<1x16x144xf32> to vector<16x144xf32>
    %cst_16 = arith.constant dense<0.000000e+00> : vector<16x256xf32>
    %42 = tpu.matmul %41, %39, %cst_16 {dimension_numbers = #tpu.dot_dimension_numbers<[1], [0], [0], [1], [0, 0, 1, 1], [], []>} : vector<16x144xf32>, vector<144x256xf32>, vector<16x256xf32> -> vector<16x256xf32>
    %43 = vector.extract_strided_slice %38 {offsets = [0, 0], sizes = [16, 1], strides = [1, 1]} : vector<64x1xf32> to vector<16x1xf32>
    %44 = vector.broadcast %43 : vector<16x1xf32> to vector<16x256xf32>
    %45 = arith.addf %42, %44 : vector<16x256xf32>
    %cst_17 = arith.constant 0.000000e+00 : f32
    %46 = vector.broadcast %cst_17 : f32 to vector<16x256xf32>
    %47 = arith.maximumf %45, %46 : vector<16x256xf32>
    %48 = vector.broadcast %1 : vector<1x256xf32> to vector<16x256xf32>
    %49 = arith.mulf %47, %48 : vector<16x256xf32>
    %c0_18 = arith.constant 0 : index
    %c0_19 = arith.constant 0 : index
    %c0_20 = arith.constant 0 : index
    %50 = vector.load %arg4[%c0_18, %c0_19, %c0_20] : memref<4x32x16xf32, #tpu.memory_space<vmem>>, vector<1x32x16xf32>
    %51 = vector.shape_cast %50 : vector<1x32x16xf32> to vector<32x16xf32>
    %cst_21 = arith.constant dense<0.000000e+00> : vector<32x256xf32>
    %52 = tpu.matmul %51, %49, %cst_21 {dimension_numbers = #tpu.dot_dimension_numbers<[1], [0], [0], [1], [0, 0, 1, 1], [], []>} : vector<32x16xf32>, vector<16x256xf32>, vector<32x256xf32> -> vector<32x256xf32>
    %53 = vector.extract_strided_slice %38 {offsets = [16, 0], sizes = [32, 1], strides = [1, 1]} : vector<64x1xf32> to vector<32x1xf32>
    %54 = vector.broadcast %53 : vector<32x1xf32> to vector<32x256xf32>
    %55 = arith.addf %52, %54 : vector<32x256xf32>
    %cst_22 = arith.constant 0.000000e+00 : f32
    %56 = vector.broadcast %cst_22 : f32 to vector<32x256xf32>
    %57 = arith.maximumf %55, %56 : vector<32x256xf32>
    %58 = vector.broadcast %1 : vector<1x256xf32> to vector<32x256xf32>
    %59 = arith.mulf %57, %58 : vector<32x256xf32>
    %c0_23 = arith.constant 0 : index
    %c0_24 = arith.constant 0 : index
    %c0_25 = arith.constant 0 : index
    %60 = vector.load %arg5[%c0_23, %c0_24, %c0_25] : memref<4x16x288xf32, #tpu.memory_space<vmem>>, vector<1x16x288xf32>
    %61 = vector.shape_cast %60 : vector<1x16x288xf32> to vector<16x288xf32>
    %cst_26 = arith.constant 0.000000e+00 : f32
    %62 = vector.broadcast %cst_26 : f32 to vector<32x16xf32>
    %63 = tpu.concatenate %62, %59, %62 in 1 : vector<32x16xf32>, vector<32x256xf32>, vector<32x16xf32> -> vector<32x288xf32>
    %64 = vector.extract_strided_slice %63 {offsets = [0, 5], sizes = [32, 256], strides = [1, 1]} : vector<32x288xf32> to vector<32x256xf32>
    %65 = vector.extract_strided_slice %63 {offsets = [0, 6], sizes = [32, 256], strides = [1, 1]} : vector<32x288xf32> to vector<32x256xf32>
    %66 = vector.extract_strided_slice %63 {offsets = [0, 7], sizes = [32, 256], strides = [1, 1]} : vector<32x288xf32> to vector<32x256xf32>
    %67 = vector.extract_strided_slice %63 {offsets = [0, 15], sizes = [32, 256], strides = [1, 1]} : vector<32x288xf32> to vector<32x256xf32>
    %68 = vector.extract_strided_slice %63 {offsets = [0, 16], sizes = [32, 256], strides = [1, 1]} : vector<32x288xf32> to vector<32x256xf32>
    %69 = vector.extract_strided_slice %63 {offsets = [0, 17], sizes = [32, 256], strides = [1, 1]} : vector<32x288xf32> to vector<32x256xf32>
    %70 = vector.extract_strided_slice %63 {offsets = [0, 25], sizes = [32, 256], strides = [1, 1]} : vector<32x288xf32> to vector<32x256xf32>
    %71 = vector.extract_strided_slice %63 {offsets = [0, 26], sizes = [32, 256], strides = [1, 1]} : vector<32x288xf32> to vector<32x256xf32>
    %72 = vector.extract_strided_slice %63 {offsets = [0, 27], sizes = [32, 256], strides = [1, 1]} : vector<32x288xf32> to vector<32x256xf32>
    %73 = tpu.concatenate %64, %65, %66, %67, %68, %69, %70, %71, %72 in 0 : vector<32x256xf32>, vector<32x256xf32>, vector<32x256xf32>, vector<32x256xf32>, vector<32x256xf32>, vector<32x256xf32>, vector<32x256xf32>, vector<32x256xf32>, vector<32x256xf32> -> vector<288x256xf32>
    %cst_27 = arith.constant dense<0.000000e+00> : vector<16x256xf32>
    %74 = tpu.matmul %61, %73, %cst_27 {dimension_numbers = #tpu.dot_dimension_numbers<[1], [0], [0], [1], [0, 0, 1, 1], [], []>} : vector<16x288xf32>, vector<288x256xf32>, vector<16x256xf32> -> vector<16x256xf32>
    %75 = vector.extract_strided_slice %38 {offsets = [48, 0], sizes = [16, 1], strides = [1, 1]} : vector<64x1xf32> to vector<16x1xf32>
    %76 = vector.broadcast %75 : vector<16x1xf32> to vector<16x256xf32>
    %77 = arith.addf %74, %76 : vector<16x256xf32>
    %78 = vector.extract_strided_slice %77 {offsets = [0, 0], sizes = [8, 256], strides = [1, 1]} : vector<16x256xf32> to vector<8x256xf32>
    %79 = vector.extract_strided_slice %77 {offsets = [8, 0], sizes = [8, 256], strides = [1, 1]} : vector<16x256xf32> to vector<8x256xf32>
    %cst_28 = arith.constant 0.526315808 : f32
    %80 = vector.broadcast %cst_28 : f32 to vector<8x256xf32>
    %81 = arith.mulf %78, %80 : vector<8x256xf32>
    %82 = math.absf %81 : vector<8x256xf32>
    %cst_29 = arith.constant 1.000000e+00 : f32
    %83 = vector.broadcast %cst_29 : f32 to vector<8x256xf32>
    %84 = arith.maximumf %82, %83 : vector<8x256xf32>
    %85 = tpu.reciprocal %84 {approx = true} : vector<8x256xf32> -> vector<8x256xf32>
    %86 = arith.mulf %84, %85 : vector<8x256xf32>
    %cst_30 = arith.constant 2.000000e+00 : f32
    %87 = vector.broadcast %cst_30 : f32 to vector<8x256xf32>
    %88 = arith.subf %87, %86 : vector<8x256xf32>
    %89 = arith.mulf %85, %88 : vector<8x256xf32>
    %cst_31 = arith.constant 1.000000e+00 : f32
    %90 = vector.broadcast %cst_31 : f32 to vector<8x256xf32>
    %91 = arith.cmpf ogt, %82, %90 : vector<8x256xf32>
    %92 = arith.select %91, %89, %82 : vector<8x256xi1>, vector<8x256xf32>
    %93 = arith.mulf %92, %92 : vector<8x256xf32>
    %cst_32 = arith.constant 2.083510e-02 : f32
    %94 = vector.broadcast %cst_32 : f32 to vector<8x256xf32>
    %95 = arith.mulf %93, %94 : vector<8x256xf32>
    %cst_33 = arith.constant -8.513300e-02 : f32
    %96 = vector.broadcast %cst_33 : f32 to vector<8x256xf32>
    %97 = arith.addf %96, %95 : vector<8x256xf32>
    %98 = arith.mulf %93, %97 : vector<8x256xf32>
    %cst_34 = arith.constant 1.801410e-01 : f32
    %99 = vector.broadcast %cst_34 : f32 to vector<8x256xf32>
    %100 = arith.addf %99, %98 : vector<8x256xf32>
    %101 = arith.mulf %93, %100 : vector<8x256xf32>
    %cst_35 = arith.constant -0.330299497 : f32
    %102 = vector.broadcast %cst_35 : f32 to vector<8x256xf32>
    %103 = arith.addf %102, %101 : vector<8x256xf32>
    %104 = arith.mulf %93, %103 : vector<8x256xf32>
    %cst_36 = arith.constant 9.998660e-01 : f32
    %105 = vector.broadcast %cst_36 : f32 to vector<8x256xf32>
    %106 = arith.addf %105, %104 : vector<8x256xf32>
    %107 = arith.mulf %92, %106 : vector<8x256xf32>
    %cst_37 = arith.constant 1.000000e+00 : f32
    %108 = vector.broadcast %cst_37 : f32 to vector<8x256xf32>
    %109 = arith.cmpf ogt, %82, %108 : vector<8x256xf32>
    %cst_38 = arith.constant 1.57079637 : f32
    %110 = vector.broadcast %cst_38 : f32 to vector<8x256xf32>
    %111 = arith.subf %110, %107 : vector<8x256xf32>
    %112 = arith.select %109, %111, %107 : vector<8x256xi1>, vector<8x256xf32>
    %cst_39 = arith.constant 0.000000e+00 : f32
    %113 = vector.broadcast %cst_39 : f32 to vector<8x256xf32>
    %114 = arith.cmpf olt, %81, %113 : vector<8x256xf32>
    %cst_40 = arith.constant 0.000000e+00 : f32
    %115 = vector.broadcast %cst_40 : f32 to vector<8x256xf32>
    %116 = arith.subf %115, %112 : vector<8x256xf32>
    %117 = arith.select %114, %116, %112 : vector<8x256xi1>, vector<8x256xf32>
    %cst_41 = arith.constant 1.208400e+00 : f32
    %118 = vector.broadcast %cst_41 : f32 to vector<8x256xf32>
    %119 = arith.mulf %118, %117 : vector<8x256xf32>
    %120 = math.exp %119 : vector<8x256xf32>
    %121 = arith.mulf %120, %23 : vector<8x256xf32>
    %122 = arith.addf %121, %79 : vector<8x256xf32>
    %123 = vector.broadcast %1 : vector<1x256xf32> to vector<8x256xf32>
    %124 = arith.mulf %122, %123 : vector<8x256xf32>
    %cst_42 = arith.constant 0.000000e+00 : f32
    %125 = vector.broadcast %cst_42 : f32 to vector<8x16xf32>
    %126 = tpu.concatenate %125, %124, %125 in 1 : vector<8x16xf32>, vector<8x256xf32>, vector<8x16xf32> -> vector<8x288xf32>
    %127 = vector.extract_strided_slice %126 {offsets = [0, 5], sizes = [8, 256], strides = [1, 1]} : vector<8x288xf32> to vector<8x256xf32>
    %128 = vector.extract_strided_slice %126 {offsets = [0, 6], sizes = [8, 256], strides = [1, 1]} : vector<8x288xf32> to vector<8x256xf32>
    %129 = vector.extract_strided_slice %126 {offsets = [0, 7], sizes = [8, 256], strides = [1, 1]} : vector<8x288xf32> to vector<8x256xf32>
    %130 = vector.extract_strided_slice %126 {offsets = [0, 15], sizes = [8, 256], strides = [1, 1]} : vector<8x288xf32> to vector<8x256xf32>
    %131 = vector.extract_strided_slice %126 {offsets = [0, 16], sizes = [8, 256], strides = [1, 1]} : vector<8x288xf32> to vector<8x256xf32>
    %132 = vector.extract_strided_slice %126 {offsets = [0, 17], sizes = [8, 256], strides = [1, 1]} : vector<8x288xf32> to vector<8x256xf32>
    %133 = vector.extract_strided_slice %126 {offsets = [0, 25], sizes = [8, 256], strides = [1, 1]} : vector<8x288xf32> to vector<8x256xf32>
    %134 = vector.extract_strided_slice %126 {offsets = [0, 26], sizes = [8, 256], strides = [1, 1]} : vector<8x288xf32> to vector<8x256xf32>
    %135 = vector.extract_strided_slice %126 {offsets = [0, 27], sizes = [8, 256], strides = [1, 1]} : vector<8x288xf32> to vector<8x256xf32>
    %136 = tpu.concatenate %127, %128, %129, %130, %131, %132, %133, %134, %135 in 0 : vector<8x256xf32>, vector<8x256xf32>, vector<8x256xf32>, vector<8x256xf32>, vector<8x256xf32>, vector<8x256xf32>, vector<8x256xf32>, vector<8x256xf32>, vector<8x256xf32> -> vector<72x256xf32>
    %c1 = arith.constant 1 : index
    %c0_43 = arith.constant 0 : index
    %c0_44 = arith.constant 0 : index
    %137 = vector.load %arg6[%c1, %c0_43, %c0_44] : memref<4x64x1xf32, #tpu.memory_space<vmem>>, vector<1x64x1xf32>
    %138 = vector.shape_cast %137 : vector<1x64x1xf32> to vector<64x1xf32>
    %139 = tpu.concatenate %136, %18 in 0 : vector<72x256xf32>, vector<72x256xf32> -> vector<144x256xf32>
    %c1_45 = arith.constant 1 : index
    %c0_46 = arith.constant 0 : index
    %c0_47 = arith.constant 0 : index
    %140 = vector.load %arg3[%c1_45, %c0_46, %c0_47] : memref<4x16x144xf32, #tpu.memory_space<vmem>>, vector<1x16x144xf32>
    %141 = vector.shape_cast %140 : vector<1x16x144xf32> to vector<16x144xf32>
    %cst_48 = arith.constant dense<0.000000e+00> : vector<16x256xf32>
    %142 = tpu.matmul %141, %139, %cst_48 {dimension_numbers = #tpu.dot_dimension_numbers<[1], [0], [0], [1], [0, 0, 1, 1], [], []>} : vector<16x144xf32>, vector<144x256xf32>, vector<16x256xf32> -> vector<16x256xf32>
    %143 = vector.extract_strided_slice %138 {offsets = [0, 0], sizes = [16, 1], strides = [1, 1]} : vector<64x1xf32> to vector<16x1xf32>
    %144 = vector.broadcast %143 : vector<16x1xf32> to vector<16x256xf32>
    %145 = arith.addf %142, %144 : vector<16x256xf32>
    %cst_49 = arith.constant 0.000000e+00 : f32
    %146 = vector.broadcast %cst_49 : f32 to vector<16x256xf32>
    %147 = arith.maximumf %145, %146 : vector<16x256xf32>
    %148 = vector.broadcast %1 : vector<1x256xf32> to vector<16x256xf32>
    %149 = arith.mulf %147, %148 : vector<16x256xf32>
    %c1_50 = arith.constant 1 : index
    %c0_51 = arith.constant 0 : index
    %c0_52 = arith.constant 0 : index
    %150 = vector.load %arg4[%c1_50, %c0_51, %c0_52] : memref<4x32x16xf32, #tpu.memory_space<vmem>>, vector<1x32x16xf32>
    %151 = vector.shape_cast %150 : vector<1x32x16xf32> to vector<32x16xf32>
    %cst_53 = arith.constant dense<0.000000e+00> : vector<32x256xf32>
    %152 = tpu.matmul %151, %149, %cst_53 {dimension_numbers = #tpu.dot_dimension_numbers<[1], [0], [0], [1], [0, 0, 1, 1], [], []>} : vector<32x16xf32>, vector<16x256xf32>, vector<32x256xf32> -> vector<32x256xf32>
    %153 = vector.extract_strided_slice %138 {offsets = [16, 0], sizes = [32, 1], strides = [1, 1]} : vector<64x1xf32> to vector<32x1xf32>
    %154 = vector.broadcast %153 : vector<32x1xf32> to vector<32x256xf32>
    %155 = arith.addf %152, %154 : vector<32x256xf32>
    %cst_54 = arith.constant 0.000000e+00 : f32
    %156 = vector.broadcast %cst_54 : f32 to vector<32x256xf32>
    %157 = arith.maximumf %155, %156 : vector<32x256xf32>
    %158 = vector.broadcast %1 : vector<1x256xf32> to vector<32x256xf32>
    %159 = arith.mulf %157, %158 : vector<32x256xf32>
    %c1_55 = arith.constant 1 : index
    %c0_56 = arith.constant 0 : index
    %c0_57 = arith.constant 0 : index
    %160 = vector.load %arg5[%c1_55, %c0_56, %c0_57] : memref<4x16x288xf32, #tpu.memory_space<vmem>>, vector<1x16x288xf32>
    %161 = vector.shape_cast %160 : vector<1x16x288xf32> to vector<16x288xf32>
    %cst_58 = arith.constant 0.000000e+00 : f32
    %162 = vector.broadcast %cst_58 : f32 to vector<32x16xf32>
    %163 = tpu.concatenate %162, %159, %162 in 1 : vector<32x16xf32>, vector<32x256xf32>, vector<32x16xf32> -> vector<32x288xf32>
    %164 = vector.extract_strided_slice %163 {offsets = [0, 5], sizes = [32, 256], strides = [1, 1]} : vector<32x288xf32> to vector<32x256xf32>
    %165 = vector.extract_strided_slice %163 {offsets = [0, 6], sizes = [32, 256], strides = [1, 1]} : vector<32x288xf32> to vector<32x256xf32>
    %166 = vector.extract_strided_slice %163 {offsets = [0, 7], sizes = [32, 256], strides = [1, 1]} : vector<32x288xf32> to vector<32x256xf32>
    %167 = vector.extract_strided_slice %163 {offsets = [0, 15], sizes = [32, 256], strides = [1, 1]} : vector<32x288xf32> to vector<32x256xf32>
    %168 = vector.extract_strided_slice %163 {offsets = [0, 16], sizes = [32, 256], strides = [1, 1]} : vector<32x288xf32> to vector<32x256xf32>
    %169 = vector.extract_strided_slice %163 {offsets = [0, 17], sizes = [32, 256], strides = [1, 1]} : vector<32x288xf32> to vector<32x256xf32>
    %170 = vector.extract_strided_slice %163 {offsets = [0, 25], sizes = [32, 256], strides = [1, 1]} : vector<32x288xf32> to vector<32x256xf32>
    %171 = vector.extract_strided_slice %163 {offsets = [0, 26], sizes = [32, 256], strides = [1, 1]} : vector<32x288xf32> to vector<32x256xf32>
    %172 = vector.extract_strided_slice %163 {offsets = [0, 27], sizes = [32, 256], strides = [1, 1]} : vector<32x288xf32> to vector<32x256xf32>
    %173 = tpu.concatenate %164, %165, %166, %167, %168, %169, %170, %171, %172 in 0 : vector<32x256xf32>, vector<32x256xf32>, vector<32x256xf32>, vector<32x256xf32>, vector<32x256xf32>, vector<32x256xf32>, vector<32x256xf32>, vector<32x256xf32>, vector<32x256xf32> -> vector<288x256xf32>
    %cst_59 = arith.constant dense<0.000000e+00> : vector<16x256xf32>
    %174 = tpu.matmul %161, %173, %cst_59 {dimension_numbers = #tpu.dot_dimension_numbers<[1], [0], [0], [1], [0, 0, 1, 1], [], []>} : vector<16x288xf32>, vector<288x256xf32>, vector<16x256xf32> -> vector<16x256xf32>
    %175 = vector.extract_strided_slice %138 {offsets = [48, 0], sizes = [16, 1], strides = [1, 1]} : vector<64x1xf32> to vector<16x1xf32>
    %176 = vector.broadcast %175 : vector<16x1xf32> to vector<16x256xf32>
    %177 = arith.addf %174, %176 : vector<16x256xf32>
    %178 = vector.extract_strided_slice %177 {offsets = [0, 0], sizes = [8, 256], strides = [1, 1]} : vector<16x256xf32> to vector<8x256xf32>
    %179 = vector.extract_strided_slice %177 {offsets = [8, 0], sizes = [8, 256], strides = [1, 1]} : vector<16x256xf32> to vector<8x256xf32>
    %cst_60 = arith.constant 0.526315808 : f32
    %180 = vector.broadcast %cst_60 : f32 to vector<8x256xf32>
    %181 = arith.mulf %178, %180 : vector<8x256xf32>
    %182 = math.absf %181 : vector<8x256xf32>
    %cst_61 = arith.constant 1.000000e+00 : f32
    %183 = vector.broadcast %cst_61 : f32 to vector<8x256xf32>
    %184 = arith.maximumf %182, %183 : vector<8x256xf32>
    %185 = tpu.reciprocal %184 {approx = true} : vector<8x256xf32> -> vector<8x256xf32>
    %186 = arith.mulf %184, %185 : vector<8x256xf32>
    %cst_62 = arith.constant 2.000000e+00 : f32
    %187 = vector.broadcast %cst_62 : f32 to vector<8x256xf32>
    %188 = arith.subf %187, %186 : vector<8x256xf32>
    %189 = arith.mulf %185, %188 : vector<8x256xf32>
    %cst_63 = arith.constant 1.000000e+00 : f32
    %190 = vector.broadcast %cst_63 : f32 to vector<8x256xf32>
    %191 = arith.cmpf ogt, %182, %190 : vector<8x256xf32>
    %192 = arith.select %191, %189, %182 : vector<8x256xi1>, vector<8x256xf32>
    %193 = arith.mulf %192, %192 : vector<8x256xf32>
    %cst_64 = arith.constant 2.083510e-02 : f32
    %194 = vector.broadcast %cst_64 : f32 to vector<8x256xf32>
    %195 = arith.mulf %193, %194 : vector<8x256xf32>
    %cst_65 = arith.constant -8.513300e-02 : f32
    %196 = vector.broadcast %cst_65 : f32 to vector<8x256xf32>
    %197 = arith.addf %196, %195 : vector<8x256xf32>
    %198 = arith.mulf %193, %197 : vector<8x256xf32>
    %cst_66 = arith.constant 1.801410e-01 : f32
    %199 = vector.broadcast %cst_66 : f32 to vector<8x256xf32>
    %200 = arith.addf %199, %198 : vector<8x256xf32>
    %201 = arith.mulf %193, %200 : vector<8x256xf32>
    %cst_67 = arith.constant -0.330299497 : f32
    %202 = vector.broadcast %cst_67 : f32 to vector<8x256xf32>
    %203 = arith.addf %202, %201 : vector<8x256xf32>
    %204 = arith.mulf %193, %203 : vector<8x256xf32>
    %cst_68 = arith.constant 9.998660e-01 : f32
    %205 = vector.broadcast %cst_68 : f32 to vector<8x256xf32>
    %206 = arith.addf %205, %204 : vector<8x256xf32>
    %207 = arith.mulf %192, %206 : vector<8x256xf32>
    %cst_69 = arith.constant 1.000000e+00 : f32
    %208 = vector.broadcast %cst_69 : f32 to vector<8x256xf32>
    %209 = arith.cmpf ogt, %182, %208 : vector<8x256xf32>
    %cst_70 = arith.constant 1.57079637 : f32
    %210 = vector.broadcast %cst_70 : f32 to vector<8x256xf32>
    %211 = arith.subf %210, %207 : vector<8x256xf32>
    %212 = arith.select %209, %211, %207 : vector<8x256xi1>, vector<8x256xf32>
    %cst_71 = arith.constant 0.000000e+00 : f32
    %213 = vector.broadcast %cst_71 : f32 to vector<8x256xf32>
    %214 = arith.cmpf olt, %181, %213 : vector<8x256xf32>
    %cst_72 = arith.constant 0.000000e+00 : f32
    %215 = vector.broadcast %cst_72 : f32 to vector<8x256xf32>
    %216 = arith.subf %215, %212 : vector<8x256xf32>
    %217 = arith.select %214, %216, %212 : vector<8x256xi1>, vector<8x256xf32>
    %cst_73 = arith.constant 1.208400e+00 : f32
    %218 = vector.broadcast %cst_73 : f32 to vector<8x256xf32>
    %219 = arith.mulf %218, %217 : vector<8x256xf32>
    %220 = math.exp %219 : vector<8x256xf32>
    %221 = arith.mulf %220, %24 : vector<8x256xf32>
    %222 = arith.addf %221, %179 : vector<8x256xf32>
    %223 = vector.broadcast %1 : vector<1x256xf32> to vector<8x256xf32>
    %224 = arith.mulf %222, %223 : vector<8x256xf32>
    %225 = tpu.concatenate %124, %224 in 0 : vector<8x256xf32>, vector<8x256xf32> -> vector<16x256xf32>
    %c1_74 = arith.constant 1 : index
    %c0_75 = arith.constant 0 : index
    %c0_76 = arith.constant 0 : index
    %226 = vector.load %arg2[%c1_74, %c0_75, %c0_76] : memref<2x16x16xf32, #tpu.memory_space<vmem>>, vector<1x16x16xf32>
    %227 = vector.shape_cast %226 : vector<1x16x16xf32> to vector<16x16xf32>
    %cst_77 = arith.constant dense<0.000000e+00> : vector<16x256xf32>
    %228 = tpu.matmul %227, %225, %cst_77 {dimension_numbers = #tpu.dot_dimension_numbers<[1], [0], [0], [1], [0, 0, 1, 1], [], []>} : vector<16x16xf32>, vector<16x256xf32>, vector<16x256xf32> -> vector<16x256xf32>
    %229 = vector.extract_strided_slice %228 {offsets = [0, 0], sizes = [8, 256], strides = [1, 1]} : vector<16x256xf32> to vector<8x256xf32>
    %230 = vector.extract_strided_slice %228 {offsets = [8, 0], sizes = [8, 256], strides = [1, 1]} : vector<16x256xf32> to vector<8x256xf32>
    %cst_78 = arith.constant 0.000000e+00 : f32
    %231 = vector.broadcast %cst_78 : f32 to vector<8x16xf32>
    %232 = tpu.concatenate %231, %230, %231 in 1 : vector<8x16xf32>, vector<8x256xf32>, vector<8x16xf32> -> vector<8x288xf32>
    %233 = vector.extract_strided_slice %232 {offsets = [0, 5], sizes = [8, 256], strides = [1, 1]} : vector<8x288xf32> to vector<8x256xf32>
    %234 = vector.extract_strided_slice %232 {offsets = [0, 6], sizes = [8, 256], strides = [1, 1]} : vector<8x288xf32> to vector<8x256xf32>
    %235 = vector.extract_strided_slice %232 {offsets = [0, 7], sizes = [8, 256], strides = [1, 1]} : vector<8x288xf32> to vector<8x256xf32>
    %236 = vector.extract_strided_slice %232 {offsets = [0, 15], sizes = [8, 256], strides = [1, 1]} : vector<8x288xf32> to vector<8x256xf32>
    %237 = vector.extract_strided_slice %232 {offsets = [0, 16], sizes = [8, 256], strides = [1, 1]} : vector<8x288xf32> to vector<8x256xf32>
    %238 = vector.extract_strided_slice %232 {offsets = [0, 17], sizes = [8, 256], strides = [1, 1]} : vector<8x288xf32> to vector<8x256xf32>
    %239 = vector.extract_strided_slice %232 {offsets = [0, 25], sizes = [8, 256], strides = [1, 1]} : vector<8x288xf32> to vector<8x256xf32>
    %240 = vector.extract_strided_slice %232 {offsets = [0, 26], sizes = [8, 256], strides = [1, 1]} : vector<8x288xf32> to vector<8x256xf32>
    %241 = vector.extract_strided_slice %232 {offsets = [0, 27], sizes = [8, 256], strides = [1, 1]} : vector<8x288xf32> to vector<8x256xf32>
    %242 = tpu.concatenate %233, %234, %235, %236, %237, %238, %239, %240, %241 in 0 : vector<8x256xf32>, vector<8x256xf32>, vector<8x256xf32>, vector<8x256xf32>, vector<8x256xf32>, vector<8x256xf32>, vector<8x256xf32>, vector<8x256xf32>, vector<8x256xf32> -> vector<72x256xf32>
    %c2 = arith.constant 2 : index
    %c0_79 = arith.constant 0 : index
    %c0_80 = arith.constant 0 : index
    %243 = vector.load %arg6[%c2, %c0_79, %c0_80] : memref<4x64x1xf32, #tpu.memory_space<vmem>>, vector<1x64x1xf32>
    %244 = vector.shape_cast %243 : vector<1x64x1xf32> to vector<64x1xf32>
    %245 = tpu.concatenate %242, %18 in 0 : vector<72x256xf32>, vector<72x256xf32> -> vector<144x256xf32>
    %c2_81 = arith.constant 2 : index
    %c0_82 = arith.constant 0 : index
    %c0_83 = arith.constant 0 : index
    %246 = vector.load %arg3[%c2_81, %c0_82, %c0_83] : memref<4x16x144xf32, #tpu.memory_space<vmem>>, vector<1x16x144xf32>
    %247 = vector.shape_cast %246 : vector<1x16x144xf32> to vector<16x144xf32>
    %cst_84 = arith.constant dense<0.000000e+00> : vector<16x256xf32>
    %248 = tpu.matmul %247, %245, %cst_84 {dimension_numbers = #tpu.dot_dimension_numbers<[1], [0], [0], [1], [0, 0, 1, 1], [], []>} : vector<16x144xf32>, vector<144x256xf32>, vector<16x256xf32> -> vector<16x256xf32>
    %249 = vector.extract_strided_slice %244 {offsets = [0, 0], sizes = [16, 1], strides = [1, 1]} : vector<64x1xf32> to vector<16x1xf32>
    %250 = vector.broadcast %249 : vector<16x1xf32> to vector<16x256xf32>
    %251 = arith.addf %248, %250 : vector<16x256xf32>
    %cst_85 = arith.constant 0.000000e+00 : f32
    %252 = vector.broadcast %cst_85 : f32 to vector<16x256xf32>
    %253 = arith.maximumf %251, %252 : vector<16x256xf32>
    %254 = vector.broadcast %1 : vector<1x256xf32> to vector<16x256xf32>
    %255 = arith.mulf %253, %254 : vector<16x256xf32>
    %c2_86 = arith.constant 2 : index
    %c0_87 = arith.constant 0 : index
    %c0_88 = arith.constant 0 : index
    %256 = vector.load %arg4[%c2_86, %c0_87, %c0_88] : memref<4x32x16xf32, #tpu.memory_space<vmem>>, vector<1x32x16xf32>
    %257 = vector.shape_cast %256 : vector<1x32x16xf32> to vector<32x16xf32>
    %cst_89 = arith.constant dense<0.000000e+00> : vector<32x256xf32>
    %258 = tpu.matmul %257, %255, %cst_89 {dimension_numbers = #tpu.dot_dimension_numbers<[1], [0], [0], [1], [0, 0, 1, 1], [], []>} : vector<32x16xf32>, vector<16x256xf32>, vector<32x256xf32> -> vector<32x256xf32>
    %259 = vector.extract_strided_slice %244 {offsets = [16, 0], sizes = [32, 1], strides = [1, 1]} : vector<64x1xf32> to vector<32x1xf32>
    %260 = vector.broadcast %259 : vector<32x1xf32> to vector<32x256xf32>
    %261 = arith.addf %258, %260 : vector<32x256xf32>
    %cst_90 = arith.constant 0.000000e+00 : f32
    %262 = vector.broadcast %cst_90 : f32 to vector<32x256xf32>
    %263 = arith.maximumf %261, %262 : vector<32x256xf32>
    %264 = vector.broadcast %1 : vector<1x256xf32> to vector<32x256xf32>
    %265 = arith.mulf %263, %264 : vector<32x256xf32>
    %c2_91 = arith.constant 2 : index
    %c0_92 = arith.constant 0 : index
    %c0_93 = arith.constant 0 : index
    %266 = vector.load %arg5[%c2_91, %c0_92, %c0_93] : memref<4x16x288xf32, #tpu.memory_space<vmem>>, vector<1x16x288xf32>
    %267 = vector.shape_cast %266 : vector<1x16x288xf32> to vector<16x288xf32>
    %cst_94 = arith.constant 0.000000e+00 : f32
    %268 = vector.broadcast %cst_94 : f32 to vector<32x16xf32>
    %269 = tpu.concatenate %268, %265, %268 in 1 : vector<32x16xf32>, vector<32x256xf32>, vector<32x16xf32> -> vector<32x288xf32>
    %270 = vector.extract_strided_slice %269 {offsets = [0, 5], sizes = [32, 256], strides = [1, 1]} : vector<32x288xf32> to vector<32x256xf32>
    %271 = vector.extract_strided_slice %269 {offsets = [0, 6], sizes = [32, 256], strides = [1, 1]} : vector<32x288xf32> to vector<32x256xf32>
    %272 = vector.extract_strided_slice %269 {offsets = [0, 7], sizes = [32, 256], strides = [1, 1]} : vector<32x288xf32> to vector<32x256xf32>
    %273 = vector.extract_strided_slice %269 {offsets = [0, 15], sizes = [32, 256], strides = [1, 1]} : vector<32x288xf32> to vector<32x256xf32>
    %274 = vector.extract_strided_slice %269 {offsets = [0, 16], sizes = [32, 256], strides = [1, 1]} : vector<32x288xf32> to vector<32x256xf32>
    %275 = vector.extract_strided_slice %269 {offsets = [0, 17], sizes = [32, 256], strides = [1, 1]} : vector<32x288xf32> to vector<32x256xf32>
    %276 = vector.extract_strided_slice %269 {offsets = [0, 25], sizes = [32, 256], strides = [1, 1]} : vector<32x288xf32> to vector<32x256xf32>
    %277 = vector.extract_strided_slice %269 {offsets = [0, 26], sizes = [32, 256], strides = [1, 1]} : vector<32x288xf32> to vector<32x256xf32>
    %278 = vector.extract_strided_slice %269 {offsets = [0, 27], sizes = [32, 256], strides = [1, 1]} : vector<32x288xf32> to vector<32x256xf32>
    %279 = tpu.concatenate %270, %271, %272, %273, %274, %275, %276, %277, %278 in 0 : vector<32x256xf32>, vector<32x256xf32>, vector<32x256xf32>, vector<32x256xf32>, vector<32x256xf32>, vector<32x256xf32>, vector<32x256xf32>, vector<32x256xf32>, vector<32x256xf32> -> vector<288x256xf32>
    %cst_95 = arith.constant dense<0.000000e+00> : vector<16x256xf32>
    %280 = tpu.matmul %267, %279, %cst_95 {dimension_numbers = #tpu.dot_dimension_numbers<[1], [0], [0], [1], [0, 0, 1, 1], [], []>} : vector<16x288xf32>, vector<288x256xf32>, vector<16x256xf32> -> vector<16x256xf32>
    %281 = vector.extract_strided_slice %244 {offsets = [48, 0], sizes = [16, 1], strides = [1, 1]} : vector<64x1xf32> to vector<16x1xf32>
    %282 = vector.broadcast %281 : vector<16x1xf32> to vector<16x256xf32>
    %283 = arith.addf %280, %282 : vector<16x256xf32>
    %284 = vector.extract_strided_slice %283 {offsets = [0, 0], sizes = [8, 256], strides = [1, 1]} : vector<16x256xf32> to vector<8x256xf32>
    %285 = vector.extract_strided_slice %283 {offsets = [8, 0], sizes = [8, 256], strides = [1, 1]} : vector<16x256xf32> to vector<8x256xf32>
    %cst_96 = arith.constant 0.526315808 : f32
    %286 = vector.broadcast %cst_96 : f32 to vector<8x256xf32>
    %287 = arith.mulf %284, %286 : vector<8x256xf32>
    %288 = math.absf %287 : vector<8x256xf32>
    %cst_97 = arith.constant 1.000000e+00 : f32
    %289 = vector.broadcast %cst_97 : f32 to vector<8x256xf32>
    %290 = arith.maximumf %288, %289 : vector<8x256xf32>
    %291 = tpu.reciprocal %290 {approx = true} : vector<8x256xf32> -> vector<8x256xf32>
    %292 = arith.mulf %290, %291 : vector<8x256xf32>
    %cst_98 = arith.constant 2.000000e+00 : f32
    %293 = vector.broadcast %cst_98 : f32 to vector<8x256xf32>
    %294 = arith.subf %293, %292 : vector<8x256xf32>
    %295 = arith.mulf %291, %294 : vector<8x256xf32>
    %cst_99 = arith.constant 1.000000e+00 : f32
    %296 = vector.broadcast %cst_99 : f32 to vector<8x256xf32>
    %297 = arith.cmpf ogt, %288, %296 : vector<8x256xf32>
    %298 = arith.select %297, %295, %288 : vector<8x256xi1>, vector<8x256xf32>
    %299 = arith.mulf %298, %298 : vector<8x256xf32>
    %cst_100 = arith.constant 2.083510e-02 : f32
    %300 = vector.broadcast %cst_100 : f32 to vector<8x256xf32>
    %301 = arith.mulf %299, %300 : vector<8x256xf32>
    %cst_101 = arith.constant -8.513300e-02 : f32
    %302 = vector.broadcast %cst_101 : f32 to vector<8x256xf32>
    %303 = arith.addf %302, %301 : vector<8x256xf32>
    %304 = arith.mulf %299, %303 : vector<8x256xf32>
    %cst_102 = arith.constant 1.801410e-01 : f32
    %305 = vector.broadcast %cst_102 : f32 to vector<8x256xf32>
    %306 = arith.addf %305, %304 : vector<8x256xf32>
    %307 = arith.mulf %299, %306 : vector<8x256xf32>
    %cst_103 = arith.constant -0.330299497 : f32
    %308 = vector.broadcast %cst_103 : f32 to vector<8x256xf32>
    %309 = arith.addf %308, %307 : vector<8x256xf32>
    %310 = arith.mulf %299, %309 : vector<8x256xf32>
    %cst_104 = arith.constant 9.998660e-01 : f32
    %311 = vector.broadcast %cst_104 : f32 to vector<8x256xf32>
    %312 = arith.addf %311, %310 : vector<8x256xf32>
    %313 = arith.mulf %298, %312 : vector<8x256xf32>
    %cst_105 = arith.constant 1.000000e+00 : f32
    %314 = vector.broadcast %cst_105 : f32 to vector<8x256xf32>
    %315 = arith.cmpf ogt, %288, %314 : vector<8x256xf32>
    %cst_106 = arith.constant 1.57079637 : f32
    %316 = vector.broadcast %cst_106 : f32 to vector<8x256xf32>
    %317 = arith.subf %316, %313 : vector<8x256xf32>
    %318 = arith.select %315, %317, %313 : vector<8x256xi1>, vector<8x256xf32>
    %cst_107 = arith.constant 0.000000e+00 : f32
    %319 = vector.broadcast %cst_107 : f32 to vector<8x256xf32>
    %320 = arith.cmpf olt, %287, %319 : vector<8x256xf32>
    %cst_108 = arith.constant 0.000000e+00 : f32
    %321 = vector.broadcast %cst_108 : f32 to vector<8x256xf32>
    %322 = arith.subf %321, %318 : vector<8x256xf32>
    %323 = arith.select %320, %322, %318 : vector<8x256xi1>, vector<8x256xf32>
    %cst_109 = arith.constant 1.208400e+00 : f32
    %324 = vector.broadcast %cst_109 : f32 to vector<8x256xf32>
    %325 = arith.mulf %324, %323 : vector<8x256xf32>
    %326 = math.exp %325 : vector<8x256xf32>
    %327 = arith.mulf %326, %229 : vector<8x256xf32>
    %328 = arith.addf %327, %285 : vector<8x256xf32>
    %329 = vector.broadcast %1 : vector<1x256xf32> to vector<8x256xf32>
    %330 = arith.mulf %328, %329 : vector<8x256xf32>
    %cst_110 = arith.constant 0.000000e+00 : f32
    %331 = vector.broadcast %cst_110 : f32 to vector<8x16xf32>
    %332 = tpu.concatenate %331, %330, %331 in 1 : vector<8x16xf32>, vector<8x256xf32>, vector<8x16xf32> -> vector<8x288xf32>
    %333 = vector.extract_strided_slice %332 {offsets = [0, 5], sizes = [8, 256], strides = [1, 1]} : vector<8x288xf32> to vector<8x256xf32>
    %334 = vector.extract_strided_slice %332 {offsets = [0, 6], sizes = [8, 256], strides = [1, 1]} : vector<8x288xf32> to vector<8x256xf32>
    %335 = vector.extract_strided_slice %332 {offsets = [0, 7], sizes = [8, 256], strides = [1, 1]} : vector<8x288xf32> to vector<8x256xf32>
    %336 = vector.extract_strided_slice %332 {offsets = [0, 15], sizes = [8, 256], strides = [1, 1]} : vector<8x288xf32> to vector<8x256xf32>
    %337 = vector.extract_strided_slice %332 {offsets = [0, 16], sizes = [8, 256], strides = [1, 1]} : vector<8x288xf32> to vector<8x256xf32>
    %338 = vector.extract_strided_slice %332 {offsets = [0, 17], sizes = [8, 256], strides = [1, 1]} : vector<8x288xf32> to vector<8x256xf32>
    %339 = vector.extract_strided_slice %332 {offsets = [0, 25], sizes = [8, 256], strides = [1, 1]} : vector<8x288xf32> to vector<8x256xf32>
    %340 = vector.extract_strided_slice %332 {offsets = [0, 26], sizes = [8, 256], strides = [1, 1]} : vector<8x288xf32> to vector<8x256xf32>
    %341 = vector.extract_strided_slice %332 {offsets = [0, 27], sizes = [8, 256], strides = [1, 1]} : vector<8x288xf32> to vector<8x256xf32>
    %342 = tpu.concatenate %333, %334, %335, %336, %337, %338, %339, %340, %341 in 0 : vector<8x256xf32>, vector<8x256xf32>, vector<8x256xf32>, vector<8x256xf32>, vector<8x256xf32>, vector<8x256xf32>, vector<8x256xf32>, vector<8x256xf32>, vector<8x256xf32> -> vector<72x256xf32>
    %c3 = arith.constant 3 : index
    %c0_111 = arith.constant 0 : index
    %c0_112 = arith.constant 0 : index
    %343 = vector.load %arg6[%c3, %c0_111, %c0_112] : memref<4x64x1xf32, #tpu.memory_space<vmem>>, vector<1x64x1xf32>
    %344 = vector.shape_cast %343 : vector<1x64x1xf32> to vector<64x1xf32>
    %345 = tpu.concatenate %342, %18 in 0 : vector<72x256xf32>, vector<72x256xf32> -> vector<144x256xf32>
    %c3_113 = arith.constant 3 : index
    %c0_114 = arith.constant 0 : index
    %c0_115 = arith.constant 0 : index
    %346 = vector.load %arg3[%c3_113, %c0_114, %c0_115] : memref<4x16x144xf32, #tpu.memory_space<vmem>>, vector<1x16x144xf32>
    %347 = vector.shape_cast %346 : vector<1x16x144xf32> to vector<16x144xf32>
    %cst_116 = arith.constant dense<0.000000e+00> : vector<16x256xf32>
    %348 = tpu.matmul %347, %345, %cst_116 {dimension_numbers = #tpu.dot_dimension_numbers<[1], [0], [0], [1], [0, 0, 1, 1], [], []>} : vector<16x144xf32>, vector<144x256xf32>, vector<16x256xf32> -> vector<16x256xf32>
    %349 = vector.extract_strided_slice %344 {offsets = [0, 0], sizes = [16, 1], strides = [1, 1]} : vector<64x1xf32> to vector<16x1xf32>
    %350 = vector.broadcast %349 : vector<16x1xf32> to vector<16x256xf32>
    %351 = arith.addf %348, %350 : vector<16x256xf32>
    %cst_117 = arith.constant 0.000000e+00 : f32
    %352 = vector.broadcast %cst_117 : f32 to vector<16x256xf32>
    %353 = arith.maximumf %351, %352 : vector<16x256xf32>
    %354 = vector.broadcast %1 : vector<1x256xf32> to vector<16x256xf32>
    %355 = arith.mulf %353, %354 : vector<16x256xf32>
    %c3_118 = arith.constant 3 : index
    %c0_119 = arith.constant 0 : index
    %c0_120 = arith.constant 0 : index
    %356 = vector.load %arg4[%c3_118, %c0_119, %c0_120] : memref<4x32x16xf32, #tpu.memory_space<vmem>>, vector<1x32x16xf32>
    %357 = vector.shape_cast %356 : vector<1x32x16xf32> to vector<32x16xf32>
    %cst_121 = arith.constant dense<0.000000e+00> : vector<32x256xf32>
    %358 = tpu.matmul %357, %355, %cst_121 {dimension_numbers = #tpu.dot_dimension_numbers<[1], [0], [0], [1], [0, 0, 1, 1], [], []>} : vector<32x16xf32>, vector<16x256xf32>, vector<32x256xf32> -> vector<32x256xf32>
    %359 = vector.extract_strided_slice %344 {offsets = [16, 0], sizes = [32, 1], strides = [1, 1]} : vector<64x1xf32> to vector<32x1xf32>
    %360 = vector.broadcast %359 : vector<32x1xf32> to vector<32x256xf32>
    %361 = arith.addf %358, %360 : vector<32x256xf32>
    %cst_122 = arith.constant 0.000000e+00 : f32
    %362 = vector.broadcast %cst_122 : f32 to vector<32x256xf32>
    %363 = arith.maximumf %361, %362 : vector<32x256xf32>
    %364 = vector.broadcast %1 : vector<1x256xf32> to vector<32x256xf32>
    %365 = arith.mulf %363, %364 : vector<32x256xf32>
    %c3_123 = arith.constant 3 : index
    %c0_124 = arith.constant 0 : index
    %c0_125 = arith.constant 0 : index
    %366 = vector.load %arg5[%c3_123, %c0_124, %c0_125] : memref<4x16x288xf32, #tpu.memory_space<vmem>>, vector<1x16x288xf32>
    %367 = vector.shape_cast %366 : vector<1x16x288xf32> to vector<16x288xf32>
    %cst_126 = arith.constant 0.000000e+00 : f32
    %368 = vector.broadcast %cst_126 : f32 to vector<32x16xf32>
    %369 = tpu.concatenate %368, %365, %368 in 1 : vector<32x16xf32>, vector<32x256xf32>, vector<32x16xf32> -> vector<32x288xf32>
    %370 = vector.extract_strided_slice %369 {offsets = [0, 5], sizes = [32, 256], strides = [1, 1]} : vector<32x288xf32> to vector<32x256xf32>
    %371 = vector.extract_strided_slice %369 {offsets = [0, 6], sizes = [32, 256], strides = [1, 1]} : vector<32x288xf32> to vector<32x256xf32>
    %372 = vector.extract_strided_slice %369 {offsets = [0, 7], sizes = [32, 256], strides = [1, 1]} : vector<32x288xf32> to vector<32x256xf32>
    %373 = vector.extract_strided_slice %369 {offsets = [0, 15], sizes = [32, 256], strides = [1, 1]} : vector<32x288xf32> to vector<32x256xf32>
    %374 = vector.extract_strided_slice %369 {offsets = [0, 16], sizes = [32, 256], strides = [1, 1]} : vector<32x288xf32> to vector<32x256xf32>
    %375 = vector.extract_strided_slice %369 {offsets = [0, 17], sizes = [32, 256], strides = [1, 1]} : vector<32x288xf32> to vector<32x256xf32>
    %376 = vector.extract_strided_slice %369 {offsets = [0, 25], sizes = [32, 256], strides = [1, 1]} : vector<32x288xf32> to vector<32x256xf32>
    %377 = vector.extract_strided_slice %369 {offsets = [0, 26], sizes = [32, 256], strides = [1, 1]} : vector<32x288xf32> to vector<32x256xf32>
    %378 = vector.extract_strided_slice %369 {offsets = [0, 27], sizes = [32, 256], strides = [1, 1]} : vector<32x288xf32> to vector<32x256xf32>
    %379 = tpu.concatenate %370, %371, %372, %373, %374, %375, %376, %377, %378 in 0 : vector<32x256xf32>, vector<32x256xf32>, vector<32x256xf32>, vector<32x256xf32>, vector<32x256xf32>, vector<32x256xf32>, vector<32x256xf32>, vector<32x256xf32>, vector<32x256xf32> -> vector<288x256xf32>
    %cst_127 = arith.constant dense<0.000000e+00> : vector<16x256xf32>
    %380 = tpu.matmul %367, %379, %cst_127 {dimension_numbers = #tpu.dot_dimension_numbers<[1], [0], [0], [1], [0, 0, 1, 1], [], []>} : vector<16x288xf32>, vector<288x256xf32>, vector<16x256xf32> -> vector<16x256xf32>
    %381 = vector.extract_strided_slice %344 {offsets = [48, 0], sizes = [16, 1], strides = [1, 1]} : vector<64x1xf32> to vector<16x1xf32>
    %382 = vector.broadcast %381 : vector<16x1xf32> to vector<16x256xf32>
    %383 = arith.addf %380, %382 : vector<16x256xf32>
    %384 = vector.extract_strided_slice %383 {offsets = [0, 0], sizes = [8, 256], strides = [1, 1]} : vector<16x256xf32> to vector<8x256xf32>
    %385 = vector.extract_strided_slice %383 {offsets = [8, 0], sizes = [8, 256], strides = [1, 1]} : vector<16x256xf32> to vector<8x256xf32>
    %cst_128 = arith.constant 0.526315808 : f32
    %386 = vector.broadcast %cst_128 : f32 to vector<8x256xf32>
    %387 = arith.mulf %384, %386 : vector<8x256xf32>
    %388 = math.absf %387 : vector<8x256xf32>
    %cst_129 = arith.constant 1.000000e+00 : f32
    %389 = vector.broadcast %cst_129 : f32 to vector<8x256xf32>
    %390 = arith.maximumf %388, %389 : vector<8x256xf32>
    %391 = tpu.reciprocal %390 {approx = true} : vector<8x256xf32> -> vector<8x256xf32>
    %392 = arith.mulf %390, %391 : vector<8x256xf32>
    %cst_130 = arith.constant 2.000000e+00 : f32
    %393 = vector.broadcast %cst_130 : f32 to vector<8x256xf32>
    %394 = arith.subf %393, %392 : vector<8x256xf32>
    %395 = arith.mulf %391, %394 : vector<8x256xf32>
    %cst_131 = arith.constant 1.000000e+00 : f32
    %396 = vector.broadcast %cst_131 : f32 to vector<8x256xf32>
    %397 = arith.cmpf ogt, %388, %396 : vector<8x256xf32>
    %398 = arith.select %397, %395, %388 : vector<8x256xi1>, vector<8x256xf32>
    %399 = arith.mulf %398, %398 : vector<8x256xf32>
    %cst_132 = arith.constant 2.083510e-02 : f32
    %400 = vector.broadcast %cst_132 : f32 to vector<8x256xf32>
    %401 = arith.mulf %399, %400 : vector<8x256xf32>
    %cst_133 = arith.constant -8.513300e-02 : f32
    %402 = vector.broadcast %cst_133 : f32 to vector<8x256xf32>
    %403 = arith.addf %402, %401 : vector<8x256xf32>
    %404 = arith.mulf %399, %403 : vector<8x256xf32>
    %cst_134 = arith.constant 1.801410e-01 : f32
    %405 = vector.broadcast %cst_134 : f32 to vector<8x256xf32>
    %406 = arith.addf %405, %404 : vector<8x256xf32>
    %407 = arith.mulf %399, %406 : vector<8x256xf32>
    %cst_135 = arith.constant -0.330299497 : f32
    %408 = vector.broadcast %cst_135 : f32 to vector<8x256xf32>
    %409 = arith.addf %408, %407 : vector<8x256xf32>
    %410 = arith.mulf %399, %409 : vector<8x256xf32>
    %cst_136 = arith.constant 9.998660e-01 : f32
    %411 = vector.broadcast %cst_136 : f32 to vector<8x256xf32>
    %412 = arith.addf %411, %410 : vector<8x256xf32>
    %413 = arith.mulf %398, %412 : vector<8x256xf32>
    %cst_137 = arith.constant 1.000000e+00 : f32
    %414 = vector.broadcast %cst_137 : f32 to vector<8x256xf32>
    %415 = arith.cmpf ogt, %388, %414 : vector<8x256xf32>
    %cst_138 = arith.constant 1.57079637 : f32
    %416 = vector.broadcast %cst_138 : f32 to vector<8x256xf32>
    %417 = arith.subf %416, %413 : vector<8x256xf32>
    %418 = arith.select %415, %417, %413 : vector<8x256xi1>, vector<8x256xf32>
    %cst_139 = arith.constant 0.000000e+00 : f32
    %419 = vector.broadcast %cst_139 : f32 to vector<8x256xf32>
    %420 = arith.cmpf olt, %387, %419 : vector<8x256xf32>
    %cst_140 = arith.constant 0.000000e+00 : f32
    %421 = vector.broadcast %cst_140 : f32 to vector<8x256xf32>
    %422 = arith.subf %421, %418 : vector<8x256xf32>
    %423 = arith.select %420, %422, %418 : vector<8x256xi1>, vector<8x256xf32>
    %cst_141 = arith.constant 1.208400e+00 : f32
    %424 = vector.broadcast %cst_141 : f32 to vector<8x256xf32>
    %425 = arith.mulf %424, %423 : vector<8x256xf32>
    %426 = math.exp %425 : vector<8x256xf32>
    %427 = arith.mulf %426, %230 : vector<8x256xf32>
    %428 = arith.addf %427, %385 : vector<8x256xf32>
    %429 = vector.broadcast %1 : vector<1x256xf32> to vector<8x256xf32>
    %430 = arith.mulf %428, %429 : vector<8x256xf32>
    %c0_142 = arith.constant 0 : index
    %c0_143 = arith.constant 0 : index
    %431 = vector.load %arg7[%c0_142, %c0_143] : memref<16x256xf32, #tpu.memory_space<vmem>>, vector<8x256xf32>
    tpu.vector_store %arg7[%c0_142, %c0_143], %330 {strides = array<i32>} : memref<16x256xf32, #tpu.memory_space<vmem>>, vector<8x256xf32>,
    %c8 = arith.constant 8 : index
    %c0_144 = arith.constant 0 : index
    %432 = vector.load %arg7[%c8, %c0_144] : memref<16x256xf32, #tpu.memory_space<vmem>>, vector<8x256xf32>
    tpu.vector_store %arg7[%c8, %c0_144], %430 {strides = array<i32>} : memref<16x256xf32, #tpu.memory_space<vmem>>, vector<8x256xf32>,
    return
  }
}

</mosaic_0001>

<llo_original>
// kernel: _lambda_.1
$region0: #{_lambda_.1}
  #allocation0 [shape = 'u32[]', space=smem, size = 0x4, offset = 0x4, fixed_abs, tag = 'smem constant byte address 0x4 - core index']
  #allocation1 [shape = 'u32[72,128]{1,0:T(1,128)}', space=vmem, size = 0x9000, scoped, tag = 'internal scratch']
  %s0 = inlined_call_operand.vmem [shape: f32[48,256], index: 0, kind: input, shape index: {}]
  %s1 = inlined_call_operand.vmem [shape: f32[8,32], index: 1, kind: input, shape index: {}]
  %s2 = inlined_call_operand.vmem [shape: f32[2,16,16], index: 2, kind: input, shape index: {}]
  %s3 = inlined_call_operand.vmem [shape: f32[4,16,144], index: 3, kind: input, shape index: {}]
  %s4 = inlined_call_operand.vmem [shape: f32[4,32,16], index: 4, kind: input, shape index: {}]
  %s5 = inlined_call_operand.vmem [shape: f32[4,16,288], index: 5, kind: input, shape index: {}]
  %s6 = inlined_call_operand.vmem [shape: f32[4,64,1], index: 6, kind: input, shape index: {}]
  %s7 = inlined_call_operand.vmem [shape: f32[16,256], index: 7, kind: output, shape index: {}]
  %s8 = sld [smem:[#allocation0]]
  $region38: #{_lambda_.1} parent=0
    _
  %s10 = ssub.s32 1, %s8
  %s11 = scalar_select 0, %s10, %s8
  // Predicated region
  $region2: #{_lambda_.1} parent=0 // pred_check
    _
  $region3: #{_lambda_.1} parent=0 // pred_check_branch
    %13 = sbr.rel (0) target = $region5
  $region4: #{_lambda_.1} parent=0 // pred_region
    _
  $region5: #{_lambda_.1} parent=0 // pred_fallthru
    _
  // Predicated region
  $region6: #{_lambda_.1} parent=0 // pred_check
    _
  $region7: #{_lambda_.1} parent=0 // pred_check_branch
    %15 = sbr.rel (0) target = $region9
  $region8: #{_lambda_.1} parent=0 // pred_region
    _
  $region9: #{_lambda_.1} parent=0 // pred_fallthru
    _
  // Predicated region
  $region10: #{_lambda_.1} parent=0 // pred_check
    _
  $region11: #{_lambda_.1} parent=0 // pred_check_branch
    %17 = sbr.rel (0) target = $region13
  $region12: #{_lambda_.1} parent=0 // pred_region
    _
  $region13: #{_lambda_.1} parent=0 // pred_fallthru
    _
  // Predicated region
  $region14: #{_lambda_.1} parent=0 // pred_check
    _
  $region15: #{_lambda_.1} parent=0 // pred_check_branch
    %19 = sbr.rel (0) target = $region17
  $region16: #{_lambda_.1} parent=0 // pred_region
    _
  $region17: #{_lambda_.1} parent=0 // pred_fallthru
    _
  // Predicated region
  $region18: #{_lambda_.1} parent=0 // pred_check
    _
  $region19: #{_lambda_.1} parent=0 // pred_check_branch
    %21 = sbr.rel (0) target = $region21
  $region20: #{_lambda_.1} parent=0 // pred_region
    _
  $region21: #{_lambda_.1} parent=0 // pred_fallthru
    _
  // Predicated region
  $region22: #{_lambda_.1} parent=0 // pred_check
    _
  $region23: #{_lambda_.1} parent=0 // pred_check_branch
    %23 = sbr.rel (0) target = $region25
  $region24: #{_lambda_.1} parent=0 // pred_region
    _
  $region25: #{_lambda_.1} parent=0 // pred_fallthru
    _
  // Predicated region
  $region26: #{_lambda_.1} parent=0 // pred_check
    _
  $region27: #{_lambda_.1} parent=0 // pred_check_branch
    %25 = sbr.rel (0) target = $region29
  $region28: #{_lambda_.1} parent=0 // pred_region
    _
  $region29: #{_lambda_.1} parent=0 // pred_fallthru
    _
  %v26 = vld [vmem:[%s0] sm:$0xff]
  %v27 = vld [vmem:[%s0 + $0x8] sm:$0xff]
  %v28 = vld [vmem:[%s0 + $0x10] sm:$0xff]
  %v29 = vld [vmem:[%s0 + $0x18] sm:$0xff]
  %v30 = vld [vmem:[%s0 + $0x20] sm:$0xff]
  %v31 = vld [vmem:[%s0 + $0x28] sm:$0xff]
  %v32 = vld [vmem:[%s0 + $0x30] sm:$0xff]
  %v33 = vld [vmem:[%s0 + $0x38] sm:$0xff]
  %v34 = vld [vmem:[%s0 + $0x40] sm:$0xff]
  %v35 = vld [vmem:[%s0 + $0x48] sm:$0xff]
  %v36 = vld [vmem:[%s0 + $0x50] sm:$0xff]
  %v37 = vld [vmem:[%s0 + $0x58] sm:$0xff]
  %v38 = vld [vmem:[%s1] sm:$0xff]
  %vm39 = vcmask 261120
  %v41 = vsel %vm39, %v38, 0
  %43 = vmatpush.msra.mxu0 0.0
  %44 = vmatpush.msra.mxu0 0.0
  %45 = vmatpush.msra.mxu0 0.0
  %46 = vmatpush.msra.mxu0 0.0
  %47 = vmatpush.msra.mxu0 0.0
  %48 = vmatpush.msra.mxu0 0.0
  %49 = vmatpush.msra.mxu0 0.0
  %50 = vmatpush.msra.mxu0 0.0
  %51 = vmatpush.msra.mxu0 0.0
  %52 = vmatpush.msra.mxu0 0.0
  %53 = vmatpush.msra.mxu0 0.0
  %54 = vmatpush.msra.mxu0 0.0
  %55 = vmatpush.msra.mxu0 %v32
  %56 = vmatpush.msra.mxu0 %v30
  %57 = vmatpush.msra.mxu0 %v28
  %58 = vmatpush.msra.mxu0 %v26
  %59 = vmatmul.f32.gmra.mxu0 %v41
  %v60 = vpop.f32.mrf.mxu0
  %v61 = vadd.f32 0.0, %v60
  %62 = vdwg.mxu0
  %63 = vmatpush.msra.mxu0 0.0
  %64 = vmatpush.msra.mxu0 0.0
  %65 = vmatpush.msra.mxu0 0.0
  %66 = vmatpush.msra.mxu0 0.0
  %67 = vmatpush.msra.mxu0 0.0
  %68 = vmatpush.msra.mxu0 0.0
  %69 = vmatpush.msra.mxu0 0.0
  %70 = vmatpush.msra.mxu0 0.0
  %71 = vmatpush.msra.mxu0 0.0
  %72 = vmatpush.msra.mxu0 0.0
  %73 = vmatpush.msra.mxu0 0.0
  %74 = vmatpush.msra.mxu0 0.0
  %75 = vmatpush.msra.mxu0 %v33
  %76 = vmatpush.msra.mxu0 %v31
  %77 = vmatpush.msra.mxu0 %v29
  %78 = vmatpush.msra.mxu0 %v27
  %79 = vmatmul.f32.gmra.mxu0 %v41
  %v80 = vpop.f32.mrf.mxu0
  %v81 = vadd.f32 0.0, %v80
  %82 = vdwg.mxu0
  %v83 = vmax.f32 %v61, 0.0
  %v84 = vmax.f32 %v81, 0.0
  %87 = vrot.lane.b32.xlu0 %v83, 16
  %v88 = vpop.permute.xlu0 %87
  %89 = vrot.lane.b32.xlu0 %v84, 16
  %v90 = vpop.permute.xlu0 %89
  %vm91 = vcmask 130048
  %v92 = vsel %vm91, %v88, %v90
  %v95 = vsel %vm91, 0.0, %v88
  %v96 = vsel %vm91, %v90, 0.0
  %99 = vrot.lane.b32.xlu0 %v95, 127
  %v100 = vpop.permute.xlu0 %99
  %101 = vrot.lane.b32.xlu0 %v92, 127
  %v102 = vpop.permute.xlu0 %101
  %103 = vrot.lane.b32.xlu0 %v96, 127
  %v104 = vpop.permute.xlu0 %103
  %vm105 = vcmask 1039360
  %v106 = vsel %vm105, %v100, %v102
  %v107 = vsel %vm105, %v102, %v104
  %108 = vrot.lane.b32.xlu0 %v95, 126
  %v109 = vpop.permute.xlu0 %108
  %110 = vrot.lane.b32.xlu0 %v92, 126
  %v111 = vpop.permute.xlu0 %110
  %112 = vrot.lane.b32.xlu0 %v96, 126
  %v113 = vpop.permute.xlu0 %112
  %vm114 = vcmask 1031168
  %v115 = vsel %vm114, %v109, %v111
  %v116 = vsel %vm114, %v111, %v113
  %117 = vrot.lane.b32.xlu0 %v95, 118
  %v118 = vpop.permute.xlu0 %117
  %119 = vrot.lane.b32.xlu0 %v92, 118
  %v120 = vpop.permute.xlu0 %119
  %121 = vrot.lane.b32.xlu0 %v96, 118
  %v122 = vpop.permute.xlu0 %121
  %vm123 = vcmask 965632
  %v124 = vsel %vm123, %v118, %v120
  %v125 = vsel %vm123, %v120, %v122
  %126 = vrot.lane.b32.xlu0 %v95, 117
  %v127 = vpop.permute.xlu0 %126
  %128 = vrot.lane.b32.xlu0 %v92, 117
  %v129 = vpop.permute.xlu0 %128
  %130 = vrot.lane.b32.xlu0 %v96, 117
  %v131 = vpop.permute.xlu0 %130
  %vm132 = vcmask 957440
  %v133 = vsel %vm132, %v127, %v129
  %v134 = vsel %vm132, %v129, %v131
  %135 = vrot.lane.b32.xlu0 %v95, 116
  %v136 = vpop.permute.xlu0 %135
  %137 = vrot.lane.b32.xlu0 %v92, 116
  %v138 = vpop.permute.xlu0 %137
  %139 = vrot.lane.b32.xlu0 %v96, 116
  %v140 = vpop.permute.xlu0 %139
  %vm141 = vcmask 949248
  %v142 = vsel %vm141, %v136, %v138
  %v143 = vsel %vm141, %v138, %v140
  %144 = vrot.lane.b32.xlu0 %v95, 108
  %v145 = vpop.permute.xlu0 %144
  %146 = vrot.lane.b32.xlu0 %v92, 108
  %v147 = vpop.permute.xlu0 %146
  %148 = vrot.lane.b32.xlu0 %v96, 108
  %v149 = vpop.permute.xlu0 %148
  %vm150 = vcmask 883712
  %v151 = vsel %vm150, %v145, %v147
  %v152 = vsel %vm150, %v147, %v149
  %153 = vrot.lane.b32.xlu0 %v95, 107
  %v154 = vpop.permute.xlu0 %153
  %155 = vrot.lane.b32.xlu0 %v92, 107
  %v156 = vpop.permute.xlu0 %155
  %157 = vrot.lane.b32.xlu0 %v96, 107
  %v158 = vpop.permute.xlu0 %157
  %vm159 = vcmask 875520
  %v160 = vsel %vm159, %v154, %v156
  %v161 = vsel %vm159, %v156, %v158
  %162 = vrot.lane.b32.xlu0 %v95, 106
  %v163 = vpop.permute.xlu0 %162
  %164 = vrot.lane.b32.xlu0 %v92, 106
  %v165 = vpop.permute.xlu0 %164
  %166 = vrot.lane.b32.xlu0 %v96, 106
  %v167 = vpop.permute.xlu0 %166
  %vm168 = vcmask 867328
  %v169 = vsel %vm168, %v163, %v165
  %v170 = vsel %vm168, %v165, %v167
  %v171 = vld [vmem:[%s2] sm:$0xff]
  %v172 = vld [vmem:[%s2 + $0x8] sm:$0xff]
  %v174 = vsel %vm91, %v171, 0
  %v177 = vsel %vm91, %v172, 0
  %179 = vmatpush.msra.mxu0 0.0
  %180 = vmatpush.msra.mxu0 0.0
  %181 = vmatpush.msra.mxu0 0.0
  %182 = vmatpush.msra.mxu0 0.0
  %183 = vmatpush.msra.mxu0 0.0
  %184 = vmatpush.msra.mxu0 0.0
  %185 = vmatpush.msra.mxu0 0.0
  %186 = vmatpush.msra.mxu0 0.0
  %187 = vmatpush.msra.mxu0 0.0
  %188 = vmatpush.msra.mxu0 0.0
  %189 = vmatpush.msra.mxu0 0.0
  %190 = vmatpush.msra.mxu0 0.0
  %191 = vmatpush.msra.mxu0 0.0
  %192 = vmatpush.msra.mxu0 0.0
  %193 = vmatpush.msra.mxu0 %v36
  %194 = vmatpush.msra.mxu0 %v34
  %195 = vmatmul.f32.gmra.mxu0 %v174
  %v196 = vpop.f32.mrf.mxu0
  %v197 = vadd.f32 0.0, %v196
  %198 = vmatmul.f32.gmra.mxu0 %v177
  %v199 = vpop.f32.mrf.mxu0
  %v200 = vadd.f32 0.0, %v199
  %201 = vdwg.mxu0
  %202 = vmatpush.msra.mxu0 0.0
  %203 = vmatpush.msra.mxu0 0.0
  %204 = vmatpush.msra.mxu0 0.0
  %205 = vmatpush.msra.mxu0 0.0
  %206 = vmatpush.msra.mxu0 0.0
  %207 = vmatpush.msra.mxu0 0.0
  %208 = vmatpush.msra.mxu0 0.0
  %209 = vmatpush.msra.mxu0 0.0
  %210 = vmatpush.msra.mxu0 0.0
  %211 = vmatpush.msra.mxu0 0.0
  %212 = vmatpush.msra.mxu0 0.0
  %213 = vmatpush.msra.mxu0 0.0
  %214 = vmatpush.msra.mxu0 0.0
  %215 = vmatpush.msra.mxu0 0.0
  %216 = vmatpush.msra.mxu0 %v37
  %217 = vmatpush.msra.mxu0 %v35
  %218 = vmatmul.f32.gmra.mxu0 %v174
  %v219 = vpop.f32.mrf.mxu0
  %v220 = vadd.f32 0.0, %v219
  %221 = vmatmul.f32.gmra.mxu0 %v177
  %v222 = vpop.f32.mrf.mxu0
  %v223 = vadd.f32 0.0, %v222
  %224 = vdwg.mxu0
  %227 = vrot.lane.b32.xlu0 %v200, 16
  %v228 = vpop.permute.xlu0 %227
  %229 = vrot.lane.b32.xlu0 %v223, 16
  %v230 = vpop.permute.xlu0 %229
  %v231 = vsel %vm91, %v228, %v230
  %v234 = vsel %vm91, 0.0, %v228
  %v235 = vsel %vm91, %v230, 0.0
  %238 = vrot.lane.b32.xlu0 %v234, 127
  %v239 = vpop.permute.xlu0 %238
  %240 = vrot.lane.b32.xlu0 %v231, 127
  %v241 = vpop.permute.xlu0 %240
  %242 = vrot.lane.b32.xlu0 %v235, 127
  %v243 = vpop.permute.xlu0 %242
  %v244 = vsel %vm105, %v239, %v241
  %v245 = vsel %vm105, %v241, %v243
  %246 = vrot.lane.b32.xlu0 %v234, 126
  %v247 = vpop.permute.xlu0 %246
  %248 = vrot.lane.b32.xlu0 %v231, 126
  %v249 = vpop.permute.xlu0 %248
  %250 = vrot.lane.b32.xlu0 %v235, 126
  %v251 = vpop.permute.xlu0 %250
  %v252 = vsel %vm114, %v247, %v249
  %v253 = vsel %vm114, %v249, %v251
  %254 = vrot.lane.b32.xlu0 %v234, 118
  %v255 = vpop.permute.xlu0 %254
  %256 = vrot.lane.b32.xlu0 %v231, 118
  %v257 = vpop.permute.xlu0 %256
  %258 = vrot.lane.b32.xlu0 %v235, 118
  %v259 = vpop.permute.xlu0 %258
  %v260 = vsel %vm123, %v255, %v257
  %v261 = vsel %vm123, %v257, %v259
  %262 = vrot.lane.b32.xlu0 %v234, 117
  %v263 = vpop.permute.xlu0 %262
  %264 = vrot.lane.b32.xlu0 %v231, 117
  %v265 = vpop.permute.xlu0 %264
  %266 = vrot.lane.b32.xlu0 %v235, 117
  %v267 = vpop.permute.xlu0 %266
  %v268 = vsel %vm132, %v263, %v265
  %v269 = vsel %vm132, %v265, %v267
  %270 = vrot.lane.b32.xlu0 %v234, 116
  %v271 = vpop.permute.xlu0 %270
  %272 = vrot.lane.b32.xlu0 %v231, 116
  %v273 = vpop.permute.xlu0 %272
  %274 = vrot.lane.b32.xlu0 %v235, 116
  %v275 = vpop.permute.xlu0 %274
  %v276 = vsel %vm141, %v271, %v273
  %v277 = vsel %vm141, %v273, %v275
  %278 = vrot.lane.b32.xlu0 %v234, 108
  %v279 = vpop.permute.xlu0 %278
  %280 = vrot.lane.b32.xlu0 %v231, 108
  %v281 = vpop.permute.xlu0 %280
  %282 = vrot.lane.b32.xlu0 %v235, 108
  %v283 = vpop.permute.xlu0 %282
  %v284 = vsel %vm150, %v279, %v281
  %v285 = vsel %vm150, %v281, %v283
  %286 = vrot.lane.b32.xlu0 %v234, 107
  %v287 = vpop.permute.xlu0 %286
  %288 = vrot.lane.b32.xlu0 %v231, 107
  %v289 = vpop.permute.xlu0 %288
  %290 = vrot.lane.b32.xlu0 %v235, 107
  %v291 = vpop.permute.xlu0 %290
  %v292 = vsel %vm159, %v287, %v289
  %v293 = vsel %vm159, %v289, %v291
  %294 = vrot.lane.b32.xlu0 %v234, 106
  %v295 = vpop.permute.xlu0 %294
  %296 = vrot.lane.b32.xlu0 %v231, 106
  %v297 = vpop.permute.xlu0 %296
  %298 = vrot.lane.b32.xlu0 %v235, 106
  %v299 = vpop.permute.xlu0 %298
  %v300 = vsel %vm168, %v295, %v297
  %v301 = vsel %vm168, %v297, %v299
  %v302 = vld [vmem:[%s6] sm:$0xff]
  %v303 = vld [vmem:[%s6 + $0x8] sm:$0xff]
  %v304 = vld [vmem:[%s6 + $0x10] sm:$0xff]
  %v305 = vld [vmem:[%s6 + $0x18] sm:$0xff]
  %v306 = vld [vmem:[%s6 + $0x20] sm:$0xff]
  %v307 = vld [vmem:[%s6 + $0x28] sm:$0xff]
  %v308 = vld [vmem:[%s6 + $0x30] sm:$0xff]
  %v309 = vld [vmem:[%s6 + $0x38] sm:$0xff]
  %v310 = vld [vmem:[%s3] sm:$0xff]
  %v311 = vld [vmem:[%s3 + $0x8] sm:$0xff]
  %v312 = vld [vmem:[%s3 + $0x10] sm:$0xff]
  %v313 = vld [vmem:[%s3 + $0x18] sm:$0xff]
  %315 = vset.pattern.permute.xlu0 0
  %316 = vperm.xlu0 %315, %v302
  %v317 = vpop.permute.xlu0 %316
  %320 = vset.pattern.permute.xlu0 0
  %321 = vperm.xlu0 %320, %v303
  %v322 = vpop.permute.xlu0 %321
  %324 = vrot.lane.b32.xlu0 %v234, 123
  %v325 = vpop.permute.xlu0 %324
  %326 = vrot.lane.b32.xlu0 %v231, 123
  %v327 = vpop.permute.xlu0 %326
  %328 = vrot.lane.b32.xlu0 %v235, 123
  %v329 = vpop.permute.xlu0 %328
  %330 = vrot.lane.b32.xlu0 %v244, 123
  %v331 = vpop.permute.xlu0 %330
  %332 = vrot.lane.b32.xlu0 %v245, 123
  %v333 = vpop.permute.xlu0 %332
  %334 = vrot.lane.b32.xlu0 %v243, 123
  %v335 = vpop.permute.xlu0 %334
  %336 = vrot.lane.b32.xlu0 %v252, 123
  %v337 = vpop.permute.xlu0 %336
  %338 = vrot.lane.b32.xlu0 %v253, 123
  %v339 = vpop.permute.xlu0 %338
  %340 = vrot.lane.b32.xlu0 %v251, 123
  %v341 = vpop.permute.xlu0 %340
  %342 = vrot.lane.b32.xlu0 %v260, 123
  %v343 = vpop.permute.xlu0 %342
  %344 = vrot.lane.b32.xlu0 %v261, 123
  %v345 = vpop.permute.xlu0 %344
  %346 = vrot.lane.b32.xlu0 %v259, 123
  %v347 = vpop.permute.xlu0 %346
  %348 = vrot.lane.b32.xlu0 %v268, 123
  %v349 = vpop.permute.xlu0 %348
  %350 = vrot.lane.b32.xlu0 %v269, 123
  %v351 = vpop.permute.xlu0 %350
  %352 = vrot.lane.b32.xlu0 %v267, 123
  %v353 = vpop.permute.xlu0 %352
  %354 = vrot.lane.b32.xlu0 %v276, 123
  %v355 = vpop.permute.xlu0 %354
  %356 = vrot.lane.b32.xlu0 %v277, 123
  %v357 = vpop.permute.xlu0 %356
  %358 = vrot.lane.b32.xlu0 %v275, 123
  %v359 = vpop.permute.xlu0 %358
  %360 = vrot.lane.b32.xlu0 %v284, 123
  %v361 = vpop.permute.xlu0 %360
  %362 = vrot.lane.b32.xlu0 %v285, 123
  %v363 = vpop.permute.xlu0 %362
  %364 = vrot.lane.b32.xlu0 %v283, 123
  %v365 = vpop.permute.xlu0 %364
  %366 = vrot.lane.b32.xlu0 %v292, 123
  %v367 = vpop.permute.xlu0 %366
  %368 = vrot.lane.b32.xlu0 %v293, 123
  %v369 = vpop.permute.xlu0 %368
  %370 = vrot.lane.b32.xlu0 %v291, 123
  %v371 = vpop.permute.xlu0 %370
  %372 = vrot.lane.b32.xlu0 %v300, 123
  %v373 = vpop.permute.xlu0 %372
  %374 = vrot.lane.b32.xlu0 %v301, 123
  %v375 = vpop.permute.xlu0 %374
  %376 = vrot.lane.b32.xlu0 %v299, 123
  %v377 = vpop.permute.xlu0 %376
  %378 = vrot.lane.b32.xlu0 %v95, 123
  %v379 = vpop.permute.xlu0 %378
  %380 = vrot.lane.b32.xlu0 %v92, 123
  %v381 = vpop.permute.xlu0 %380
  %382 = vrot.lane.b32.xlu0 %v96, 123
  %v383 = vpop.permute.xlu0 %382
  %384 = vrot.lane.b32.xlu0 %v106, 123
  %v385 = vpop.permute.xlu0 %384
  %386 = vrot.lane.b32.xlu0 %v107, 123
  %v387 = vpop.permute.xlu0 %386
  %388 = vrot.lane.b32.xlu0 %v104, 123
  %v389 = vpop.permute.xlu0 %388
  %390 = vrot.lane.b32.xlu0 %v115, 123
  %v391 = vpop.permute.xlu0 %390
  %392 = vrot.lane.b32.xlu0 %v116, 123
  %v393 = vpop.permute.xlu0 %392
  %394 = vrot.lane.b32.xlu0 %v113, 123
  %v395 = vpop.permute.xlu0 %394
  %396 = vrot.lane.b32.xlu0 %v124, 123
  %v397 = vpop.permute.xlu0 %396
  %398 = vrot.lane.b32.xlu0 %v125, 123
  %v399 = vpop.permute.xlu0 %398
  %400 = vrot.lane.b32.xlu0 %v122, 123
  %v401 = vpop.permute.xlu0 %400
  %402 = vrot.lane.b32.xlu0 %v133, 123
  %v403 = vpop.permute.xlu0 %402
  %404 = vrot.lane.b32.xlu0 %v134, 123
  %v405 = vpop.permute.xlu0 %404
  %406 = vrot.lane.b32.xlu0 %v131, 123
  %v407 = vpop.permute.xlu0 %406
  %408 = vrot.lane.b32.xlu0 %v142, 123
  %v409 = vpop.permute.xlu0 %408
  %410 = vrot.lane.b32.xlu0 %v143, 123
  %v411 = vpop.permute.xlu0 %410
  %412 = vrot.lane.b32.xlu0 %v140, 123
  %v413 = vpop.permute.xlu0 %412
  %414 = vrot.lane.b32.xlu0 %v151, 123
  %v415 = vpop.permute.xlu0 %414
  %416 = vrot.lane.b32.xlu0 %v152, 123
  %v417 = vpop.permute.xlu0 %416
  %418 = vrot.lane.b32.xlu0 %v149, 123
  %v419 = vpop.permute.xlu0 %418
  %420 = vrot.lane.b32.xlu0 %v160, 123
  %v421 = vpop.permute.xlu0 %420
  %422 = vrot.lane.b32.xlu0 %v161, 123
  %v423 = vpop.permute.xlu0 %422
  %424 = vrot.lane.b32.xlu0 %v158, 123
  %v425 = vpop.permute.xlu0 %424
  %426 = vrot.lane.b32.xlu0 %v169, 123
  %v427 = vpop.permute.xlu0 %426
  %428 = vrot.lane.b32.xlu0 %v170, 123
  %v429 = vpop.permute.xlu0 %428
  %430 = vrot.lane.b32.xlu0 %v167, 123
  %v431 = vpop.permute.xlu0 %430
  %vm432 = vcmask 1006592
  %v433 = vsel %vm432, %v325, %v327
  %v434 = vsel %vm432, %v327, %v329
  %v435 = vsel %vm432, %v331, %v333
  %v436 = vsel %vm432, %v333, %v335
  %v437 = vsel %vm432, %v337, %v339
  %v438 = vsel %vm432, %v339, %v341
  %v439 = vsel %vm432, %v343, %v345
  %v440 = vsel %vm432, %v345, %v347
  %v441 = vsel %vm432, %v349, %v351
  %v442 = vsel %vm432, %v351, %v353
  %v443 = vsel %vm432, %v355, %v357
  %v444 = vsel %vm432, %v357, %v359
  %v445 = vsel %vm432, %v361, %v363
  %v446 = vsel %vm432, %v363, %v365
  %v447 = vsel %vm432, %v367, %v369
  %v448 = vsel %vm432, %v369, %v371
  %v449 = vsel %vm432, %v373, %v375
  %v450 = vsel %vm432, %v375, %v377
  %v451 = vsel %vm432, %v379, %v381
  %v452 = vsel %vm432, %v381, %v383
  %v453 = vsel %vm432, %v385, %v387
  %v454 = vsel %vm432, %v387, %v389
  %v455 = vsel %vm432, %v391, %v393
  %v456 = vsel %vm432, %v393, %v395
  %v457 = vsel %vm432, %v397, %v399
  %v458 = vsel %vm432, %v399, %v401
  %v459 = vsel %vm432, %v403, %v405
  %v460 = vsel %vm432, %v405, %v407
  %v461 = vsel %vm432, %v409, %v411
  %v462 = vsel %vm432, %v411, %v413
  %v463 = vsel %vm432, %v415, %v417
  %v464 = vsel %vm432, %v417, %v419
  %v465 = vsel %vm432, %v421, %v423
  %v466 = vsel %vm432, %v423, %v425
  %v467 = vsel %vm432, %v427, %v429
  %v468 = vsel %vm432, %v429, %v431
  %v506 = vsel %vm91, %v311, 0
  %v509 = vsel %vm91, %v313, 0
  %511 = vmatpush.msra.mxu0 %v463
  %512 = vmatpush.msra.mxu0 %v461
  %513 = vmatpush.msra.mxu0 %v459
  %514 = vmatpush.msra.mxu0 %v457
  %515 = vmatpush.msra.mxu0 %v455
  %516 = vmatpush.msra.mxu0 %v453
  %517 = vmatpush.msra.mxu0 %v451
  %518 = vmatpush.msra.mxu0 %v449
  %519 = vmatpush.msra.mxu0 %v447
  %520 = vmatpush.msra.mxu0 %v445
  %521 = vmatpush.msra.mxu0 %v443
  %522 = vmatpush.msra.mxu0 %v441
  %523 = vmatpush.msra.mxu0 %v439
  %524 = vmatpush.msra.mxu0 %v437
  %525 = vmatpush.msra.mxu0 %v435
  %526 = vmatpush.msra.mxu0 %v433
  %527 = vmatmul.f32.gmra.mxu0 %v310
  %v528 = vpop.f32.mrf.mxu0
  %v529 = vadd.f32 %v317, %v528
  %530 = vmatmul.f32.gmra.mxu0 %v312
  %v531 = vpop.f32.mrf.mxu0
  %v532 = vadd.f32 %v322, %v531
  %533 = vdwg.mxu0
  %534 = vmatpush.msra.mxu0 0.0
  %535 = vmatpush.msra.mxu0 0.0
  %536 = vmatpush.msra.mxu0 0.0
  %537 = vmatpush.msra.mxu0 0.0
  %538 = vmatpush.msra.mxu0 0.0
  %539 = vmatpush.msra.mxu0 0.0
  %540 = vmatpush.msra.mxu0 0.0
  %541 = vmatpush.msra.mxu0 0.0
  %542 = vmatpush.msra.mxu0 0.0
  %543 = vmatpush.msra.mxu0 0.0
  %544 = vmatpush.msra.mxu0 0.0
  %545 = vmatpush.msra.mxu0 0.0
  %546 = vmatpush.msra.mxu0 0.0
  %547 = vmatpush.msra.mxu0 0.0
  %548 = vmatpush.msra.mxu0 %v467
  %549 = vmatpush.msra.mxu0 %v465
  %550 = vmatmul.f32.gmra.mxu0 %v506
  %v551 = vpop.f32.mrf.mxu0
  %v552 = vadd.f32 %v529, %v551
  %553 = vmatmul.f32.gmra.mxu0 %v509
  %v554 = vpop.f32.mrf.mxu0
  %v555 = vadd.f32 %v532, %v554
  %556 = vdwg.mxu0
  %557 = vmatpush.msra.mxu0 %v464
  %558 = vmatpush.msra.mxu0 %v462
  %559 = vmatpush.msra.mxu0 %v460
  %560 = vmatpush.msra.mxu0 %v458
  %561 = vmatpush.msra.mxu0 %v456
  %562 = vmatpush.msra.mxu0 %v454
  %563 = vmatpush.msra.mxu0 %v452
  %564 = vmatpush.msra.mxu0 %v450
  %565 = vmatpush.msra.mxu0 %v448
  %566 = vmatpush.msra.mxu0 %v446
  %567 = vmatpush.msra.mxu0 %v444
  %568 = vmatpush.msra.mxu0 %v442
  %569 = vmatpush.msra.mxu0 %v440
  %570 = vmatpush.msra.mxu0 %v438
  %571 = vmatpush.msra.mxu0 %v436
  %572 = vmatpush.msra.mxu0 %v434
  %573 = vmatmul.f32.gmra.mxu0 %v310
  %v574 = vpop.f32.mrf.mxu0
  %v575 = vadd.f32 %v317, %v574
  %576 = vmatmul.f32.gmra.mxu0 %v312
  %v577 = vpop.f32.mrf.mxu0
  %v578 = vadd.f32 %v322, %v577
  %579 = vdwg.mxu0
  %580 = vmatpush.msra.mxu0 0.0
  %581 = vmatpush.msra.mxu0 0.0
  %582 = vmatpush.msra.mxu0 0.0
  %583 = vmatpush.msra.mxu0 0.0
  %584 = vmatpush.msra.mxu0 0.0
  %585 = vmatpush.msra.mxu0 0.0
  %586 = vmatpush.msra.mxu0 0.0
  %587 = vmatpush.msra.mxu0 0.0
  %588 = vmatpush.msra.mxu0 0.0
  %589 = vmatpush.msra.mxu0 0.0
  %590 = vmatpush.msra.mxu0 0.0
  %591 = vmatpush.msra.mxu0 0.0
  %592 = vmatpush.msra.mxu0 0.0
  %593 = vmatpush.msra.mxu0 0.0
  %594 = vmatpush.msra.mxu0 %v468
  %595 = vmatpush.msra.mxu0 %v466
  %596 = vmatmul.f32.gmra.mxu0 %v506
  %v597 = vpop.f32.mrf.mxu0
  %v598 = vadd.f32 %v575, %v597
  %599 = vmatmul.f32.gmra.mxu0 %v509
  %v600 = vpop.f32.mrf.mxu0
  %v601 = vadd.f32 %v578, %v600
  %602 = vdwg.mxu0
  %v603 = vmax.f32 %v552, 0.0
  %v604 = vmax.f32 %v598, 0.0
  %v605 = vmax.f32 %v555, 0.0
  %v606 = vmax.f32 %v601, 0.0
  %v607 = vperm.slane %v36, 0
  %v608 = vperm.slane %v37, 0
  %v609 = vmul.f32 %v603, %v607
  %v610 = vmul.f32 %v604, %v608
  %v611 = vmul.f32 %v605, %v607
  %v612 = vmul.f32 %v606, %v608
  %v613 = vld [vmem:[%s4] sm:$0xff]
  %v614 = vld [vmem:[%s4 + $0x8] sm:$0xff]
  %v615 = vld [vmem:[%s4 + $0x10] sm:$0xff]
  %v616 = vld [vmem:[%s4 + $0x18] sm:$0xff]
  %618 = vset.pattern.permute.xlu0 0
  %619 = vperm.xlu0 %618, %v304
  %v620 = vpop.permute.xlu0 %619
  %623 = vset.pattern.permute.xlu0 0
  %624 = vperm.xlu0 %623, %v305
  %v625 = vpop.permute.xlu0 %624
  %628 = vset.pattern.permute.xlu0 0
  %629 = vperm.xlu0 %628, %v306
  %v630 = vpop.permute.xlu0 %629
  %633 = vset.pattern.permute.xlu0 0
  %634 = vperm.xlu0 %633, %v307
  %v635 = vpop.permute.xlu0 %634
  %v638 = vsel %vm91, %v613, 0
  %v641 = vsel %vm91, %v614, 0
  %v644 = vsel %vm91, %v615, 0
  %v647 = vsel %vm91, %v616, 0
  %649 = vmatpush.msra.mxu0 0.0
  %650 = vmatpush.msra.mxu0 0.0
  %651 = vmatpush.msra.mxu0 0.0
  %652 = vmatpush.msra.mxu0 0.0
  %653 = vmatpush.msra.mxu0 0.0
  %654 = vmatpush.msra.mxu0 0.0
  %655 = vmatpush.msra.mxu0 0.0
  %656 = vmatpush.msra.mxu0 0.0
  %657 = vmatpush.msra.mxu0 0.0
  %658 = vmatpush.msra.mxu0 0.0
  %659 = vmatpush.msra.mxu0 0.0
  %660 = vmatpush.msra.mxu0 0.0
  %661 = vmatpush.msra.mxu0 0.0
  %662 = vmatpush.msra.mxu0 0.0
  %663 = vmatpush.msra.mxu0 %v611
  %664 = vmatpush.msra.mxu0 %v609
  %665 = vmatmul.f32.gmra.mxu0 %v638
  %v666 = vpop.f32.mrf.mxu0
  %v667 = vadd.f32 %v620, %v666
  %668 = vmatmul.f32.gmra.mxu0 %v641
  %v669 = vpop.f32.mrf.mxu0
  %v670 = vadd.f32 %v625, %v669
  %671 = vmatmul.f32.gmra.mxu0 %v644
  %v672 = vpop.f32.mrf.mxu0
  %v673 = vadd.f32 %v630, %v672
  %674 = vmatmul.f32.gmra.mxu0 %v647
  %v675 = vpop.f32.mrf.mxu0
  %v676 = vadd.f32 %v635, %v675
  %677 = vdwg.mxu0
  %678 = vmatpush.msra.mxu0 0.0
  %679 = vmatpush.msra.mxu0 0.0
  %680 = vmatpush.msra.mxu0 0.0
  %681 = vmatpush.msra.mxu0 0.0
  %682 = vmatpush.msra.mxu0 0.0
  %683 = vmatpush.msra.mxu0 0.0
  %684 = vmatpush.msra.mxu0 0.0
  %685 = vmatpush.msra.mxu0 0.0
  %686 = vmatpush.msra.mxu0 0.0
  %687 = vmatpush.msra.mxu0 0.0
  %688 = vmatpush.msra.mxu0 0.0
  %689 = vmatpush.msra.mxu0 0.0
  %690 = vmatpush.msra.mxu0 0.0
  %691 = vmatpush.msra.mxu0 0.0
  %692 = vmatpush.msra.mxu0 %v612
  %693 = vmatpush.msra.mxu0 %v610
  %694 = vmatmul.f32.gmra.mxu0 %v638
  %v695 = vpop.f32.mrf.mxu0
  %v696 = vadd.f32 %v620, %v695
  %697 = vmatmul.f32.gmra.mxu0 %v641
  %v698 = vpop.f32.mrf.mxu0
  %v699 = vadd.f32 %v625, %v698
  %700 = vmatmul.f32.gmra.mxu0 %v644
  %v701 = vpop.f32.mrf.mxu0
  %v702 = vadd.f32 %v630, %v701
  %703 = vmatmul.f32.gmra.mxu0 %v647
  %v704 = vpop.f32.mrf.mxu0
  %v705 = vadd.f32 %v635, %v704
  %706 = vdwg.mxu0
  %v707 = vmax.f32 %v667, 0.0
  %v708 = vmax.f32 %v696, 0.0
  %v709 = vmax.f32 %v670, 0.0
  %v710 = vmax.f32 %v699, 0.0
  %v711 = vmax.f32 %v673, 0.0
  %v712 = vmax.f32 %v702, 0.0
  %v713 = vmax.f32 %v676, 0.0
  %v714 = vmax.f32 %v705, 0.0
  %v715 = vmul.f32 %v707, %v607
  %v716 = vmul.f32 %v708, %v608
  %v717 = vmul.f32 %v709, %v607
  %v718 = vmul.f32 %v710, %v608
  %v719 = vmul.f32 %v711, %v607
  %v720 = vmul.f32 %v712, %v608
  %v721 = vmul.f32 %v713, %v607
  %v722 = vmul.f32 %v714, %v608
  %v723 = vld [vmem:[%s5] sm:$0xff]
  %v724 = vld [vmem:[%s5 + $0x8] sm:$0xff]
  %v725 = vld [vmem:[%s5 + $0x10] sm:$0xff]
  %v726 = vld [vmem:[%s5 + $0x18] sm:$0xff]
  %v727 = vld [vmem:[%s5 + $0x20] sm:$0xff]
  %v728 = vld [vmem:[%s5 + $0x28] sm:$0xff]
  %737 = vrot.lane.b32.xlu0 %v715, 16
  %v738 = vpop.permute.xlu0 %737
  %739 = vrot.lane.b32.xlu0 %v716, 16
  %v740 = vpop.permute.xlu0 %739
  %741 = vrot.lane.b32.xlu0 %v717, 16
  %v742 = vpop.permute.xlu0 %741
  %743 = vrot.lane.b32.xlu0 %v718, 16
  %v744 = vpop.permute.xlu0 %743
  %745 = vrot.lane.b32.xlu0 %v719, 16
  %v746 = vpop.permute.xlu0 %745
  %747 = vrot.lane.b32.xlu0 %v720, 16
  %v748 = vpop.permute.xlu0 %747
  %749 = vrot.lane.b32.xlu0 %v721, 16
  %v750 = vpop.permute.xlu0 %749
  %751 = vrot.lane.b32.xlu0 %v722, 16
  %v752 = vpop.permute.xlu0 %751
  %v753 = vsel %vm91, %v738, %v740
  %v754 = vsel %vm91, %v742, %v744
  %v755 = vsel %vm91, %v746, %v748
  %v756 = vsel %vm91, %v750, %v752
  %v765 = vsel %vm91, 0.0, %v738
  %v766 = vsel %vm91, 0.0, %v742
  %v767 = vsel %vm91, 0.0, %v746
  %v768 = vsel %vm91, 0.0, %v750
  %v769 = vsel %vm91, %v740, 0.0
  %v770 = vsel %vm91, %v744, 0.0
  %v771 = vsel %vm91, %v748, 0.0
  %v772 = vsel %vm91, %v752, 0.0
  %781 = vrot.lane.b32.xlu0 %v765, 127
  %v782 = vpop.permute.xlu0 %781
  %783 = vrot.lane.b32.xlu0 %v753, 127
  %v784 = vpop.permute.xlu0 %783
  %785 = vrot.lane.b32.xlu0 %v769, 127
  %v786 = vpop.permute.xlu0 %785
  %787 = vrot.lane.b32.xlu0 %v766, 127
  %v788 = vpop.permute.xlu0 %787
  %789 = vrot.lane.b32.xlu0 %v754, 127
  %v790 = vpop.permute.xlu0 %789
  %791 = vrot.lane.b32.xlu0 %v770, 127
  %v792 = vpop.permute.xlu0 %791
  %793 = vrot.lane.b32.xlu0 %v767, 127
  %v794 = vpop.permute.xlu0 %793
  %795 = vrot.lane.b32.xlu0 %v755, 127
  %v796 = vpop.permute.xlu0 %795
  %797 = vrot.lane.b32.xlu0 %v771, 127
  %v798 = vpop.permute.xlu0 %797
  %799 = vrot.lane.b32.xlu0 %v768, 127
  %v800 = vpop.permute.xlu0 %799
  %801 = vrot.lane.b32.xlu0 %v756, 127
  %v802 = vpop.permute.xlu0 %801
  %803 = vrot.lane.b32.xlu0 %v772, 127
  %v804 = vpop.permute.xlu0 %803
  %v805 = vsel %vm105, %v782, %v784
  %v806 = vsel %vm105, %v784, %v786
  %v807 = vsel %vm105, %v788, %v790
  %v808 = vsel %vm105, %v790, %v792
  %v809 = vsel %vm105, %v794, %v796
  %v810 = vsel %vm105, %v796, %v798
  %v811 = vsel %vm105, %v800, %v802
  %v812 = vsel %vm105, %v802, %v804
  %813 = vrot.lane.b32.xlu0 %v765, 126
  %v814 = vpop.permute.xlu0 %813
  %815 = vrot.lane.b32.xlu0 %v753, 126
  %v816 = vpop.permute.xlu0 %815
  %817 = vrot.lane.b32.xlu0 %v769, 126
  %v818 = vpop.permute.xlu0 %817
  %819 = vrot.lane.b32.xlu0 %v766, 126
  %v820 = vpop.permute.xlu0 %819
  %821 = vrot.lane.b32.xlu0 %v754, 126
  %v822 = vpop.permute.xlu0 %821
  %823 = vrot.lane.b32.xlu0 %v770, 126
  %v824 = vpop.permute.xlu0 %823
  %825 = vrot.lane.b32.xlu0 %v767, 126
  %v826 = vpop.permute.xlu0 %825
  %827 = vrot.lane.b32.xlu0 %v755, 126
  %v828 = vpop.permute.xlu0 %827
  %829 = vrot.lane.b32.xlu0 %v771, 126
  %v830 = vpop.permute.xlu0 %829
  %831 = vrot.lane.b32.xlu0 %v768, 126
  %v832 = vpop.permute.xlu0 %831
  %833 = vrot.lane.b32.xlu0 %v756, 126
  %v834 = vpop.permute.xlu0 %833
  %835 = vrot.lane.b32.xlu0 %v772, 126
  %v836 = vpop.permute.xlu0 %835
  %v837 = vsel %vm114, %v814, %v816
  %v838 = vsel %vm114, %v816, %v818
  %v839 = vsel %vm114, %v820, %v822
  %v840 = vsel %vm114, %v822, %v824
  %v841 = vsel %vm114, %v826, %v828
  %v842 = vsel %vm114, %v828, %v830
  %v843 = vsel %vm114, %v832, %v834
  %v844 = vsel %vm114, %v834, %v836
  %845 = vrot.lane.b32.xlu0 %v765, 118
  %v846 = vpop.permute.xlu0 %845
  %847 = vrot.lane.b32.xlu0 %v753, 118
  %v848 = vpop.permute.xlu0 %847
  %849 = vrot.lane.b32.xlu0 %v769, 118
  %v850 = vpop.permute.xlu0 %849
  %851 = vrot.lane.b32.xlu0 %v766, 118
  %v852 = vpop.permute.xlu0 %851
  %853 = vrot.lane.b32.xlu0 %v754, 118
  %v854 = vpop.permute.xlu0 %853
  %855 = vrot.lane.b32.xlu0 %v770, 118
  %v856 = vpop.permute.xlu0 %855
  %857 = vrot.lane.b32.xlu0 %v767, 118
  %v858 = vpop.permute.xlu0 %857
  %859 = vrot.lane.b32.xlu0 %v755, 118
  %v860 = vpop.permute.xlu0 %859
  %861 = vrot.lane.b32.xlu0 %v771, 118
  %v862 = vpop.permute.xlu0 %861
  %863 = vrot.lane.b32.xlu0 %v768, 118
  %v864 = vpop.permute.xlu0 %863
  %865 = vrot.lane.b32.xlu0 %v756, 118
  %v866 = vpop.permute.xlu0 %865
  %867 = vrot.lane.b32.xlu0 %v772, 118
  %v868 = vpop.permute.xlu0 %867
  %v869 = vsel %vm123, %v846, %v848
  %v870 = vsel %vm123, %v848, %v850
  %v871 = vsel %vm123, %v852, %v854
  %v872 = vsel %vm123, %v854, %v856
  %v873 = vsel %vm123, %v858, %v860
  %v874 = vsel %vm123, %v860, %v862
  %v875 = vsel %vm123, %v864, %v866
  %v876 = vsel %vm123, %v866, %v868
  %877 = vrot.lane.b32.xlu0 %v765, 117
  %v878 = vpop.permute.xlu0 %877
  %879 = vrot.lane.b32.xlu0 %v753, 117
  %v880 = vpop.permute.xlu0 %879
  %881 = vrot.lane.b32.xlu0 %v769, 117
  %v882 = vpop.permute.xlu0 %881
  %883 = vrot.lane.b32.xlu0 %v766, 117
  %v884 = vpop.permute.xlu0 %883
  %885 = vrot.lane.b32.xlu0 %v754, 117
  %v886 = vpop.permute.xlu0 %885
  %887 = vrot.lane.b32.xlu0 %v770, 117
  %v888 = vpop.permute.xlu0 %887
  %889 = vrot.lane.b32.xlu0 %v767, 117
  %v890 = vpop.permute.xlu0 %889
  %891 = vrot.lane.b32.xlu0 %v755, 117
  %v892 = vpop.permute.xlu0 %891
  %893 = vrot.lane.b32.xlu0 %v771, 117
  %v894 = vpop.permute.xlu0 %893
  %895 = vrot.lane.b32.xlu0 %v768, 117
  %v896 = vpop.permute.xlu0 %895
  %897 = vrot.lane.b32.xlu0 %v756, 117
  %v898 = vpop.permute.xlu0 %897
  %899 = vrot.lane.b32.xlu0 %v772, 117
  %v900 = vpop.permute.xlu0 %899
  %v901 = vsel %vm132, %v878, %v880
  %v902 = vsel %vm132, %v880, %v882
  %v903 = vsel %vm132, %v884, %v886
  %v904 = vsel %vm132, %v886, %v888
  %v905 = vsel %vm132, %v890, %v892
  %v906 = vsel %vm132, %v892, %v894
  %v907 = vsel %vm132, %v896, %v898
  %v908 = vsel %vm132, %v898, %v900
  %909 = vrot.lane.b32.xlu0 %v765, 116
  %v910 = vpop.permute.xlu0 %909
  %911 = vrot.lane.b32.xlu0 %v753, 116
  %v912 = vpop.permute.xlu0 %911
  %913 = vrot.lane.b32.xlu0 %v769, 116
  %v914 = vpop.permute.xlu0 %913
  %915 = vrot.lane.b32.xlu0 %v766, 116
  %v916 = vpop.permute.xlu0 %915
  %917 = vrot.lane.b32.xlu0 %v754, 116
  %v918 = vpop.permute.xlu0 %917
  %919 = vrot.lane.b32.xlu0 %v770, 116
  %v920 = vpop.permute.xlu0 %919
  %921 = vrot.lane.b32.xlu0 %v767, 116
  %v922 = vpop.permute.xlu0 %921
  %923 = vrot.lane.b32.xlu0 %v755, 116
  %v924 = vpop.permute.xlu0 %923
  %925 = vrot.lane.b32.xlu0 %v771, 116
  %v926 = vpop.permute.xlu0 %925
  %927 = vrot.lane.b32.xlu0 %v768, 116
  %v928 = vpop.permute.xlu0 %927
  %929 = vrot.lane.b32.xlu0 %v756, 116
  %v930 = vpop.permute.xlu0 %929
  %931 = vrot.lane.b32.xlu0 %v772, 116
  %v932 = vpop.permute.xlu0 %931
  %v933 = vsel %vm141, %v910, %v912
  %v934 = vsel %vm141, %v912, %v914
  %v935 = vsel %vm141, %v916, %v918
  %v936 = vsel %vm141, %v918, %v920
  %v937 = vsel %vm141, %v922, %v924
  %v938 = vsel %vm141, %v924, %v926
  %v939 = vsel %vm141, %v928, %v930
  %v940 = vsel %vm141, %v930, %v932
  %941 = vrot.lane.b32.xlu0 %v765, 108
  %v942 = vpop.permute.xlu0 %941
  %943 = vrot.lane.b32.xlu0 %v753, 108
  %v944 = vpop.permute.xlu0 %943
  %945 = vrot.lane.b32.xlu0 %v769, 108
  %v946 = vpop.permute.xlu0 %945
  %947 = vrot.lane.b32.xlu0 %v766, 108
  %v948 = vpop.permute.xlu0 %947
  %949 = vrot.lane.b32.xlu0 %v754, 108
  %v950 = vpop.permute.xlu0 %949
  %951 = vrot.lane.b32.xlu0 %v770, 108
  %v952 = vpop.permute.xlu0 %951
  %953 = vrot.lane.b32.xlu0 %v767, 108
  %v954 = vpop.permute.xlu0 %953
  %955 = vrot.lane.b32.xlu0 %v755, 108
  %v956 = vpop.permute.xlu0 %955
  %957 = vrot.lane.b32.xlu0 %v771, 108
  %v958 = vpop.permute.xlu0 %957
  %959 = vrot.lane.b32.xlu0 %v768, 108
  %v960 = vpop.permute.xlu0 %959
  %961 = vrot.lane.b32.xlu0 %v756, 108
  %v962 = vpop.permute.xlu0 %961
  %963 = vrot.lane.b32.xlu0 %v772, 108
  %v964 = vpop.permute.xlu0 %963
  %v965 = vsel %vm150, %v942, %v944
  %v966 = vsel %vm150, %v944, %v946
  %v967 = vsel %vm150, %v948, %v950
  %v968 = vsel %vm150, %v950, %v952
  %v969 = vsel %vm150, %v954, %v956
  %v970 = vsel %vm150, %v956, %v958
  %v971 = vsel %vm150, %v960, %v962
  %v972 = vsel %vm150, %v962, %v964
  %973 = vrot.lane.b32.xlu0 %v765, 107
  %v974 = vpop.permute.xlu0 %973
  %975 = vrot.lane.b32.xlu0 %v753, 107
  %v976 = vpop.permute.xlu0 %975
  %977 = vrot.lane.b32.xlu0 %v769, 107
  %v978 = vpop.permute.xlu0 %977
  %979 = vrot.lane.b32.xlu0 %v766, 107
  %v980 = vpop.permute.xlu0 %979
  %981 = vrot.lane.b32.xlu0 %v754, 107
  %v982 = vpop.permute.xlu0 %981
  %983 = vrot.lane.b32.xlu0 %v770, 107
  %v984 = vpop.permute.xlu0 %983
  %985 = vrot.lane.b32.xlu0 %v767, 107
  %v986 = vpop.permute.xlu0 %985
  %987 = vrot.lane.b32.xlu0 %v755, 107
  %v988 = vpop.permute.xlu0 %987
  %989 = vrot.lane.b32.xlu0 %v771, 107
  %v990 = vpop.permute.xlu0 %989
  %991 = vrot.lane.b32.xlu0 %v768, 107
  %v992 = vpop.permute.xlu0 %991
  %993 = vrot.lane.b32.xlu0 %v756, 107
  %v994 = vpop.permute.xlu0 %993
  %995 = vrot.lane.b32.xlu0 %v772, 107
  %v996 = vpop.permute.xlu0 %995
  %v997 = vsel %vm159, %v974, %v976
  %v998 = vsel %vm159, %v976, %v978
  %v999 = vsel %vm159, %v980, %v982
  %v1000 = vsel %vm159, %v982, %v984
  %v1001 = vsel %vm159, %v986, %v988
  %v1002 = vsel %vm159, %v988, %v990
  %v1003 = vsel %vm159, %v992, %v994
  %v1004 = vsel %vm159, %v994, %v996
  %1005 = vrot.lane.b32.xlu0 %v765, 106
  %v1006 = vpop.permute.xlu0 %1005
  %1007 = vrot.lane.b32.xlu0 %v753, 106
  %v1008 = vpop.permute.xlu0 %1007
  %1009 = vrot.lane.b32.xlu0 %v769, 106
  %v1010 = vpop.permute.xlu0 %1009
  %1011 = vrot.lane.b32.xlu0 %v766, 106
  %v1012 = vpop.permute.xlu0 %1011
  %1013 = vrot.lane.b32.xlu0 %v754, 106
  %v1014 = vpop.permute.xlu0 %1013
  %1015 = vrot.lane.b32.xlu0 %v770, 106
  %v1016 = vpop.permute.xlu0 %1015
  %1017 = vrot.lane.b32.xlu0 %v767, 106
  %v1018 = vpop.permute.xlu0 %1017
  %1019 = vrot.lane.b32.xlu0 %v755, 106
  %v1020 = vpop.permute.xlu0 %1019
  %1021 = vrot.lane.b32.xlu0 %v771, 106
  %v1022 = vpop.permute.xlu0 %1021
  %1023 = vrot.lane.b32.xlu0 %v768, 106
  %v1024 = vpop.permute.xlu0 %1023
  %1025 = vrot.lane.b32.xlu0 %v756, 106
  %v1026 = vpop.permute.xlu0 %1025
  %1027 = vrot.lane.b32.xlu0 %v772, 106
  %v1028 = vpop.permute.xlu0 %1027
  %v1029 = vsel %vm168, %v1006, %v1008
  %v1030 = vsel %vm168, %v1008, %v1010
  %v1031 = vsel %vm168, %v1012, %v1014
  %v1032 = vsel %vm168, %v1014, %v1016
  %v1033 = vsel %vm168, %v1018, %v1020
  %v1034 = vsel %vm168, %v1020, %v1022
  %v1035 = vsel %vm168, %v1024, %v1026
  %v1036 = vsel %vm168, %v1026, %v1028
  %1038 = vset.pattern.permute.xlu0 0
  %1039 = vperm.xlu0 %1038, %v308
  %v1040 = vpop.permute.xlu0 %1039
  %1043 = vset.pattern.permute.xlu0 0
  %1044 = vperm.xlu0 %1043, %v309
  %v1045 = vpop.permute.xlu0 %1044
  %1047 = vrot.lane.b32.xlu0 %v765, 123
  %v1048 = vpop.permute.xlu0 %1047
  %1049 = vrot.lane.b32.xlu0 %v753, 123
  %v1050 = vpop.permute.xlu0 %1049
  %1051 = vrot.lane.b32.xlu0 %v769, 123
  %v1052 = vpop.permute.xlu0 %1051
  %1053 = vrot.lane.b32.xlu0 %v766, 123
  %v1054 = vpop.permute.xlu0 %1053
  %1055 = vrot.lane.b32.xlu0 %v754, 123
  %v1056 = vpop.permute.xlu0 %1055
  %1057 = vrot.lane.b32.xlu0 %v770, 123
  %v1058 = vpop.permute.xlu0 %1057
  %1059 = vrot.lane.b32.xlu0 %v767, 123
  %v1060 = vpop.permute.xlu0 %1059
  %1061 = vrot.lane.b32.xlu0 %v755, 123
  %v1062 = vpop.permute.xlu0 %1061
  %1063 = vrot.lane.b32.xlu0 %v771, 123
  %v1064 = vpop.permute.xlu0 %1063
  %1065 = vrot.lane.b32.xlu0 %v768, 123
  %v1066 = vpop.permute.xlu0 %1065
  %1067 = vrot.lane.b32.xlu0 %v756, 123
  %v1068 = vpop.permute.xlu0 %1067
  %1069 = vrot.lane.b32.xlu0 %v772, 123
  %v1070 = vpop.permute.xlu0 %1069
  %1071 = vrot.lane.b32.xlu0 %v805, 123
  %v1072 = vpop.permute.xlu0 %1071
  %1073 = vrot.lane.b32.xlu0 %v806, 123
  %v1074 = vpop.permute.xlu0 %1073
  %1075 = vrot.lane.b32.xlu0 %v786, 123
  %v1076 = vpop.permute.xlu0 %1075
  %1077 = vrot.lane.b32.xlu0 %v807, 123
  %v1078 = vpop.permute.xlu0 %1077
  %1079 = vrot.lane.b32.xlu0 %v808, 123
  %v1080 = vpop.permute.xlu0 %1079
  %1081 = vrot.lane.b32.xlu0 %v792, 123
  %v1082 = vpop.permute.xlu0 %1081
  %1083 = vrot.lane.b32.xlu0 %v809, 123
  %v1084 = vpop.permute.xlu0 %1083
  %1085 = vrot.lane.b32.xlu0 %v810, 123
  %v1086 = vpop.permute.xlu0 %1085
  %1087 = vrot.lane.b32.xlu0 %v798, 123
  %v1088 = vpop.permute.xlu0 %1087
  %1089 = vrot.lane.b32.xlu0 %v811, 123
  %v1090 = vpop.permute.xlu0 %1089
  %1091 = vrot.lane.b32.xlu0 %v812, 123
  %v1092 = vpop.permute.xlu0 %1091
  %1093 = vrot.lane.b32.xlu0 %v804, 123
  %v1094 = vpop.permute.xlu0 %1093
  %1095 = vrot.lane.b32.xlu0 %v837, 123
  %v1096 = vpop.permute.xlu0 %1095
  %1097 = vrot.lane.b32.xlu0 %v838, 123
  %v1098 = vpop.permute.xlu0 %1097
  %1099 = vrot.lane.b32.xlu0 %v818, 123
  %v1100 = vpop.permute.xlu0 %1099
  %1101 = vrot.lane.b32.xlu0 %v839, 123
  %v1102 = vpop.permute.xlu0 %1101
  %1103 = vrot.lane.b32.xlu0 %v840, 123
  %v1104 = vpop.permute.xlu0 %1103
  %1105 = vrot.lane.b32.xlu0 %v824, 123
  %v1106 = vpop.permute.xlu0 %1105
  %1107 = vrot.lane.b32.xlu0 %v841, 123
  %v1108 = vpop.permute.xlu0 %1107
  %1109 = vrot.lane.b32.xlu0 %v842, 123
  %v1110 = vpop.permute.xlu0 %1109
  %1111 = vrot.lane.b32.xlu0 %v830, 123
  %v1112 = vpop.permute.xlu0 %1111
  %1113 = vrot.lane.b32.xlu0 %v843, 123
  %v1114 = vpop.permute.xlu0 %1113
  %1115 = vrot.lane.b32.xlu0 %v844, 123
  %v1116 = vpop.permute.xlu0 %1115
  %1117 = vrot.lane.b32.xlu0 %v836, 123
  %v1118 = vpop.permute.xlu0 %1117
  %1119 = vrot.lane.b32.xlu0 %v869, 123
  %v1120 = vpop.permute.xlu0 %1119
  %1121 = vrot.lane.b32.xlu0 %v870, 123
  %v1122 = vpop.permute.xlu0 %1121
  %1123 = vrot.lane.b32.xlu0 %v850, 123
  %v1124 = vpop.permute.xlu0 %1123
  %1125 = vrot.lane.b32.xlu0 %v871, 123
  %v1126 = vpop.permute.xlu0 %1125
  %1127 = vrot.lane.b32.xlu0 %v872, 123
  %v1128 = vpop.permute.xlu0 %1127
  %1129 = vrot.lane.b32.xlu0 %v856, 123
  %v1130 = vpop.permute.xlu0 %1129
  %1131 = vrot.lane.b32.xlu0 %v873, 123
  %v1132 = vpop.permute.xlu0 %1131
  %1133 = vrot.lane.b32.xlu0 %v874, 123
  %v1134 = vpop.permute.xlu0 %1133
  %1135 = vrot.lane.b32.xlu0 %v862, 123
  %v1136 = vpop.permute.xlu0 %1135
  %1137 = vrot.lane.b32.xlu0 %v875, 123
  %v1138 = vpop.permute.xlu0 %1137
  %1139 = vrot.lane.b32.xlu0 %v876, 123
  %v1140 = vpop.permute.xlu0 %1139
  %1141 = vrot.lane.b32.xlu0 %v868, 123
  %v1142 = vpop.permute.xlu0 %1141
  %1143 = vrot.lane.b32.xlu0 %v901, 123
  %v1144 = vpop.permute.xlu0 %1143
  %1145 = vrot.lane.b32.xlu0 %v902, 123
  %v1146 = vpop.permute.xlu0 %1145
  %1147 = vrot.lane.b32.xlu0 %v882, 123
  %v1148 = vpop.permute.xlu0 %1147
  %1149 = vrot.lane.b32.xlu0 %v903, 123
  %v1150 = vpop.permute.xlu0 %1149
  %1151 = vrot.lane.b32.xlu0 %v904, 123
  %v1152 = vpop.permute.xlu0 %1151
  %1153 = vrot.lane.b32.xlu0 %v888, 123
  %v1154 = vpop.permute.xlu0 %1153
  %1155 = vrot.lane.b32.xlu0 %v905, 123
  %v1156 = vpop.permute.xlu0 %1155
  %1157 = vrot.lane.b32.xlu0 %v906, 123
  %v1158 = vpop.permute.xlu0 %1157
  %1159 = vrot.lane.b32.xlu0 %v894, 123
  %v1160 = vpop.permute.xlu0 %1159
  %1161 = vrot.lane.b32.xlu0 %v907, 123
  %v1162 = vpop.permute.xlu0 %1161
  %1163 = vrot.lane.b32.xlu0 %v908, 123
  %v1164 = vpop.permute.xlu0 %1163
  %1165 = vrot.lane.b32.xlu0 %v900, 123
  %v1166 = vpop.permute.xlu0 %1165
  %1167 = vrot.lane.b32.xlu0 %v933, 123
  %v1168 = vpop.permute.xlu0 %1167
  %1169 = vrot.lane.b32.xlu0 %v934, 123
  %v1170 = vpop.permute.xlu0 %1169
  %1171 = vrot.lane.b32.xlu0 %v914, 123
  %v1172 = vpop.permute.xlu0 %1171
  %1173 = vrot.lane.b32.xlu0 %v935, 123
  %v1174 = vpop.permute.xlu0 %1173
  %1175 = vrot.lane.b32.xlu0 %v936, 123
  %v1176 = vpop.permute.xlu0 %1175
  %1177 = vrot.lane.b32.xlu0 %v920, 123
  %v1178 = vpop.permute.xlu0 %1177
  %1179 = vrot.lane.b32.xlu0 %v937, 123
  %v1180 = vpop.permute.xlu0 %1179
  %1181 = vrot.lane.b32.xlu0 %v938, 123
  %v1182 = vpop.permute.xlu0 %1181
  %1183 = vrot.lane.b32.xlu0 %v926, 123
  %v1184 = vpop.permute.xlu0 %1183
  %1185 = vrot.lane.b32.xlu0 %v939, 123
  %v1186 = vpop.permute.xlu0 %1185
  %1187 = vrot.lane.b32.xlu0 %v940, 123
  %v1188 = vpop.permute.xlu0 %1187
  %1189 = vrot.lane.b32.xlu0 %v932, 123
  %v1190 = vpop.permute.xlu0 %1189
  %1191 = vrot.lane.b32.xlu0 %v965, 123
  %v1192 = vpop.permute.xlu0 %1191
  %1193 = vrot.lane.b32.xlu0 %v966, 123
  %v1194 = vpop.permute.xlu0 %1193
  %1195 = vrot.lane.b32.xlu0 %v946, 123
  %v1196 = vpop.permute.xlu0 %1195
  %1197 = vrot.lane.b32.xlu0 %v967, 123
  %v1198 = vpop.permute.xlu0 %1197
  %1199 = vrot.lane.b32.xlu0 %v968, 123
  %v1200 = vpop.permute.xlu0 %1199
  %1201 = vrot.lane.b32.xlu0 %v952, 123
  %v1202 = vpop.permute.xlu0 %1201
  %1203 = vrot.lane.b32.xlu0 %v969, 123
  %v1204 = vpop.permute.xlu0 %1203
  %1205 = vrot.lane.b32.xlu0 %v970, 123
  %v1206 = vpop.permute.xlu0 %1205
  %1207 = vrot.lane.b32.xlu0 %v958, 123
  %v1208 = vpop.permute.xlu0 %1207
  %1209 = vrot.lane.b32.xlu0 %v971, 123
  %v1210 = vpop.permute.xlu0 %1209
  %1211 = vrot.lane.b32.xlu0 %v972, 123
  %v1212 = vpop.permute.xlu0 %1211
  %1213 = vrot.lane.b32.xlu0 %v964, 123
  %v1214 = vpop.permute.xlu0 %1213
  %1215 = vrot.lane.b32.xlu0 %v997, 123
  %v1216 = vpop.permute.xlu0 %1215
  %1217 = vrot.lane.b32.xlu0 %v998, 123
  %v1218 = vpop.permute.xlu0 %1217
  %1219 = vrot.lane.b32.xlu0 %v978, 123
  %v1220 = vpop.permute.xlu0 %1219
  %1221 = vrot.lane.b32.xlu0 %v999, 123
  %v1222 = vpop.permute.xlu0 %1221
  %1223 = vrot.lane.b32.xlu0 %v1000, 123
  %v1224 = vpop.permute.xlu0 %1223
  %1225 = vrot.lane.b32.xlu0 %v984, 123
  %v1226 = vpop.permute.xlu0 %1225
  %1227 = vrot.lane.b32.xlu0 %v1001, 123
  %v1228 = vpop.permute.xlu0 %1227
  %1229 = vrot.lane.b32.xlu0 %v1002, 123
  %v1230 = vpop.permute.xlu0 %1229
  %1231 = vrot.lane.b32.xlu0 %v990, 123
  %v1232 = vpop.permute.xlu0 %1231
  %1233 = vrot.lane.b32.xlu0 %v1003, 123
  %v1234 = vpop.permute.xlu0 %1233
  %1235 = vrot.lane.b32.xlu0 %v1004, 123
  %v1236 = vpop.permute.xlu0 %1235
  %1237 = vrot.lane.b32.xlu0 %v996, 123
  %v1238 = vpop.permute.xlu0 %1237
  %1239 = vrot.lane.b32.xlu0 %v1029, 123
  %v1240 = vpop.permute.xlu0 %1239
  %1241 = vrot.lane.b32.xlu0 %v1030, 123
  %v1242 = vpop.permute.xlu0 %1241
  %1243 = vrot.lane.b32.xlu0 %v1010, 123
  %v1244 = vpop.permute.xlu0 %1243
  %1245 = vrot.lane.b32.xlu0 %v1031, 123
  %v1246 = vpop.permute.xlu0 %1245
  %1247 = vrot.lane.b32.xlu0 %v1032, 123
  %v1248 = vpop.permute.xlu0 %1247
  %1249 = vrot.lane.b32.xlu0 %v1016, 123
  %v1250 = vpop.permute.xlu0 %1249
  %1251 = vrot.lane.b32.xlu0 %v1033, 123
  %v1252 = vpop.permute.xlu0 %1251
  %1253 = vrot.lane.b32.xlu0 %v1034, 123
  %v1254 = vpop.permute.xlu0 %1253
  %1255 = vrot.lane.b32.xlu0 %v1022, 123
  %v1256 = vpop.permute.xlu0 %1255
  %1257 = vrot.lane.b32.xlu0 %v1035, 123
  %v1258 = vpop.permute.xlu0 %1257
  %1259 = vrot.lane.b32.xlu0 %v1036, 123
  %v1260 = vpop.permute.xlu0 %1259
  %1261 = vrot.lane.b32.xlu0 %v1028, 123
  %v1262 = vpop.permute.xlu0 %1261
  %v1263 = vsel %vm432, %v1048, %v1050
  %v1264 = vsel %vm432, %v1050, %v1052
  %v1265 = vsel %vm432, %v1054, %v1056
  %v1266 = vsel %vm432, %v1056, %v1058
  %v1267 = vsel %vm432, %v1060, %v1062
  %v1268 = vsel %vm432, %v1062, %v1064
  %v1269 = vsel %vm432, %v1066, %v1068
  %v1270 = vsel %vm432, %v1068, %v1070
  %v1271 = vsel %vm432, %v1072, %v1074
  %v1272 = vsel %vm432, %v1074, %v1076
  %v1273 = vsel %vm432, %v1078, %v1080
  %v1274 = vsel %vm432, %v1080, %v1082
  %v1275 = vsel %vm432, %v1084, %v1086
  %v1276 = vsel %vm432, %v1086, %v1088
  %v1277 = vsel %vm432, %v1090, %v1092
  %v1278 = vsel %vm432, %v1092, %v1094
  %v1279 = vsel %vm432, %v1096, %v1098
  %v1280 = vsel %vm432, %v1098, %v1100
  %v1281 = vsel %vm432, %v1102, %v1104
  %v1282 = vsel %vm432, %v1104, %v1106
  %v1283 = vsel %vm432, %v1108, %v1110
  %v1284 = vsel %vm432, %v1110, %v1112
  %v1285 = vsel %vm432, %v1114, %v1116
  %v1286 = vsel %vm432, %v1116, %v1118
  %v1287 = vsel %vm432, %v1120, %v1122
  %v1288 = vsel %vm432, %v1122, %v1124
  %v1289 = vsel %vm432, %v1126, %v1128
  %v1290 = vsel %vm432, %v1128, %v1130
  %v1291 = vsel %vm432, %v1132, %v1134
  %v1292 = vsel %vm432, %v1134, %v1136
  %v1293 = vsel %vm432, %v1138, %v1140
  %v1294 = vsel %vm432, %v1140, %v1142
  %v1295 = vsel %vm432, %v1144, %v1146
  %v1296 = vsel %vm432, %v1146, %v1148
  %v1297 = vsel %vm432, %v1150, %v1152
  %v1298 = vsel %vm432, %v1152, %v1154
  %v1299 = vsel %vm432, %v1156, %v1158
  %v1300 = vsel %vm432, %v1158, %v1160
  %v1301 = vsel %vm432, %v1162, %v1164
  %v1302 = vsel %vm432, %v1164, %v1166
  %v1303 = vsel %vm432, %v1168, %v1170
  %v1304 = vsel %vm432, %v1170, %v1172
  %v1305 = vsel %vm432, %v1174, %v1176
  %v1306 = vsel %vm432, %v1176, %v1178
  %v1307 = vsel %vm432, %v1180, %v1182
  %v1308 = vsel %vm432, %v1182, %v1184
  %v1309 = vsel %vm432, %v1186, %v1188
  %v1310 = vsel %vm432, %v1188, %v1190
  %v1311 = vsel %vm432, %v1192, %v1194
  %v1312 = vsel %vm432, %v1194, %v1196
  %v1313 = vsel %vm432, %v1198, %v1200
  %v1314 = vsel %vm432, %v1200, %v1202
  %v1315 = vsel %vm432, %v1204, %v1206
  %v1316 = vsel %vm432, %v1206, %v1208
  %v1317 = vsel %vm432, %v1210, %v1212
  %v1318 = vsel %vm432, %v1212, %v1214
  %v1319 = vsel %vm432, %v1216, %v1218
  %v1320 = vsel %vm432, %v1218, %v1220
  %v1321 = vsel %vm432, %v1222, %v1224
  %v1322 = vsel %vm432, %v1224, %v1226
  %v1323 = vsel %vm432, %v1228, %v1230
  %v1324 = vsel %vm432, %v1230, %v1232
  %v1325 = vsel %vm432, %v1234, %v1236
  %v1326 = vsel %vm432, %v1236, %v1238
  %v1327 = vsel %vm432, %v1240, %v1242
  %v1328 = vsel %vm432, %v1242, %v1244
  %v1329 = vsel %vm432, %v1246, %v1248
  %v1330 = vsel %vm432, %v1248, %v1250
  %v1331 = vsel %vm432, %v1252, %v1254
  %v1332 = vsel %vm432, %v1254, %v1256
  %v1333 = vsel %vm432, %v1258, %v1260
  %v1334 = vsel %vm432, %v1260, %v1262
  %v1408 = vsel %vm39, %v725, 0
  %v1411 = vsel %vm39, %v728, 0
  %1413 = vmatpush.msra.mxu0 %v1293
  %1414 = vmatpush.msra.mxu0 %v1291
  %1415 = vmatpush.msra.mxu0 %v1289
  %1416 = vmatpush.msra.mxu0 %v1287
  %1417 = vmatpush.msra.mxu0 %v1285
  %1418 = vmatpush.msra.mxu0 %v1283
  %1419 = vmatpush.msra.mxu0 %v1281
  %1420 = vmatpush.msra.mxu0 %v1279
  %1421 = vmatpush.msra.mxu0 %v1277
  %1422 = vmatpush.msra.mxu0 %v1275
  %1423 = vmatpush.msra.mxu0 %v1273
  %1424 = vmatpush.msra.mxu0 %v1271
  %1425 = vmatpush.msra.mxu0 %v1269
  %1426 = vmatpush.msra.mxu0 %v1267
  %1427 = vmatpush.msra.mxu0 %v1265
  %1428 = vmatpush.msra.mxu0 %v1263
  %1429 = vmatmul.f32.gmra.mxu0 %v723
  %v1430 = vpop.f32.mrf.mxu0
  %v1431 = vadd.f32 %v1040, %v1430
  %1432 = vmatmul.f32.gmra.mxu0 %v726
  %v1433 = vpop.f32.mrf.mxu0
  %v1434 = vadd.f32 %v1045, %v1433
  %1435 = vdwg.mxu0
  %1436 = vmatpush.msra.mxu0 %v1325
  %1437 = vmatpush.msra.mxu0 %v1323
  %1438 = vmatpush.msra.mxu0 %v1321
  %1439 = vmatpush.msra.mxu0 %v1319
  %1440 = vmatpush.msra.mxu0 %v1317
  %1441 = vmatpush.msra.mxu0 %v1315
  %1442 = vmatpush.msra.mxu0 %v1313
  %1443 = vmatpush.msra.mxu0 %v1311
  %1444 = vmatpush.msra.mxu0 %v1309
  %1445 = vmatpush.msra.mxu0 %v1307
  %1446 = vmatpush.msra.mxu0 %v1305
  %1447 = vmatpush.msra.mxu0 %v1303
  %1448 = vmatpush.msra.mxu0 %v1301
  %1449 = vmatpush.msra.mxu0 %v1299
  %1450 = vmatpush.msra.mxu0 %v1297
  %1451 = vmatpush.msra.mxu0 %v1295
  %1452 = vmatmul.f32.gmra.mxu0 %v724
  %v1453 = vpop.f32.mrf.mxu0
  %v1454 = vadd.f32 %v1431, %v1453
  %1455 = vmatmul.f32.gmra.mxu0 %v727
  %v1456 = vpop.f32.mrf.mxu0
  %v1457 = vadd.f32 %v1434, %v1456
  %1458 = vdwg.mxu0
  %1459 = vmatpush.msra.mxu0 0.0
  %1460 = vmatpush.msra.mxu0 0.0
  %1461 = vmatpush.msra.mxu0 0.0
  %1462 = vmatpush.msra.mxu0 0.0
  %1463 = vmatpush.msra.mxu0 0.0
  %1464 = vmatpush.msra.mxu0 0.0
  %1465 = vmatpush.msra.mxu0 0.0
  %1466 = vmatpush.msra.mxu0 0.0
  %1467 = vmatpush.msra.mxu0 0.0
  %1468 = vmatpush.msra.mxu0 0.0
  %1469 = vmatpush.msra.mxu0 0.0
  %1470 = vmatpush.msra.mxu0 0.0
  %1471 = vmatpush.msra.mxu0 %v1333
  %1472 = vmatpush.msra.mxu0 %v1331
  %1473 = vmatpush.msra.mxu0 %v1329
  %1474 = vmatpush.msra.mxu0 %v1327
  %1475 = vmatmul.f32.gmra.mxu0 %v1408
  %v1476 = vpop.f32.mrf.mxu0
  %v1477 = vadd.f32 %v1454, %v1476
  %1478 = vmatmul.f32.gmra.mxu0 %v1411
  %v1479 = vpop.f32.mrf.mxu0
  %v1480 = vadd.f32 %v1457, %v1479
  %1481 = vdwg.mxu0
  %1482 = vmatpush.msra.mxu0 %v1294
  %1483 = vmatpush.msra.mxu0 %v1292
  %1484 = vmatpush.msra.mxu0 %v1290
  %1485 = vmatpush.msra.mxu0 %v1288
  %1486 = vmatpush.msra.mxu0 %v1286
  %1487 = vmatpush.msra.mxu0 %v1284
  %1488 = vmatpush.msra.mxu0 %v1282
  %1489 = vmatpush.msra.mxu0 %v1280
  %1490 = vmatpush.msra.mxu0 %v1278
  %1491 = vmatpush.msra.mxu0 %v1276
  %1492 = vmatpush.msra.mxu0 %v1274
  %1493 = vmatpush.msra.mxu0 %v1272
  %1494 = vmatpush.msra.mxu0 %v1270
  %1495 = vmatpush.msra.mxu0 %v1268
  %1496 = vmatpush.msra.mxu0 %v1266
  %1497 = vmatpush.msra.mxu0 %v1264
  %1498 = vmatmul.f32.gmra.mxu0 %v723
  %v1499 = vpop.f32.mrf.mxu0
  %v1500 = vadd.f32 %v1040, %v1499
  %1501 = vmatmul.f32.gmra.mxu0 %v726
  %v1502 = vpop.f32.mrf.mxu0
  %v1503 = vadd.f32 %v1045, %v1502
  %1504 = vdwg.mxu0
  %1505 = vmatpush.msra.mxu0 %v1326
  %1506 = vmatpush.msra.mxu0 %v1324
  %1507 = vmatpush.msra.mxu0 %v1322
  %1508 = vmatpush.msra.mxu0 %v1320
  %1509 = vmatpush.msra.mxu0 %v1318
  %1510 = vmatpush.msra.mxu0 %v1316
  %1511 = vmatpush.msra.mxu0 %v1314
  %1512 = vmatpush.msra.mxu0 %v1312
  %1513 = vmatpush.msra.mxu0 %v1310
  %1514 = vmatpush.msra.mxu0 %v1308
  %1515 = vmatpush.msra.mxu0 %v1306
  %1516 = vmatpush.msra.mxu0 %v1304
  %1517 = vmatpush.msra.mxu0 %v1302
  %1518 = vmatpush.msra.mxu0 %v1300
  %1519 = vmatpush.msra.mxu0 %v1298
  %1520 = vmatpush.msra.mxu0 %v1296
  %1521 = vmatmul.f32.gmra.mxu0 %v724
  %v1522 = vpop.f32.mrf.mxu0
  %v1523 = vadd.f32 %v1500, %v1522
  %1524 = vmatmul.f32.gmra.mxu0 %v727
  %v1525 = vpop.f32.mrf.mxu0
  %v1526 = vadd.f32 %v1503, %v1525
  %1527 = vdwg.mxu0
  %1528 = vmatpush.msra.mxu0 0.0
  %1529 = vmatpush.msra.mxu0 0.0
  %1530 = vmatpush.msra.mxu0 0.0
  %1531 = vmatpush.msra.mxu0 0.0
  %1532 = vmatpush.msra.mxu0 0.0
  %1533 = vmatpush.msra.mxu0 0.0
  %1534 = vmatpush.msra.mxu0 0.0
  %1535 = vmatpush.msra.mxu0 0.0
  %1536 = vmatpush.msra.mxu0 0.0
  %1537 = vmatpush.msra.mxu0 0.0
  %1538 = vmatpush.msra.mxu0 0.0
  %1539 = vmatpush.msra.mxu0 0.0
  %1540 = vmatpush.msra.mxu0 %v1334
  %1541 = vmatpush.msra.mxu0 %v1332
  %1542 = vmatpush.msra.mxu0 %v1330
  %1543 = vmatpush.msra.mxu0 %v1328
  %1544 = vmatmul.f32.gmra.mxu0 %v1408
  %v1545 = vpop.f32.mrf.mxu0
  %v1546 = vadd.f32 %v1523, %v1545
  %1547 = vmatmul.f32.gmra.mxu0 %v1411
  %v1548 = vpop.f32.mrf.mxu0
  %v1549 = vadd.f32 %v1526, %v1548
  %1550 = vdwg.mxu0
  %v1551 = vmul.f32 %v1477, 0.5263158
  %v1552 = vmul.f32 %v1546, 0.5263158
  %v1553 = vand.u32 2147483647, %v1551
  %v1554 = vand.u32 2147483647, %v1552
  %v1555 = vmax.f32 %v1553, 1.0
  %v1556 = vmax.f32 %v1554, 1.0
  %v1557 = vrcp.pop %v1555
  %v1558 = vrcp.pop %v1556
  %v1559 = vmul.f32 %v1555, %v1557
  %v1560 = vmul.f32 %v1556, %v1558
  %v1561 = vsub.f32 2.0, %v1559
  %v1562 = vsub.f32 2.0, %v1560
  %v1563 = vmul.f32 %v1557, %v1561
  %v1564 = vmul.f32 %v1558, %v1562
  %vm1565 = vcmp.gt.f32.partialorder %v1553, 1.0
  %vm1566 = vcmp.gt.f32.partialorder %v1554, 1.0
  %v1567 = vsel %vm1565, %v1563, %v1553
  %v1568 = vsel %vm1566, %v1564, %v1554
  %v1569 = vmul.f32 %v1567, %v1567
  %v1570 = vmul.f32 %v1568, %v1568
  %v1571 = vmul.f32 %v1569, 0.0208351
  %v1572 = vmul.f32 %v1570, 0.0208351
  %v1573 = vadd.f32 %v1571, -0.085133
  %v1574 = vadd.f32 %v1572, -0.085133
  %v1575 = vmul.f32 %v1569, %v1573
  %v1576 = vmul.f32 %v1570, %v1574
  %v1577 = vadd.f32 %v1575, 0.180141
  %v1578 = vadd.f32 %v1576, 0.180141
  %v1579 = vmul.f32 %v1569, %v1577
  %v1580 = vmul.f32 %v1570, %v1578
  %v1581 = vadd.f32 %v1579, -0.3302995
  %v1582 = vadd.f32 %v1580, -0.3302995
  %v1583 = vmul.f32 %v1569, %v1581
  %v1584 = vmul.f32 %v1570, %v1582
  %v1585 = vadd.f32 %v1583, 0.999866
  %v1586 = vadd.f32 %v1584, 0.999866
  %v1587 = vmul.f32 %v1567, %v1585
  %v1588 = vmul.f32 %v1568, %v1586
  %v1589 = vsub.f32 1.5707964, %v1587
  %v1590 = vsub.f32 1.5707964, %v1588
  %v1591 = vsel %vm1565, %v1589, %v1587
  %v1592 = vsel %vm1566, %v1590, %v1588
  %vm1593 = vcmp.lt.f32.partialorder %v1551, 0.0
  %vm1594 = vcmp.lt.f32.partialorder %v1552, 0.0
  %v1595 = vsub.f32 0.0, %v1591
  %v1596 = vsub.f32 0.0, %v1592
  %v1597 = vsel %vm1593, %v1595, %v1591
  %v1598 = vsel %vm1594, %v1596, %v1592
  %v1599 = vmul.f32 %v1597, 1.2084
  %v1600 = vmul.f32 %v1598, 1.2084
  %v1601 = vmul.f32 %v1599, 1.442695
  %v1602 = vpow.pop %v1601
  %v1603 = vmul.f32 %v1600, 1.442695
  %v1604 = vpow.pop %v1603
  %v1605 = vmul.f32 %v1602, %v197
  %v1606 = vmul.f32 %v1604, %v220
  %v1607 = vadd.f32 %v1605, %v1480
  %v1608 = vadd.f32 %v1606, %v1549
  %v1609 = vmul.f32 %v1607, %v607
  %v1610 = vmul.f32 %v1608, %v608
  %1613 = vrot.lane.b32.xlu0 %v1609, 16
  %v1614 = vpop.permute.xlu0 %1613
  %1615 = vrot.lane.b32.xlu0 %v1610, 16
  %v1616 = vpop.permute.xlu0 %1615
  %v1617 = vsel %vm91, %v1614, %v1616
  %v1620 = vsel %vm91, 0.0, %v1614
  %v1621 = vsel %vm91, %v1616, 0.0
  %1624 = vrot.lane.b32.xlu0 %v1620, 127
  %v1625 = vpop.permute.xlu0 %1624
  %1626 = vrot.lane.b32.xlu0 %v1617, 127
  %v1627 = vpop.permute.xlu0 %1626
  %1628 = vrot.lane.b32.xlu0 %v1621, 127
  %v1629 = vpop.permute.xlu0 %1628
  %v1630 = vsel %vm105, %v1625, %v1627
  %v1631 = vsel %vm105, %v1627, %v1629
  %1632 = vrot.lane.b32.xlu0 %v1620, 126
  %v1633 = vpop.permute.xlu0 %1632
  %1634 = vrot.lane.b32.xlu0 %v1617, 126
  %v1635 = vpop.permute.xlu0 %1634
  %1636 = vrot.lane.b32.xlu0 %v1621, 126
  %v1637 = vpop.permute.xlu0 %1636
  %v1638 = vsel %vm114, %v1633, %v1635
  %v1639 = vsel %vm114, %v1635, %v1637
  %1640 = vrot.lane.b32.xlu0 %v1620, 118
  %v1641 = vpop.permute.xlu0 %1640
  %1642 = vrot.lane.b32.xlu0 %v1617, 118
  %v1643 = vpop.permute.xlu0 %1642
  %1644 = vrot.lane.b32.xlu0 %v1621, 118
  %v1645 = vpop.permute.xlu0 %1644
  %v1646 = vsel %vm123, %v1641, %v1643
  %v1647 = vsel %vm123, %v1643, %v1645
  %1648 = vrot.lane.b32.xlu0 %v1620, 117
  %v1649 = vpop.permute.xlu0 %1648
  %1650 = vrot.lane.b32.xlu0 %v1617, 117
  %v1651 = vpop.permute.xlu0 %1650
  %1652 = vrot.lane.b32.xlu0 %v1621, 117
  %v1653 = vpop.permute.xlu0 %1652
  %v1654 = vsel %vm132, %v1649, %v1651
  %v1655 = vsel %vm132, %v1651, %v1653
  %1656 = vrot.lane.b32.xlu0 %v1620, 116
  %v1657 = vpop.permute.xlu0 %1656
  %1658 = vrot.lane.b32.xlu0 %v1617, 116
  %v1659 = vpop.permute.xlu0 %1658
  %1660 = vrot.lane.b32.xlu0 %v1621, 116
  %v1661 = vpop.permute.xlu0 %1660
  %v1662 = vsel %vm141, %v1657, %v1659
  %v1663 = vsel %vm141, %v1659, %v1661
  %1664 = vrot.lane.b32.xlu0 %v1620, 108
  %v1665 = vpop.permute.xlu0 %1664
  %1666 = vrot.lane.b32.xlu0 %v1617, 108
  %v1667 = vpop.permute.xlu0 %1666
  %1668 = vrot.lane.b32.xlu0 %v1621, 108
  %v1669 = vpop.permute.xlu0 %1668
  %v1670 = vsel %vm150, %v1665, %v1667
  %v1671 = vsel %vm150, %v1667, %v1669
  %1672 = vrot.lane.b32.xlu0 %v1620, 107
  %v1673 = vpop.permute.xlu0 %1672
  %1674 = vrot.lane.b32.xlu0 %v1617, 107
  %v1675 = vpop.permute.xlu0 %1674
  %1676 = vrot.lane.b32.xlu0 %v1621, 107
  %v1677 = vpop.permute.xlu0 %1676
  %v1678 = vsel %vm159, %v1673, %v1675
  %v1679 = vsel %vm159, %v1675, %v1677
  %1680 = vrot.lane.b32.xlu0 %v1620, 106
  %v1681 = vpop.permute.xlu0 %1680
  %1682 = vrot.lane.b32.xlu0 %v1617, 106
  %v1683 = vpop.permute.xlu0 %1682
  %1684 = vrot.lane.b32.xlu0 %v1621, 106
  %v1685 = vpop.permute.xlu0 %1684
  %v1686 = vsel %vm168, %v1681, %v1683
  %v1687 = vsel %vm168, %v1683, %v1685
  %s1688 = scalar_lea.vmem %s6, 64
  %v1689 = vld [vmem:[%s1688] sm:$0xff]
  %v1690 = vld [vmem:[%s1688 + $0x8] sm:$0xff]
  %v1691 = vld [vmem:[%s1688 + $0x10] sm:$0xff]
  %v1692 = vld [vmem:[%s1688 + $0x18] sm:$0xff]
  %v1693 = vld [vmem:[%s1688 + $0x20] sm:$0xff]
  %v1694 = vld [vmem:[%s1688 + $0x28] sm:$0xff]
  %v1695 = vld [vmem:[%s1688 + $0x30] sm:$0xff]
  %v1696 = vld [vmem:[%s1688 + $0x38] sm:$0xff]
  %s1697 = scalar_lea.vmem %s3, 32
  %v1698 = vld [vmem:[%s1697] sm:$0xff]
  %v1699 = vld [vmem:[%s1697 + $0x8] sm:$0xff]
  %v1700 = vld [vmem:[%s1697 + $0x10] sm:$0xff]
  %v1701 = vld [vmem:[%s1697 + $0x18] sm:$0xff]
  %1703 = vset.pattern.permute.xlu0 0
  %1704 = vperm.xlu0 %1703, %v1689
  %v1705 = vpop.permute.xlu0 %1704
  %1708 = vset.pattern.permute.xlu0 0
  %1709 = vperm.xlu0 %1708, %v1690
  %v1710 = vpop.permute.xlu0 %1709
  %1712 = vrot.lane.b32.xlu0 %v1620, 123
  %v1713 = vpop.permute.xlu0 %1712
  %1714 = vrot.lane.b32.xlu0 %v1617, 123
  %v1715 = vpop.permute.xlu0 %1714
  %1716 = vrot.lane.b32.xlu0 %v1621, 123
  %v1717 = vpop.permute.xlu0 %1716
  %1718 = vrot.lane.b32.xlu0 %v1630, 123
  %v1719 = vpop.permute.xlu0 %1718
  %1720 = vrot.lane.b32.xlu0 %v1631, 123
  %v1721 = vpop.permute.xlu0 %1720
  %1722 = vrot.lane.b32.xlu0 %v1629, 123
  %v1723 = vpop.permute.xlu0 %1722
  %1724 = vrot.lane.b32.xlu0 %v1638, 123
  %v1725 = vpop.permute.xlu0 %1724
  %1726 = vrot.lane.b32.xlu0 %v1639, 123
  %v1727 = vpop.permute.xlu0 %1726
  %1728 = vrot.lane.b32.xlu0 %v1637, 123
  %v1729 = vpop.permute.xlu0 %1728
  %1730 = vrot.lane.b32.xlu0 %v1646, 123
  %v1731 = vpop.permute.xlu0 %1730
  %1732 = vrot.lane.b32.xlu0 %v1647, 123
  %v1733 = vpop.permute.xlu0 %1732
  %1734 = vrot.lane.b32.xlu0 %v1645, 123
  %v1735 = vpop.permute.xlu0 %1734
  %1736 = vrot.lane.b32.xlu0 %v1654, 123
  %v1737 = vpop.permute.xlu0 %1736
  %1738 = vrot.lane.b32.xlu0 %v1655, 123
  %v1739 = vpop.permute.xlu0 %1738
  %1740 = vrot.lane.b32.xlu0 %v1653, 123
  %v1741 = vpop.permute.xlu0 %1740
  %1742 = vrot.lane.b32.xlu0 %v1662, 123
  %v1743 = vpop.permute.xlu0 %1742
  %1744 = vrot.lane.b32.xlu0 %v1663, 123
  %v1745 = vpop.permute.xlu0 %1744
  %1746 = vrot.lane.b32.xlu0 %v1661, 123
  %v1747 = vpop.permute.xlu0 %1746
  %1748 = vrot.lane.b32.xlu0 %v1670, 123
  %v1749 = vpop.permute.xlu0 %1748
  %1750 = vrot.lane.b32.xlu0 %v1671, 123
  %v1751 = vpop.permute.xlu0 %1750
  %1752 = vrot.lane.b32.xlu0 %v1669, 123
  %v1753 = vpop.permute.xlu0 %1752
  %1754 = vrot.lane.b32.xlu0 %v1678, 123
  %v1755 = vpop.permute.xlu0 %1754
  %1756 = vrot.lane.b32.xlu0 %v1679, 123
  %v1757 = vpop.permute.xlu0 %1756
  %1758 = vrot.lane.b32.xlu0 %v1677, 123
  %v1759 = vpop.permute.xlu0 %1758
  %1760 = vrot.lane.b32.xlu0 %v1686, 123
  %v1761 = vpop.permute.xlu0 %1760
  %1762 = vrot.lane.b32.xlu0 %v1687, 123
  %v1763 = vpop.permute.xlu0 %1762
  %1764 = vrot.lane.b32.xlu0 %v1685, 123
  %v1765 = vpop.permute.xlu0 %1764
  %v1766 = vsel %vm432, %v1713, %v1715
  %v1767 = vsel %vm432, %v1715, %v1717
  %v1768 = vsel %vm432, %v1719, %v1721
  %v1769 = vsel %vm432, %v1721, %v1723
  %v1770 = vsel %vm432, %v1725, %v1727
  %v1771 = vsel %vm432, %v1727, %v1729
  %v1772 = vsel %vm432, %v1731, %v1733
  %v1773 = vsel %vm432, %v1733, %v1735
  %v1774 = vsel %vm432, %v1737, %v1739
  %v1775 = vsel %vm432, %v1739, %v1741
  %v1776 = vsel %vm432, %v1743, %v1745
  %v1777 = vsel %vm432, %v1745, %v1747
  %v1778 = vsel %vm432, %v1749, %v1751
  %v1779 = vsel %vm432, %v1751, %v1753
  %v1780 = vsel %vm432, %v1755, %v1757
  %v1781 = vsel %vm432, %v1757, %v1759
  %v1782 = vsel %vm432, %v1761, %v1763
  %v1783 = vsel %vm432, %v1763, %v1765
  %v1803 = vsel %vm91, %v1699, 0
  %v1806 = vsel %vm91, %v1701, 0
  %1808 = vmatpush.msra.mxu0 %v463
  %1809 = vmatpush.msra.mxu0 %v461
  %1810 = vmatpush.msra.mxu0 %v459
  %1811 = vmatpush.msra.mxu0 %v457
  %1812 = vmatpush.msra.mxu0 %v455
  %1813 = vmatpush.msra.mxu0 %v453
  %1814 = vmatpush.msra.mxu0 %v451
  %1815 = vmatpush.msra.mxu0 %v1782
  %1816 = vmatpush.msra.mxu0 %v1780
  %1817 = vmatpush.msra.mxu0 %v1778
  %1818 = vmatpush.msra.mxu0 %v1776
  %1819 = vmatpush.msra.mxu0 %v1774
  %1820 = vmatpush.msra.mxu0 %v1772
  %1821 = vmatpush.msra.mxu0 %v1770
  %1822 = vmatpush.msra.mxu0 %v1768
  %1823 = vmatpush.msra.mxu0 %v1766
  %1824 = vmatmul.f32.gmra.mxu0 %v1698
  %v1825 = vpop.f32.mrf.mxu0
  %v1826 = vadd.f32 %v1705, %v1825
  %1827 = vmatmul.f32.gmra.mxu0 %v1700
  %v1828 = vpop.f32.mrf.mxu0
  %v1829 = vadd.f32 %v1710, %v1828
  %1830 = vdwg.mxu0
  %1831 = vmatpush.msra.mxu0 0.0
  %1832 = vmatpush.msra.mxu0 0.0
  %1833 = vmatpush.msra.mxu0 0.0
  %1834 = vmatpush.msra.mxu0 0.0
  %1835 = vmatpush.msra.mxu0 0.0
  %1836 = vmatpush.msra.mxu0 0.0
  %1837 = vmatpush.msra.mxu0 0.0
  %1838 = vmatpush.msra.mxu0 0.0
  %1839 = vmatpush.msra.mxu0 0.0
  %1840 = vmatpush.msra.mxu0 0.0
  %1841 = vmatpush.msra.mxu0 0.0
  %1842 = vmatpush.msra.mxu0 0.0
  %1843 = vmatpush.msra.mxu0 0.0
  %1844 = vmatpush.msra.mxu0 0.0
  %1845 = vmatpush.msra.mxu0 %v467
  %1846 = vmatpush.msra.mxu0 %v465
  %1847 = vmatmul.f32.gmra.mxu0 %v1803
  %v1848 = vpop.f32.mrf.mxu0
  %v1849 = vadd.f32 %v1826, %v1848
  %1850 = vmatmul.f32.gmra.mxu0 %v1806
  %v1851 = vpop.f32.mrf.mxu0
  %v1852 = vadd.f32 %v1829, %v1851
  %1853 = vdwg.mxu0
  %1854 = vmatpush.msra.mxu0 %v464
  %1855 = vmatpush.msra.mxu0 %v462
  %1856 = vmatpush.msra.mxu0 %v460
  %1857 = vmatpush.msra.mxu0 %v458
  %1858 = vmatpush.msra.mxu0 %v456
  %1859 = vmatpush.msra.mxu0 %v454
  %1860 = vmatpush.msra.mxu0 %v452
  %1861 = vmatpush.msra.mxu0 %v1783
  %1862 = vmatpush.msra.mxu0 %v1781
  %1863 = vmatpush.msra.mxu0 %v1779
  %1864 = vmatpush.msra.mxu0 %v1777
  %1865 = vmatpush.msra.mxu0 %v1775
  %1866 = vmatpush.msra.mxu0 %v1773
  %1867 = vmatpush.msra.mxu0 %v1771
  %1868 = vmatpush.msra.mxu0 %v1769
  %1869 = vmatpush.msra.mxu0 %v1767
  %1870 = vmatmul.f32.gmra.mxu0 %v1698
  %v1871 = vpop.f32.mrf.mxu0
  %v1872 = vadd.f32 %v1705, %v1871
  %1873 = vmatmul.f32.gmra.mxu0 %v1700
  %v1874 = vpop.f32.mrf.mxu0
  %v1875 = vadd.f32 %v1710, %v1874
  %1876 = vdwg.mxu0
  %1877 = vmatpush.msra.mxu0 0.0
  %1878 = vmatpush.msra.mxu0 0.0
  %1879 = vmatpush.msra.mxu0 0.0
  %1880 = vmatpush.msra.mxu0 0.0
  %1881 = vmatpush.msra.mxu0 0.0
  %1882 = vmatpush.msra.mxu0 0.0
  %1883 = vmatpush.msra.mxu0 0.0
  %1884 = vmatpush.msra.mxu0 0.0
  %1885 = vmatpush.msra.mxu0 0.0
  %1886 = vmatpush.msra.mxu0 0.0
  %1887 = vmatpush.msra.mxu0 0.0
  %1888 = vmatpush.msra.mxu0 0.0
  %1889 = vmatpush.msra.mxu0 0.0
  %1890 = vmatpush.msra.mxu0 0.0
  %1891 = vmatpush.msra.mxu0 %v468
  %1892 = vmatpush.msra.mxu0 %v466
  %1893 = vmatmul.f32.gmra.mxu0 %v1803
  %v1894 = vpop.f32.mrf.mxu0
  %v1895 = vadd.f32 %v1872, %v1894
  %1896 = vmatmul.f32.gmra.mxu0 %v1806
  %v1897 = vpop.f32.mrf.mxu0
  %v1898 = vadd.f32 %v1875, %v1897
  %1899 = vdwg.mxu0
  %v1900 = vmax.f32 %v1849, 0.0
  %v1901 = vmax.f32 %v1895, 0.0
  %v1902 = vmax.f32 %v1852, 0.0
  %v1903 = vmax.f32 %v1898, 0.0
  %v1904 = vmul.f32 %v1900, %v607
  %v1905 = vmul.f32 %v1901, %v608
  %v1906 = vmul.f32 %v1902, %v607
  %v1907 = vmul.f32 %v1903, %v608
  %s1908 = scalar_lea.vmem %s4, 32
  %v1909 = vld [vmem:[%s1908] sm:$0xff]
  %v1910 = vld [vmem:[%s1908 + $0x8] sm:$0xff]
  %v1911 = vld [vmem:[%s1908 + $0x10] sm:$0xff]
  %v1912 = vld [vmem:[%s1908 + $0x18] sm:$0xff]
  %1914 = vset.pattern.permute.xlu0 0
  %1915 = vperm.xlu0 %1914, %v1691
  %v1916 = vpop.permute.xlu0 %1915
  %1919 = vset.pattern.permute.xlu0 0
  %1920 = vperm.xlu0 %1919, %v1692
  %v1921 = vpop.permute.xlu0 %1920
  %1924 = vset.pattern.permute.xlu0 0
  %1925 = vperm.xlu0 %1924, %v1693
  %v1926 = vpop.permute.xlu0 %1925
  %1929 = vset.pattern.permute.xlu0 0
  %1930 = vperm.xlu0 %1929, %v1694
  %v1931 = vpop.permute.xlu0 %1930
  %v1934 = vsel %vm91, %v1909, 0
  %v1937 = vsel %vm91, %v1910, 0
  %v1940 = vsel %vm91, %v1911, 0
  %v1943 = vsel %vm91, %v1912, 0
  %1945 = vmatpush.msra.mxu0 0.0
  %1946 = vmatpush.msra.mxu0 0.0
  %1947 = vmatpush.msra.mxu0 0.0
  %1948 = vmatpush.msra.mxu0 0.0
  %1949 = vmatpush.msra.mxu0 0.0
  %1950 = vmatpush.msra.mxu0 0.0
  %1951 = vmatpush.msra.mxu0 0.0
  %1952 = vmatpush.msra.mxu0 0.0
  %1953 = vmatpush.msra.mxu0 0.0
  %1954 = vmatpush.msra.mxu0 0.0
  %1955 = vmatpush.msra.mxu0 0.0
  %1956 = vmatpush.msra.mxu0 0.0
  %1957 = vmatpush.msra.mxu0 0.0
  %1958 = vmatpush.msra.mxu0 0.0
  %1959 = vmatpush.msra.mxu0 %v1906
  %1960 = vmatpush.msra.mxu0 %v1904
  %1961 = vmatmul.f32.gmra.mxu0 %v1934
  %v1962 = vpop.f32.mrf.mxu0
  %v1963 = vadd.f32 %v1916, %v1962
  %1964 = vmatmul.f32.gmra.mxu0 %v1937
  %v1965 = vpop.f32.mrf.mxu0
  %v1966 = vadd.f32 %v1921, %v1965
  %1967 = vmatmul.f32.gmra.mxu0 %v1940
  %v1968 = vpop.f32.mrf.mxu0
  %v1969 = vadd.f32 %v1926, %v1968
  %1970 = vmatmul.f32.gmra.mxu0 %v1943
  %v1971 = vpop.f32.mrf.mxu0
  %v1972 = vadd.f32 %v1931, %v1971
  %1973 = vdwg.mxu0
  %1974 = vmatpush.msra.mxu0 0.0
  %1975 = vmatpush.msra.mxu0 0.0
  %1976 = vmatpush.msra.mxu0 0.0
  %1977 = vmatpush.msra.mxu0 0.0
  %1978 = vmatpush.msra.mxu0 0.0
  %1979 = vmatpush.msra.mxu0 0.0
  %1980 = vmatpush.msra.mxu0 0.0
  %1981 = vmatpush.msra.mxu0 0.0
  %1982 = vmatpush.msra.mxu0 0.0
  %1983 = vmatpush.msra.mxu0 0.0
  %1984 = vmatpush.msra.mxu0 0.0
  %1985 = vmatpush.msra.mxu0 0.0
  %1986 = vmatpush.msra.mxu0 0.0
  %1987 = vmatpush.msra.mxu0 0.0
  %1988 = vmatpush.msra.mxu0 %v1907
  %1989 = vmatpush.msra.mxu0 %v1905
  %1990 = vmatmul.f32.gmra.mxu0 %v1934
  %v1991 = vpop.f32.mrf.mxu0
  %v1992 = vadd.f32 %v1916, %v1991
  %1993 = vmatmul.f32.gmra.mxu0 %v1937
  %v1994 = vpop.f32.mrf.mxu0
  %v1995 = vadd.f32 %v1921, %v1994
  %1996 = vmatmul.f32.gmra.mxu0 %v1940
  %v1997 = vpop.f32.mrf.mxu0
  %v1998 = vadd.f32 %v1926, %v1997
  %1999 = vmatmul.f32.gmra.mxu0 %v1943
  %v2000 = vpop.f32.mrf.mxu0
  %v2001 = vadd.f32 %v1931, %v2000
  %2002 = vdwg.mxu0
  %v2003 = vmax.f32 %v1963, 0.0
  %v2004 = vmax.f32 %v1992, 0.0
  %v2005 = vmax.f32 %v1966, 0.0
  %v2006 = vmax.f32 %v1995, 0.0
  %v2007 = vmax.f32 %v1969, 0.0
  %v2008 = vmax.f32 %v1998, 0.0
  %v2009 = vmax.f32 %v1972, 0.0
  %v2010 = vmax.f32 %v2001, 0.0
  %v2011 = vmul.f32 %v2003, %v607
  %v2012 = vmul.f32 %v2004, %v608
  %v2013 = vmul.f32 %v2005, %v607
  %v2014 = vmul.f32 %v2006, %v608
  %v2015 = vmul.f32 %v2007, %v607
  %v2016 = vmul.f32 %v2008, %v608
  %v2017 = vmul.f32 %v2009, %v607
  %v2018 = vmul.f32 %v2010, %v608
  %s2019 = scalar_lea.vmem %s5, 48
  %v2020 = vld [vmem:[%s2019] sm:$0xff]
  %v2021 = vld [vmem:[%s2019 + $0x8] sm:$0xff]
  %v2022 = vld [vmem:[%s2019 + $0x10] sm:$0xff]
  %v2023 = vld [vmem:[%s2019 + $0x18] sm:$0xff]
  %v2024 = vld [vmem:[%s2019 + $0x20] sm:$0xff]
  %v2025 = vld [vmem:[%s2019 + $0x28] sm:$0xff]
  %2034 = vrot.lane.b32.xlu0 %v2011, 16
  %v2035 = vpop.permute.xlu0 %2034
  %2036 = vrot.lane.b32.xlu0 %v2012, 16
  %v2037 = vpop.permute.xlu0 %2036
  %2038 = vrot.lane.b32.xlu0 %v2013, 16
  %v2039 = vpop.permute.xlu0 %2038
  %2040 = vrot.lane.b32.xlu0 %v2014, 16
  %v2041 = vpop.permute.xlu0 %2040
  %2042 = vrot.lane.b32.xlu0 %v2015, 16
  %v2043 = vpop.permute.xlu0 %2042
  %2044 = vrot.lane.b32.xlu0 %v2016, 16
  %v2045 = vpop.permute.xlu0 %2044
  %2046 = vrot.lane.b32.xlu0 %v2017, 16
  %v2047 = vpop.permute.xlu0 %2046
  %2048 = vrot.lane.b32.xlu0 %v2018, 16
  %v2049 = vpop.permute.xlu0 %2048
  %v2050 = vsel %vm91, %v2035, %v2037
  %v2051 = vsel %vm91, %v2039, %v2041
  %v2052 = vsel %vm91, %v2043, %v2045
  %v2053 = vsel %vm91, %v2047, %v2049
  %v2062 = vsel %vm91, 0.0, %v2035
  %v2063 = vsel %vm91, 0.0, %v2039
  %v2064 = vsel %vm91, 0.0, %v2043
  %v2065 = vsel %vm91, 0.0, %v2047
  %v2066 = vsel %vm91, %v2037, 0.0
  %v2067 = vsel %vm91, %v2041, 0.0
  %v2068 = vsel %vm91, %v2045, 0.0
  %v2069 = vsel %vm91, %v2049, 0.0
  %2078 = vrot.lane.b32.xlu0 %v2062, 127
  %v2079 = vpop.permute.xlu0 %2078
  %2080 = vrot.lane.b32.xlu0 %v2050, 127
  %v2081 = vpop.permute.xlu0 %2080
  %2082 = vrot.lane.b32.xlu0 %v2066, 127
  %v2083 = vpop.permute.xlu0 %2082
  %2084 = vrot.lane.b32.xlu0 %v2063, 127
  %v2085 = vpop.permute.xlu0 %2084
  %2086 = vrot.lane.b32.xlu0 %v2051, 127
  %v2087 = vpop.permute.xlu0 %2086
  %2088 = vrot.lane.b32.xlu0 %v2067, 127
  %v2089 = vpop.permute.xlu0 %2088
  %2090 = vrot.lane.b32.xlu0 %v2064, 127
  %v2091 = vpop.permute.xlu0 %2090
  %2092 = vrot.lane.b32.xlu0 %v2052, 127
  %v2093 = vpop.permute.xlu0 %2092
  %2094 = vrot.lane.b32.xlu0 %v2068, 127
  %v2095 = vpop.permute.xlu0 %2094
  %2096 = vrot.lane.b32.xlu0 %v2065, 127
  %v2097 = vpop.permute.xlu0 %2096
  %2098 = vrot.lane.b32.xlu0 %v2053, 127
  %v2099 = vpop.permute.xlu0 %2098
  %2100 = vrot.lane.b32.xlu0 %v2069, 127
  %v2101 = vpop.permute.xlu0 %2100
  %v2102 = vsel %vm105, %v2079, %v2081
  %v2103 = vsel %vm105, %v2081, %v2083
  %v2104 = vsel %vm105, %v2085, %v2087
  %v2105 = vsel %vm105, %v2087, %v2089
  %v2106 = vsel %vm105, %v2091, %v2093
  %v2107 = vsel %vm105, %v2093, %v2095
  %v2108 = vsel %vm105, %v2097, %v2099
  %v2109 = vsel %vm105, %v2099, %v2101
  %2110 = vrot.lane.b32.xlu0 %v2062, 126
  %v2111 = vpop.permute.xlu0 %2110
  %2112 = vrot.lane.b32.xlu0 %v2050, 126
  %v2113 = vpop.permute.xlu0 %2112
  %2114 = vrot.lane.b32.xlu0 %v2066, 126
  %v2115 = vpop.permute.xlu0 %2114
  %2116 = vrot.lane.b32.xlu0 %v2063, 126
  %v2117 = vpop.permute.xlu0 %2116
  %2118 = vrot.lane.b32.xlu0 %v2051, 126
  %v2119 = vpop.permute.xlu0 %2118
  %2120 = vrot.lane.b32.xlu0 %v2067, 126
  %v2121 = vpop.permute.xlu0 %2120
  %2122 = vrot.lane.b32.xlu0 %v2064, 126
  %v2123 = vpop.permute.xlu0 %2122
  %2124 = vrot.lane.b32.xlu0 %v2052, 126
  %v2125 = vpop.permute.xlu0 %2124
  %2126 = vrot.lane.b32.xlu0 %v2068, 126
  %v2127 = vpop.permute.xlu0 %2126
  %2128 = vrot.lane.b32.xlu0 %v2065, 126
  %v2129 = vpop.permute.xlu0 %2128
  %2130 = vrot.lane.b32.xlu0 %v2053, 126
  %v2131 = vpop.permute.xlu0 %2130
  %2132 = vrot.lane.b32.xlu0 %v2069, 126
  %v2133 = vpop.permute.xlu0 %2132
  %v2134 = vsel %vm114, %v2111, %v2113
  %v2135 = vsel %vm114, %v2113, %v2115
  %v2136 = vsel %vm114, %v2117, %v2119
  %v2137 = vsel %vm114, %v2119, %v2121
  %v2138 = vsel %vm114, %v2123, %v2125
  %v2139 = vsel %vm114, %v2125, %v2127
  %v2140 = vsel %vm114, %v2129, %v2131
  %v2141 = vsel %vm114, %v2131, %v2133
  %2142 = vrot.lane.b32.xlu0 %v2062, 118
  %v2143 = vpop.permute.xlu0 %2142
  %2144 = vrot.lane.b32.xlu0 %v2050, 118
  %v2145 = vpop.permute.xlu0 %2144
  %2146 = vrot.lane.b32.xlu0 %v2066, 118
  %v2147 = vpop.permute.xlu0 %2146
  %2148 = vrot.lane.b32.xlu0 %v2063, 118
  %v2149 = vpop.permute.xlu0 %2148
  %2150 = vrot.lane.b32.xlu0 %v2051, 118
  %v2151 = vpop.permute.xlu0 %2150
  %2152 = vrot.lane.b32.xlu0 %v2067, 118
  %v2153 = vpop.permute.xlu0 %2152
  %2154 = vrot.lane.b32.xlu0 %v2064, 118
  %v2155 = vpop.permute.xlu0 %2154
  %2156 = vrot.lane.b32.xlu0 %v2052, 118
  %v2157 = vpop.permute.xlu0 %2156
  %2158 = vrot.lane.b32.xlu0 %v2068, 118
  %v2159 = vpop.permute.xlu0 %2158
  %2160 = vrot.lane.b32.xlu0 %v2065, 118
  %v2161 = vpop.permute.xlu0 %2160
  %2162 = vrot.lane.b32.xlu0 %v2053, 118
  %v2163 = vpop.permute.xlu0 %2162
  %2164 = vrot.lane.b32.xlu0 %v2069, 118
  %v2165 = vpop.permute.xlu0 %2164
  %v2166 = vsel %vm123, %v2143, %v2145
  %v2167 = vsel %vm123, %v2145, %v2147
  %v2168 = vsel %vm123, %v2149, %v2151
  %v2169 = vsel %vm123, %v2151, %v2153
  %v2170 = vsel %vm123, %v2155, %v2157
  %v2171 = vsel %vm123, %v2157, %v2159
  %v2172 = vsel %vm123, %v2161, %v2163
  %v2173 = vsel %vm123, %v2163, %v2165
  %2174 = vrot.lane.b32.xlu0 %v2062, 117
  %v2175 = vpop.permute.xlu0 %2174
  %2176 = vrot.lane.b32.xlu0 %v2050, 117
  %v2177 = vpop.permute.xlu0 %2176
  %2178 = vrot.lane.b32.xlu0 %v2066, 117
  %v2179 = vpop.permute.xlu0 %2178
  %2180 = vrot.lane.b32.xlu0 %v2063, 117
  %v2181 = vpop.permute.xlu0 %2180
  %2182 = vrot.lane.b32.xlu0 %v2051, 117
  %v2183 = vpop.permute.xlu0 %2182
  %2184 = vrot.lane.b32.xlu0 %v2067, 117
  %v2185 = vpop.permute.xlu0 %2184
  %2186 = vrot.lane.b32.xlu0 %v2064, 117
  %v2187 = vpop.permute.xlu0 %2186
  %2188 = vrot.lane.b32.xlu0 %v2052, 117
  %v2189 = vpop.permute.xlu0 %2188
  %2190 = vrot.lane.b32.xlu0 %v2068, 117
  %v2191 = vpop.permute.xlu0 %2190
  %2192 = vrot.lane.b32.xlu0 %v2065, 117
  %v2193 = vpop.permute.xlu0 %2192
  %2194 = vrot.lane.b32.xlu0 %v2053, 117
  %v2195 = vpop.permute.xlu0 %2194
  %2196 = vrot.lane.b32.xlu0 %v2069, 117
  %v2197 = vpop.permute.xlu0 %2196
  %v2198 = vsel %vm132, %v2175, %v2177
  %v2199 = vsel %vm132, %v2177, %v2179
  %v2200 = vsel %vm132, %v2181, %v2183
  %v2201 = vsel %vm132, %v2183, %v2185
  %v2202 = vsel %vm132, %v2187, %v2189
  %v2203 = vsel %vm132, %v2189, %v2191
  %v2204 = vsel %vm132, %v2193, %v2195
  %v2205 = vsel %vm132, %v2195, %v2197
  %2206 = vrot.lane.b32.xlu0 %v2062, 116
  %v2207 = vpop.permute.xlu0 %2206
  %2208 = vrot.lane.b32.xlu0 %v2050, 116
  %v2209 = vpop.permute.xlu0 %2208
  %2210 = vrot.lane.b32.xlu0 %v2066, 116
  %v2211 = vpop.permute.xlu0 %2210
  %2212 = vrot.lane.b32.xlu0 %v2063, 116
  %v2213 = vpop.permute.xlu0 %2212
  %2214 = vrot.lane.b32.xlu0 %v2051, 116
  %v2215 = vpop.permute.xlu0 %2214
  %2216 = vrot.lane.b32.xlu0 %v2067, 116
  %v2217 = vpop.permute.xlu0 %2216
  %2218 = vrot.lane.b32.xlu0 %v2064, 116
  %v2219 = vpop.permute.xlu0 %2218
  %2220 = vrot.lane.b32.xlu0 %v2052, 116
  %v2221 = vpop.permute.xlu0 %2220
  %2222 = vrot.lane.b32.xlu0 %v2068, 116
  %v2223 = vpop.permute.xlu0 %2222
  %2224 = vrot.lane.b32.xlu0 %v2065, 116
  %v2225 = vpop.permute.xlu0 %2224
  %2226 = vrot.lane.b32.xlu0 %v2053, 116
  %v2227 = vpop.permute.xlu0 %2226
  %2228 = vrot.lane.b32.xlu0 %v2069, 116
  %v2229 = vpop.permute.xlu0 %2228
  %v2230 = vsel %vm141, %v2207, %v2209
  %v2231 = vsel %vm141, %v2209, %v2211
  %v2232 = vsel %vm141, %v2213, %v2215
  %v2233 = vsel %vm141, %v2215, %v2217
  %v2234 = vsel %vm141, %v2219, %v2221
  %v2235 = vsel %vm141, %v2221, %v2223
  %v2236 = vsel %vm141, %v2225, %v2227
  %v2237 = vsel %vm141, %v2227, %v2229
  %2238 = vrot.lane.b32.xlu0 %v2062, 108
  %v2239 = vpop.permute.xlu0 %2238
  %2240 = vrot.lane.b32.xlu0 %v2050, 108
  %v2241 = vpop.permute.xlu0 %2240
  %2242 = vrot.lane.b32.xlu0 %v2066, 108
  %v2243 = vpop.permute.xlu0 %2242
  %2244 = vrot.lane.b32.xlu0 %v2063, 108
  %v2245 = vpop.permute.xlu0 %2244
  %2246 = vrot.lane.b32.xlu0 %v2051, 108
  %v2247 = vpop.permute.xlu0 %2246
  %2248 = vrot.lane.b32.xlu0 %v2067, 108
  %v2249 = vpop.permute.xlu0 %2248
  %2250 = vrot.lane.b32.xlu0 %v2064, 108
  %v2251 = vpop.permute.xlu0 %2250
  %2252 = vrot.lane.b32.xlu0 %v2052, 108
  %v2253 = vpop.permute.xlu0 %2252
  %2254 = vrot.lane.b32.xlu0 %v2068, 108
  %v2255 = vpop.permute.xlu0 %2254
  %2256 = vrot.lane.b32.xlu0 %v2065, 108
  %v2257 = vpop.permute.xlu0 %2256
  %2258 = vrot.lane.b32.xlu0 %v2053, 108
  %v2259 = vpop.permute.xlu0 %2258
  %2260 = vrot.lane.b32.xlu0 %v2069, 108
  %v2261 = vpop.permute.xlu0 %2260
  %v2262 = vsel %vm150, %v2239, %v2241
  %v2263 = vsel %vm150, %v2241, %v2243
  %v2264 = vsel %vm150, %v2245, %v2247
  %v2265 = vsel %vm150, %v2247, %v2249
  %v2266 = vsel %vm150, %v2251, %v2253
  %v2267 = vsel %vm150, %v2253, %v2255
  %v2268 = vsel %vm150, %v2257, %v2259
  %v2269 = vsel %vm150, %v2259, %v2261
  %2270 = vrot.lane.b32.xlu0 %v2062, 107
  %v2271 = vpop.permute.xlu0 %2270
  %2272 = vrot.lane.b32.xlu0 %v2050, 107
  %v2273 = vpop.permute.xlu0 %2272
  %2274 = vrot.lane.b32.xlu0 %v2066, 107
  %v2275 = vpop.permute.xlu0 %2274
  %2276 = vrot.lane.b32.xlu0 %v2063, 107
  %v2277 = vpop.permute.xlu0 %2276
  %2278 = vrot.lane.b32.xlu0 %v2051, 107
  %v2279 = vpop.permute.xlu0 %2278
  %2280 = vrot.lane.b32.xlu0 %v2067, 107
  %v2281 = vpop.permute.xlu0 %2280
  %2282 = vrot.lane.b32.xlu0 %v2064, 107
  %v2283 = vpop.permute.xlu0 %2282
  %2284 = vrot.lane.b32.xlu0 %v2052, 107
  %v2285 = vpop.permute.xlu0 %2284
  %2286 = vrot.lane.b32.xlu0 %v2068, 107
  %v2287 = vpop.permute.xlu0 %2286
  %2288 = vrot.lane.b32.xlu0 %v2065, 107
  %v2289 = vpop.permute.xlu0 %2288
  %2290 = vrot.lane.b32.xlu0 %v2053, 107
  %v2291 = vpop.permute.xlu0 %2290
  %2292 = vrot.lane.b32.xlu0 %v2069, 107
  %v2293 = vpop.permute.xlu0 %2292
  %v2294 = vsel %vm159, %v2271, %v2273
  %v2295 = vsel %vm159, %v2273, %v2275
  %v2296 = vsel %vm159, %v2277, %v2279
  %v2297 = vsel %vm159, %v2279, %v2281
  %v2298 = vsel %vm159, %v2283, %v2285
  %v2299 = vsel %vm159, %v2285, %v2287
  %v2300 = vsel %vm159, %v2289, %v2291
  %v2301 = vsel %vm159, %v2291, %v2293
  %2302 = vrot.lane.b32.xlu0 %v2062, 106
  %v2303 = vpop.permute.xlu0 %2302
  %2304 = vrot.lane.b32.xlu0 %v2050, 106
  %v2305 = vpop.permute.xlu0 %2304
  %2306 = vrot.lane.b32.xlu0 %v2066, 106
  %v2307 = vpop.permute.xlu0 %2306
  %2308 = vrot.lane.b32.xlu0 %v2063, 106
  %v2309 = vpop.permute.xlu0 %2308
  %2310 = vrot.lane.b32.xlu0 %v2051, 106
  %v2311 = vpop.permute.xlu0 %2310
  %2312 = vrot.lane.b32.xlu0 %v2067, 106
  %v2313 = vpop.permute.xlu0 %2312
  %2314 = vrot.lane.b32.xlu0 %v2064, 106
  %v2315 = vpop.permute.xlu0 %2314
  %2316 = vrot.lane.b32.xlu0 %v2052, 106
  %v2317 = vpop.permute.xlu0 %2316
  %2318 = vrot.lane.b32.xlu0 %v2068, 106
  %v2319 = vpop.permute.xlu0 %2318
  %2320 = vrot.lane.b32.xlu0 %v2065, 106
  %v2321 = vpop.permute.xlu0 %2320
  %2322 = vrot.lane.b32.xlu0 %v2053, 106
  %v2323 = vpop.permute.xlu0 %2322
  %2324 = vrot.lane.b32.xlu0 %v2069, 106
  %v2325 = vpop.permute.xlu0 %2324
  %v2326 = vsel %vm168, %v2303, %v2305
  %v2327 = vsel %vm168, %v2305, %v2307
  %v2328 = vsel %vm168, %v2309, %v2311
  %v2329 = vsel %vm168, %v2311, %v2313
  %v2330 = vsel %vm168, %v2315, %v2317
  %v2331 = vsel %vm168, %v2317, %v2319
  %v2332 = vsel %vm168, %v2321, %v2323
  %v2333 = vsel %vm168, %v2323, %v2325
  %2335 = vset.pattern.permute.xlu0 0
  %2336 = vperm.xlu0 %2335, %v1695
  %v2337 = vpop.permute.xlu0 %2336
  %2340 = vset.pattern.permute.xlu0 0
  %2341 = vperm.xlu0 %2340, %v1696
  %v2342 = vpop.permute.xlu0 %2341
  %2344 = vrot.lane.b32.xlu0 %v2062, 123
  %v2345 = vpop.permute.xlu0 %2344
  %2346 = vrot.lane.b32.xlu0 %v2050, 123
  %v2347 = vpop.permute.xlu0 %2346
  %2348 = vrot.lane.b32.xlu0 %v2066, 123
  %v2349 = vpop.permute.xlu0 %2348
  %2350 = vrot.lane.b32.xlu0 %v2063, 123
  %v2351 = vpop.permute.xlu0 %2350
  %2352 = vrot.lane.b32.xlu0 %v2051, 123
  %v2353 = vpop.permute.xlu0 %2352
  %2354 = vrot.lane.b32.xlu0 %v2067, 123
  %v2355 = vpop.permute.xlu0 %2354
  %2356 = vrot.lane.b32.xlu0 %v2064, 123
  %v2357 = vpop.permute.xlu0 %2356
  %2358 = vrot.lane.b32.xlu0 %v2052, 123
  %v2359 = vpop.permute.xlu0 %2358
  %2360 = vrot.lane.b32.xlu0 %v2068, 123
  %v2361 = vpop.permute.xlu0 %2360
  %2362 = vrot.lane.b32.xlu0 %v2065, 123
  %v2363 = vpop.permute.xlu0 %2362
  %2364 = vrot.lane.b32.xlu0 %v2053, 123
  %v2365 = vpop.permute.xlu0 %2364
  %2366 = vrot.lane.b32.xlu0 %v2069, 123
  %v2367 = vpop.permute.xlu0 %2366
  %2368 = vrot.lane.b32.xlu0 %v2102, 123
  %v2369 = vpop.permute.xlu0 %2368
  %2370 = vrot.lane.b32.xlu0 %v2103, 123
  %v2371 = vpop.permute.xlu0 %2370
  %2372 = vrot.lane.b32.xlu0 %v2083, 123
  %v2373 = vpop.permute.xlu0 %2372
  %2374 = vrot.lane.b32.xlu0 %v2104, 123
  %v2375 = vpop.permute.xlu0 %2374
  %2376 = vrot.lane.b32.xlu0 %v2105, 123
  %v2377 = vpop.permute.xlu0 %2376
  %2378 = vrot.lane.b32.xlu0 %v2089, 123
  %v2379 = vpop.permute.xlu0 %2378
  %2380 = vrot.lane.b32.xlu0 %v2106, 123
  %v2381 = vpop.permute.xlu0 %2380
  %2382 = vrot.lane.b32.xlu0 %v2107, 123
  %v2383 = vpop.permute.xlu0 %2382
  %2384 = vrot.lane.b32.xlu0 %v2095, 123
  %v2385 = vpop.permute.xlu0 %2384
  %2386 = vrot.lane.b32.xlu0 %v2108, 123
  %v2387 = vpop.permute.xlu0 %2386
  %2388 = vrot.lane.b32.xlu0 %v2109, 123
  %v2389 = vpop.permute.xlu0 %2388
  %2390 = vrot.lane.b32.xlu0 %v2101, 123
  %v2391 = vpop.permute.xlu0 %2390
  %2392 = vrot.lane.b32.xlu0 %v2134, 123
  %v2393 = vpop.permute.xlu0 %2392
  %2394 = vrot.lane.b32.xlu0 %v2135, 123
  %v2395 = vpop.permute.xlu0 %2394
  %2396 = vrot.lane.b32.xlu0 %v2115, 123
  %v2397 = vpop.permute.xlu0 %2396
  %2398 = vrot.lane.b32.xlu0 %v2136, 123
  %v2399 = vpop.permute.xlu0 %2398
  %2400 = vrot.lane.b32.xlu0 %v2137, 123
  %v2401 = vpop.permute.xlu0 %2400
  %2402 = vrot.lane.b32.xlu0 %v2121, 123
  %v2403 = vpop.permute.xlu0 %2402
  %2404 = vrot.lane.b32.xlu0 %v2138, 123
  %v2405 = vpop.permute.xlu0 %2404
  %2406 = vrot.lane.b32.xlu0 %v2139, 123
  %v2407 = vpop.permute.xlu0 %2406
  %2408 = vrot.lane.b32.xlu0 %v2127, 123
  %v2409 = vpop.permute.xlu0 %2408
  %2410 = vrot.lane.b32.xlu0 %v2140, 123
  %v2411 = vpop.permute.xlu0 %2410
  %2412 = vrot.lane.b32.xlu0 %v2141, 123
  %v2413 = vpop.permute.xlu0 %2412
  %2414 = vrot.lane.b32.xlu0 %v2133, 123
  %v2415 = vpop.permute.xlu0 %2414
  %2416 = vrot.lane.b32.xlu0 %v2166, 123
  %v2417 = vpop.permute.xlu0 %2416
  %2418 = vrot.lane.b32.xlu0 %v2167, 123
  %v2419 = vpop.permute.xlu0 %2418
  %2420 = vrot.lane.b32.xlu0 %v2147, 123
  %v2421 = vpop.permute.xlu0 %2420
  %2422 = vrot.lane.b32.xlu0 %v2168, 123
  %v2423 = vpop.permute.xlu0 %2422
  %2424 = vrot.lane.b32.xlu0 %v2169, 123
  %v2425 = vpop.permute.xlu0 %2424
  %2426 = vrot.lane.b32.xlu0 %v2153, 123
  %v2427 = vpop.permute.xlu0 %2426
  %2428 = vrot.lane.b32.xlu0 %v2170, 123
  %v2429 = vpop.permute.xlu0 %2428
  %2430 = vrot.lane.b32.xlu0 %v2171, 123
  %v2431 = vpop.permute.xlu0 %2430
  %2432 = vrot.lane.b32.xlu0 %v2159, 123
  %v2433 = vpop.permute.xlu0 %2432
  %2434 = vrot.lane.b32.xlu0 %v2172, 123
  %v2435 = vpop.permute.xlu0 %2434
  %2436 = vrot.lane.b32.xlu0 %v2173, 123
  %v2437 = vpop.permute.xlu0 %2436
  %2438 = vrot.lane.b32.xlu0 %v2165, 123
  %v2439 = vpop.permute.xlu0 %2438
  %2440 = vrot.lane.b32.xlu0 %v2198, 123
  %v2441 = vpop.permute.xlu0 %2440
  %2442 = vrot.lane.b32.xlu0 %v2199, 123
  %v2443 = vpop.permute.xlu0 %2442
  %2444 = vrot.lane.b32.xlu0 %v2179, 123
  %v2445 = vpop.permute.xlu0 %2444
  %2446 = vrot.lane.b32.xlu0 %v2200, 123
  %v2447 = vpop.permute.xlu0 %2446
  %2448 = vrot.lane.b32.xlu0 %v2201, 123
  %v2449 = vpop.permute.xlu0 %2448
  %2450 = vrot.lane.b32.xlu0 %v2185, 123
  %v2451 = vpop.permute.xlu0 %2450
  %2452 = vrot.lane.b32.xlu0 %v2202, 123
  %v2453 = vpop.permute.xlu0 %2452
  %2454 = vrot.lane.b32.xlu0 %v2203, 123
  %v2455 = vpop.permute.xlu0 %2454
  %2456 = vrot.lane.b32.xlu0 %v2191, 123
  %v2457 = vpop.permute.xlu0 %2456
  %2458 = vrot.lane.b32.xlu0 %v2204, 123
  %v2459 = vpop.permute.xlu0 %2458
  %2460 = vrot.lane.b32.xlu0 %v2205, 123
  %v2461 = vpop.permute.xlu0 %2460
  %2462 = vrot.lane.b32.xlu0 %v2197, 123
  %v2463 = vpop.permute.xlu0 %2462
  %2464 = vrot.lane.b32.xlu0 %v2230, 123
  %v2465 = vpop.permute.xlu0 %2464
  %2466 = vrot.lane.b32.xlu0 %v2231, 123
  %v2467 = vpop.permute.xlu0 %2466
  %2468 = vrot.lane.b32.xlu0 %v2211, 123
  %v2469 = vpop.permute.xlu0 %2468
  %2470 = vrot.lane.b32.xlu0 %v2232, 123
  %v2471 = vpop.permute.xlu0 %2470
  %2472 = vrot.lane.b32.xlu0 %v2233, 123
  %v2473 = vpop.permute.xlu0 %2472
  %2474 = vrot.lane.b32.xlu0 %v2217, 123
  %v2475 = vpop.permute.xlu0 %2474
  %2476 = vrot.lane.b32.xlu0 %v2234, 123
  %v2477 = vpop.permute.xlu0 %2476
  %2478 = vrot.lane.b32.xlu0 %v2235, 123
  %v2479 = vpop.permute.xlu0 %2478
  %2480 = vrot.lane.b32.xlu0 %v2223, 123
  %v2481 = vpop.permute.xlu0 %2480
  %2482 = vrot.lane.b32.xlu0 %v2236, 123
  %v2483 = vpop.permute.xlu0 %2482
  %2484 = vrot.lane.b32.xlu0 %v2237, 123
  %v2485 = vpop.permute.xlu0 %2484
  %2486 = vrot.lane.b32.xlu0 %v2229, 123
  %v2487 = vpop.permute.xlu0 %2486
  %2488 = vrot.lane.b32.xlu0 %v2262, 123
  %v2489 = vpop.permute.xlu0 %2488
  %2490 = vrot.lane.b32.xlu0 %v2263, 123
  %v2491 = vpop.permute.xlu0 %2490
  %2492 = vrot.lane.b32.xlu0 %v2243, 123
  %v2493 = vpop.permute.xlu0 %2492
  %2494 = vrot.lane.b32.xlu0 %v2264, 123
  %v2495 = vpop.permute.xlu0 %2494
  %2496 = vrot.lane.b32.xlu0 %v2265, 123
  %v2497 = vpop.permute.xlu0 %2496
  %2498 = vrot.lane.b32.xlu0 %v2249, 123
  %v2499 = vpop.permute.xlu0 %2498
  %2500 = vrot.lane.b32.xlu0 %v2266, 123
  %v2501 = vpop.permute.xlu0 %2500
  %2502 = vrot.lane.b32.xlu0 %v2267, 123
  %v2503 = vpop.permute.xlu0 %2502
  %2504 = vrot.lane.b32.xlu0 %v2255, 123
  %v2505 = vpop.permute.xlu0 %2504
  %2506 = vrot.lane.b32.xlu0 %v2268, 123
  %v2507 = vpop.permute.xlu0 %2506
  %2508 = vrot.lane.b32.xlu0 %v2269, 123
  %v2509 = vpop.permute.xlu0 %2508
  %2510 = vrot.lane.b32.xlu0 %v2261, 123
  %v2511 = vpop.permute.xlu0 %2510
  %2512 = vrot.lane.b32.xlu0 %v2294, 123
  %v2513 = vpop.permute.xlu0 %2512
  %2514 = vrot.lane.b32.xlu0 %v2295, 123
  %v2515 = vpop.permute.xlu0 %2514
  %2516 = vrot.lane.b32.xlu0 %v2275, 123
  %v2517 = vpop.permute.xlu0 %2516
  %2518 = vrot.lane.b32.xlu0 %v2296, 123
  %v2519 = vpop.permute.xlu0 %2518
  %2520 = vrot.lane.b32.xlu0 %v2297, 123
  %v2521 = vpop.permute.xlu0 %2520
  %2522 = vrot.lane.b32.xlu0 %v2281, 123
  %v2523 = vpop.permute.xlu0 %2522
  %2524 = vrot.lane.b32.xlu0 %v2298, 123
  %v2525 = vpop.permute.xlu0 %2524
  %2526 = vrot.lane.b32.xlu0 %v2299, 123
  %v2527 = vpop.permute.xlu0 %2526
  %2528 = vrot.lane.b32.xlu0 %v2287, 123
  %v2529 = vpop.permute.xlu0 %2528
  %2530 = vrot.lane.b32.xlu0 %v2300, 123
  %v2531 = vpop.permute.xlu0 %2530
  %2532 = vrot.lane.b32.xlu0 %v2301, 123
  %v2533 = vpop.permute.xlu0 %2532
  %2534 = vrot.lane.b32.xlu0 %v2293, 123
  %v2535 = vpop.permute.xlu0 %2534
  %2536 = vrot.lane.b32.xlu0 %v2326, 123
  %v2537 = vpop.permute.xlu0 %2536
  %2538 = vrot.lane.b32.xlu0 %v2327, 123
  %v2539 = vpop.permute.xlu0 %2538
  %2540 = vrot.lane.b32.xlu0 %v2307, 123
  %v2541 = vpop.permute.xlu0 %2540
  %2542 = vrot.lane.b32.xlu0 %v2328, 123
  %v2543 = vpop.permute.xlu0 %2542
  %2544 = vrot.lane.b32.xlu0 %v2329, 123
  %v2545 = vpop.permute.xlu0 %2544
  %2546 = vrot.lane.b32.xlu0 %v2313, 123
  %v2547 = vpop.permute.xlu0 %2546
  %2548 = vrot.lane.b32.xlu0 %v2330, 123
  %v2549 = vpop.permute.xlu0 %2548
  %2550 = vrot.lane.b32.xlu0 %v2331, 123
  %v2551 = vpop.permute.xlu0 %2550
  %2552 = vrot.lane.b32.xlu0 %v2319, 123
  %v2553 = vpop.permute.xlu0 %2552
  %2554 = vrot.lane.b32.xlu0 %v2332, 123
  %v2555 = vpop.permute.xlu0 %2554
  %2556 = vrot.lane.b32.xlu0 %v2333, 123
  %v2557 = vpop.permute.xlu0 %2556
  %2558 = vrot.lane.b32.xlu0 %v2325, 123
  %v2559 = vpop.permute.xlu0 %2558
  %v2560 = vsel %vm432, %v2345, %v2347
  %v2561 = vsel %vm432, %v2347, %v2349
  %v2562 = vsel %vm432, %v2351, %v2353
  %v2563 = vsel %vm432, %v2353, %v2355
  %v2564 = vsel %vm432, %v2357, %v2359
  %v2565 = vsel %vm432, %v2359, %v2361
  %v2566 = vsel %vm432, %v2363, %v2365
  %v2567 = vsel %vm432, %v2365, %v2367
  %v2568 = vsel %vm432, %v2369, %v2371
  %v2569 = vsel %vm432, %v2371, %v2373
  %v2570 = vsel %vm432, %v2375, %v2377
  %v2571 = vsel %vm432, %v2377, %v2379
  %v2572 = vsel %vm432, %v2381, %v2383
  %v2573 = vsel %vm432, %v2383, %v2385
  %v2574 = vsel %vm432, %v2387, %v2389
  %v2575 = vsel %vm432, %v2389, %v2391
  %v2576 = vsel %vm432, %v2393, %v2395
  %v2577 = vsel %vm432, %v2395, %v2397
  %v2578 = vsel %vm432, %v2399, %v2401
  %v2579 = vsel %vm432, %v2401, %v2403
  %v2580 = vsel %vm432, %v2405, %v2407
  %v2581 = vsel %vm432, %v2407, %v2409
  %v2582 = vsel %vm432, %v2411, %v2413
  %v2583 = vsel %vm432, %v2413, %v2415
  %v2584 = vsel %vm432, %v2417, %v2419
  %v2585 = vsel %vm432, %v2419, %v2421
  %v2586 = vsel %vm432, %v2423, %v2425
  %v2587 = vsel %vm432, %v2425, %v2427
  %v2588 = vsel %vm432, %v2429, %v2431
  %v2589 = vsel %vm432, %v2431, %v2433
  %v2590 = vsel %vm432, %v2435, %v2437
  %v2591 = vsel %vm432, %v2437, %v2439
  %v2592 = vsel %vm432, %v2441, %v2443
  %v2593 = vsel %vm432, %v2443, %v2445
  %v2594 = vsel %vm432, %v2447, %v2449
  %v2595 = vsel %vm432, %v2449, %v2451
  %v2596 = vsel %vm432, %v2453, %v2455
  %v2597 = vsel %vm432, %v2455, %v2457
  %v2598 = vsel %vm432, %v2459, %v2461
  %v2599 = vsel %vm432, %v2461, %v2463
  %v2600 = vsel %vm432, %v2465, %v2467
  %v2601 = vsel %vm432, %v2467, %v2469
  %v2602 = vsel %vm432, %v2471, %v2473
  %v2603 = vsel %vm432, %v2473, %v2475
  %v2604 = vsel %vm432, %v2477, %v2479
  %v2605 = vsel %vm432, %v2479, %v2481
  %v2606 = vsel %vm432, %v2483, %v2485
  %v2607 = vsel %vm432, %v2485, %v2487
  %v2608 = vsel %vm432, %v2489, %v2491
  %v2609 = vsel %vm432, %v2491, %v2493
  %v2610 = vsel %vm432, %v2495, %v2497
  %v2611 = vsel %vm432, %v2497, %v2499
  %v2612 = vsel %vm432, %v2501, %v2503
  %v2613 = vsel %vm432, %v2503, %v2505
  %v2614 = vsel %vm432, %v2507, %v2509
  %v2615 = vsel %vm432, %v2509, %v2511
  %v2616 = vsel %vm432, %v2513, %v2515
  %v2617 = vsel %vm432, %v2515, %v2517
  %v2618 = vsel %vm432, %v2519, %v2521
  %v2619 = vsel %vm432, %v2521, %v2523
  %v2620 = vsel %vm432, %v2525, %v2527
  %v2621 = vsel %vm432, %v2527, %v2529
  %v2622 = vsel %vm432, %v2531, %v2533
  %v2623 = vsel %vm432, %v2533, %v2535
  %v2624 = vsel %vm432, %v2537, %v2539
  %v2625 = vsel %vm432, %v2539, %v2541
  %v2626 = vsel %vm432, %v2543, %v2545
  %v2627 = vsel %vm432, %v2545, %v2547
  %v2628 = vsel %vm432, %v2549, %v2551
  %v2629 = vsel %vm432, %v2551, %v2553
  %v2630 = vsel %vm432, %v2555, %v2557
  %v2631 = vsel %vm432, %v2557, %v2559
  %v2705 = vsel %vm39, %v2022, 0
  %v2708 = vsel %vm39, %v2025, 0
  %2710 = vmatpush.msra.mxu0 %v2590
  %2711 = vmatpush.msra.mxu0 %v2588
  %2712 = vmatpush.msra.mxu0 %v2586
  %2713 = vmatpush.msra.mxu0 %v2584
  %2714 = vmatpush.msra.mxu0 %v2582
  %2715 = vmatpush.msra.mxu0 %v2580
  %2716 = vmatpush.msra.mxu0 %v2578
  %2717 = vmatpush.msra.mxu0 %v2576
  %2718 = vmatpush.msra.mxu0 %v2574
  %2719 = vmatpush.msra.mxu0 %v2572
  %2720 = vmatpush.msra.mxu0 %v2570
  %2721 = vmatpush.msra.mxu0 %v2568
  %2722 = vmatpush.msra.mxu0 %v2566
  %2723 = vmatpush.msra.mxu0 %v2564
  %2724 = vmatpush.msra.mxu0 %v2562
  %2725 = vmatpush.msra.mxu0 %v2560
  %2726 = vmatmul.f32.gmra.mxu0 %v2020
  %v2727 = vpop.f32.mrf.mxu0
  %v2728 = vadd.f32 %v2337, %v2727
  %2729 = vmatmul.f32.gmra.mxu0 %v2023
  %v2730 = vpop.f32.mrf.mxu0
  %v2731 = vadd.f32 %v2342, %v2730
  %2732 = vdwg.mxu0
  %2733 = vmatpush.msra.mxu0 %v2622
  %2734 = vmatpush.msra.mxu0 %v2620
  %2735 = vmatpush.msra.mxu0 %v2618
  %2736 = vmatpush.msra.mxu0 %v2616
  %2737 = vmatpush.msra.mxu0 %v2614
  %2738 = vmatpush.msra.mxu0 %v2612
  %2739 = vmatpush.msra.mxu0 %v2610
  %2740 = vmatpush.msra.mxu0 %v2608
  %2741 = vmatpush.msra.mxu0 %v2606
  %2742 = vmatpush.msra.mxu0 %v2604
  %2743 = vmatpush.msra.mxu0 %v2602
  %2744 = vmatpush.msra.mxu0 %v2600
  %2745 = vmatpush.msra.mxu0 %v2598
  %2746 = vmatpush.msra.mxu0 %v2596
  %2747 = vmatpush.msra.mxu0 %v2594
  %2748 = vmatpush.msra.mxu0 %v2592
  %2749 = vmatmul.f32.gmra.mxu0 %v2021
  %v2750 = vpop.f32.mrf.mxu0
  %v2751 = vadd.f32 %v2728, %v2750
  %2752 = vmatmul.f32.gmra.mxu0 %v2024
  %v2753 = vpop.f32.mrf.mxu0
  %v2754 = vadd.f32 %v2731, %v2753
  %2755 = vdwg.mxu0
  %2756 = vmatpush.msra.mxu0 0.0
  %2757 = vmatpush.msra.mxu0 0.0
  %2758 = vmatpush.msra.mxu0 0.0
  %2759 = vmatpush.msra.mxu0 0.0
  %2760 = vmatpush.msra.mxu0 0.0
  %2761 = vmatpush.msra.mxu0 0.0
  %2762 = vmatpush.msra.mxu0 0.0
  %2763 = vmatpush.msra.mxu0 0.0
  %2764 = vmatpush.msra.mxu0 0.0
  %2765 = vmatpush.msra.mxu0 0.0
  %2766 = vmatpush.msra.mxu0 0.0
  %2767 = vmatpush.msra.mxu0 0.0
  %2768 = vmatpush.msra.mxu0 %v2630
  %2769 = vmatpush.msra.mxu0 %v2628
  %2770 = vmatpush.msra.mxu0 %v2626
  %2771 = vmatpush.msra.mxu0 %v2624
  %2772 = vmatmul.f32.gmra.mxu0 %v2705
  %v2773 = vpop.f32.mrf.mxu0
  %v2774 = vadd.f32 %v2751, %v2773
  %2775 = vmatmul.f32.gmra.mxu0 %v2708
  %v2776 = vpop.f32.mrf.mxu0
  %v2777 = vadd.f32 %v2754, %v2776
  %2778 = vdwg.mxu0
  %2779 = vmatpush.msra.mxu0 %v2591
  %2780 = vmatpush.msra.mxu0 %v2589
  %2781 = vmatpush.msra.mxu0 %v2587
  %2782 = vmatpush.msra.mxu0 %v2585
  %2783 = vmatpush.msra.mxu0 %v2583
  %2784 = vmatpush.msra.mxu0 %v2581
  %2785 = vmatpush.msra.mxu0 %v2579
  %2786 = vmatpush.msra.mxu0 %v2577
  %2787 = vmatpush.msra.mxu0 %v2575
  %2788 = vmatpush.msra.mxu0 %v2573
  %2789 = vmatpush.msra.mxu0 %v2571
  %2790 = vmatpush.msra.mxu0 %v2569
  %2791 = vmatpush.msra.mxu0 %v2567
  %2792 = vmatpush.msra.mxu0 %v2565
  %2793 = vmatpush.msra.mxu0 %v2563
  %2794 = vmatpush.msra.mxu0 %v2561
  %2795 = vmatmul.f32.gmra.mxu0 %v2020
  %v2796 = vpop.f32.mrf.mxu0
  %v2797 = vadd.f32 %v2337, %v2796
  %2798 = vmatmul.f32.gmra.mxu0 %v2023
  %v2799 = vpop.f32.mrf.mxu0
  %v2800 = vadd.f32 %v2342, %v2799
  %2801 = vdwg.mxu0
  %2802 = vmatpush.msra.mxu0 %v2623
  %2803 = vmatpush.msra.mxu0 %v2621
  %2804 = vmatpush.msra.mxu0 %v2619
  %2805 = vmatpush.msra.mxu0 %v2617
  %2806 = vmatpush.msra.mxu0 %v2615
  %2807 = vmatpush.msra.mxu0 %v2613
  %2808 = vmatpush.msra.mxu0 %v2611
  %2809 = vmatpush.msra.mxu0 %v2609
  %2810 = vmatpush.msra.mxu0 %v2607
  %2811 = vmatpush.msra.mxu0 %v2605
  %2812 = vmatpush.msra.mxu0 %v2603
  %2813 = vmatpush.msra.mxu0 %v2601
  %2814 = vmatpush.msra.mxu0 %v2599
  %2815 = vmatpush.msra.mxu0 %v2597
  %2816 = vmatpush.msra.mxu0 %v2595
  %2817 = vmatpush.msra.mxu0 %v2593
  %2818 = vmatmul.f32.gmra.mxu0 %v2021
  %v2819 = vpop.f32.mrf.mxu0
  %v2820 = vadd.f32 %v2797, %v2819
  %2821 = vmatmul.f32.gmra.mxu0 %v2024
  %v2822 = vpop.f32.mrf.mxu0
  %v2823 = vadd.f32 %v2800, %v2822
  %2824 = vdwg.mxu0
  %2825 = vmatpush.msra.mxu0 0.0
  %2826 = vmatpush.msra.mxu0 0.0
  %2827 = vmatpush.msra.mxu0 0.0
  %2828 = vmatpush.msra.mxu0 0.0
  %2829 = vmatpush.msra.mxu0 0.0
  %2830 = vmatpush.msra.mxu0 0.0
  %2831 = vmatpush.msra.mxu0 0.0
  %2832 = vmatpush.msra.mxu0 0.0
  %2833 = vmatpush.msra.mxu0 0.0
  %2834 = vmatpush.msra.mxu0 0.0
  %2835 = vmatpush.msra.mxu0 0.0
  %2836 = vmatpush.msra.mxu0 0.0
  %2837 = vmatpush.msra.mxu0 %v2631
  %2838 = vmatpush.msra.mxu0 %v2629
  %2839 = vmatpush.msra.mxu0 %v2627
  %2840 = vmatpush.msra.mxu0 %v2625
  %2841 = vmatmul.f32.gmra.mxu0 %v2705
  %v2842 = vpop.f32.mrf.mxu0
  %v2843 = vadd.f32 %v2820, %v2842
  %2844 = vmatmul.f32.gmra.mxu0 %v2708
  %v2845 = vpop.f32.mrf.mxu0
  %v2846 = vadd.f32 %v2823, %v2845
  %2847 = vdwg.mxu0
  %v2848 = vmul.f32 %v2774, 0.5263158
  %v2849 = vmul.f32 %v2843, 0.5263158
  %v2850 = vand.u32 2147483647, %v2848
  %v2851 = vand.u32 2147483647, %v2849
  %v2852 = vmax.f32 %v2850, 1.0
  %v2853 = vmax.f32 %v2851, 1.0
  %v2854 = vrcp.pop %v2852
  %v2855 = vrcp.pop %v2853
  %v2856 = vmul.f32 %v2852, %v2854
  %v2857 = vmul.f32 %v2853, %v2855
  %v2858 = vsub.f32 2.0, %v2856
  %v2859 = vsub.f32 2.0, %v2857
  %v2860 = vmul.f32 %v2854, %v2858
  %v2861 = vmul.f32 %v2855, %v2859
  %vm2862 = vcmp.gt.f32.partialorder %v2850, 1.0
  %vm2863 = vcmp.gt.f32.partialorder %v2851, 1.0
  %v2864 = vsel %vm2862, %v2860, %v2850
  %v2865 = vsel %vm2863, %v2861, %v2851
  %v2866 = vmul.f32 %v2864, %v2864
  %v2867 = vmul.f32 %v2865, %v2865
  %v2868 = vmul.f32 %v2866, 0.0208351
  %v2869 = vmul.f32 %v2867, 0.0208351
  %v2870 = vadd.f32 %v2868, -0.085133
  %v2871 = vadd.f32 %v2869, -0.085133
  %v2872 = vmul.f32 %v2866, %v2870
  %v2873 = vmul.f32 %v2867, %v2871
  %v2874 = vadd.f32 %v2872, 0.180141
  %v2875 = vadd.f32 %v2873, 0.180141
  %v2876 = vmul.f32 %v2866, %v2874
  %v2877 = vmul.f32 %v2867, %v2875
  %v2878 = vadd.f32 %v2876, -0.3302995
  %v2879 = vadd.f32 %v2877, -0.3302995
  %v2880 = vmul.f32 %v2866, %v2878
  %v2881 = vmul.f32 %v2867, %v2879
  %v2882 = vadd.f32 %v2880, 0.999866
  %v2883 = vadd.f32 %v2881, 0.999866
  %v2884 = vmul.f32 %v2864, %v2882
  %v2885 = vmul.f32 %v2865, %v2883
  %v2886 = vsub.f32 1.5707964, %v2884
  %v2887 = vsub.f32 1.5707964, %v2885
  %v2888 = vsel %vm2862, %v2886, %v2884
  %v2889 = vsel %vm2863, %v2887, %v2885
  %vm2890 = vcmp.lt.f32.partialorder %v2848, 0.0
  %vm2891 = vcmp.lt.f32.partialorder %v2849, 0.0
  %v2892 = vsub.f32 0.0, %v2888
  %v2893 = vsub.f32 0.0, %v2889
  %v2894 = vsel %vm2890, %v2892, %v2888
  %v2895 = vsel %vm2891, %v2893, %v2889
  %v2896 = vmul.f32 %v2894, 1.2084
  %v2897 = vmul.f32 %v2895, 1.2084
  %v2898 = vmul.f32 %v2896, 1.442695
  %v2899 = vpow.pop %v2898
  %v2900 = vmul.f32 %v2897, 1.442695
  %v2901 = vpow.pop %v2900
  %v2902 = vmul.f32 %v2899, %v200
  %v2903 = vmul.f32 %v2901, %v223
  %v2904 = vadd.f32 %v2902, %v2777
  %v2905 = vadd.f32 %v2903, %v2846
  %v2906 = vmul.f32 %v2904, %v607
  %v2907 = vmul.f32 %v2905, %v608
  %s2908 = scalar_lea.vmem %s2, 16
  %v2909 = vld [vmem:[%s2908] sm:$0xff]
  %v2910 = vld [vmem:[%s2908 + $0x8] sm:$0xff]
  %v2912 = vsel %vm91, %v2909, 0
  %v2915 = vsel %vm91, %v2910, 0
  %2917 = vmatpush.msra.mxu0 0.0
  %2918 = vmatpush.msra.mxu0 0.0
  %2919 = vmatpush.msra.mxu0 0.0
  %2920 = vmatpush.msra.mxu0 0.0
  %2921 = vmatpush.msra.mxu0 0.0
  %2922 = vmatpush.msra.mxu0 0.0
  %2923 = vmatpush.msra.mxu0 0.0
  %2924 = vmatpush.msra.mxu0 0.0
  %2925 = vmatpush.msra.mxu0 0.0
  %2926 = vmatpush.msra.mxu0 0.0
  %2927 = vmatpush.msra.mxu0 0.0
  %2928 = vmatpush.msra.mxu0 0.0
  %2929 = vmatpush.msra.mxu0 0.0
  %2930 = vmatpush.msra.mxu0 0.0
  %2931 = vmatpush.msra.mxu0 %v2906
  %2932 = vmatpush.msra.mxu0 %v1609
  %2933 = vmatmul.f32.gmra.mxu0 %v2912
  %v2934 = vpop.f32.mrf.mxu0
  %v2935 = vadd.f32 0.0, %v2934
  %2936 = vmatmul.f32.gmra.mxu0 %v2915
  %v2937 = vpop.f32.mrf.mxu0
  %v2938 = vadd.f32 0.0, %v2937
  %2939 = vdwg.mxu0
  %2940 = vmatpush.msra.mxu0 0.0
  %2941 = vmatpush.msra.mxu0 0.0
  %2942 = vmatpush.msra.mxu0 0.0
  %2943 = vmatpush.msra.mxu0 0.0
  %2944 = vmatpush.msra.mxu0 0.0
  %2945 = vmatpush.msra.mxu0 0.0
  %2946 = vmatpush.msra.mxu0 0.0
  %2947 = vmatpush.msra.mxu0 0.0
  %2948 = vmatpush.msra.mxu0 0.0
  %2949 = vmatpush.msra.mxu0 0.0
  %2950 = vmatpush.msra.mxu0 0.0
  %2951 = vmatpush.msra.mxu0 0.0
  %2952 = vmatpush.msra.mxu0 0.0
  %2953 = vmatpush.msra.mxu0 0.0
  %2954 = vmatpush.msra.mxu0 %v2907
  %2955 = vmatpush.msra.mxu0 %v1610
  %2956 = vmatmul.f32.gmra.mxu0 %v2912
  %v2957 = vpop.f32.mrf.mxu0
  %v2958 = vadd.f32 0.0, %v2957
  %2959 = vmatmul.f32.gmra.mxu0 %v2915
  %v2960 = vpop.f32.mrf.mxu0
  %v2961 = vadd.f32 0.0, %v2960
  %2962 = vdwg.mxu0
  %2965 = vrot.lane.b32.xlu0 %v2938, 16
  %v2966 = vpop.permute.xlu0 %2965
  %2967 = vrot.lane.b32.xlu0 %v2961, 16
  %v2968 = vpop.permute.xlu0 %2967
  %v2969 = vsel %vm91, %v2966, %v2968
  %v2972 = vsel %vm91, 0.0, %v2966
  %v2973 = vsel %vm91, %v2968, 0.0
  %2976 = vrot.lane.b32.xlu0 %v2972, 127
  %v2977 = vpop.permute.xlu0 %2976
  %2978 = vrot.lane.b32.xlu0 %v2969, 127
  %v2979 = vpop.permute.xlu0 %2978
  %2980 = vrot.lane.b32.xlu0 %v2973, 127
  %v2981 = vpop.permute.xlu0 %2980
  %v2982 = vsel %vm105, %v2977, %v2979
  %v2983 = vsel %vm105, %v2979, %v2981
  %2984 = vrot.lane.b32.xlu0 %v2972, 126
  %v2985 = vpop.permute.xlu0 %2984
  %2986 = vrot.lane.b32.xlu0 %v2969, 126
  %v2987 = vpop.permute.xlu0 %2986
  %2988 = vrot.lane.b32.xlu0 %v2973, 126
  %v2989 = vpop.permute.xlu0 %2988
  %v2990 = vsel %vm114, %v2985, %v2987
  %v2991 = vsel %vm114, %v2987, %v2989
  %2992 = vrot.lane.b32.xlu0 %v2972, 118
  %v2993 = vpop.permute.xlu0 %2992
  %2994 = vrot.lane.b32.xlu0 %v2969, 118
  %v2995 = vpop.permute.xlu0 %2994
  %2996 = vrot.lane.b32.xlu0 %v2973, 118
  %v2997 = vpop.permute.xlu0 %2996
  %v2998 = vsel %vm123, %v2993, %v2995
  %v2999 = vsel %vm123, %v2995, %v2997
  %3000 = vrot.lane.b32.xlu0 %v2972, 117
  %v3001 = vpop.permute.xlu0 %3000
  %3002 = vrot.lane.b32.xlu0 %v2969, 117
  %v3003 = vpop.permute.xlu0 %3002
  %3004 = vrot.lane.b32.xlu0 %v2973, 117
  %v3005 = vpop.permute.xlu0 %3004
  %v3006 = vsel %vm132, %v3001, %v3003
  %v3007 = vsel %vm132, %v3003, %v3005
  %3008 = vrot.lane.b32.xlu0 %v2972, 116
  %v3009 = vpop.permute.xlu0 %3008
  %3010 = vrot.lane.b32.xlu0 %v2969, 116
  %v3011 = vpop.permute.xlu0 %3010
  %3012 = vrot.lane.b32.xlu0 %v2973, 116
  %v3013 = vpop.permute.xlu0 %3012
  %v3014 = vsel %vm141, %v3009, %v3011
  %v3015 = vsel %vm141, %v3011, %v3013
  %3016 = vrot.lane.b32.xlu0 %v2972, 108
  %v3017 = vpop.permute.xlu0 %3016
  %3018 = vrot.lane.b32.xlu0 %v2969, 108
  %v3019 = vpop.permute.xlu0 %3018
  %3020 = vrot.lane.b32.xlu0 %v2973, 108
  %v3021 = vpop.permute.xlu0 %3020
  %v3022 = vsel %vm150, %v3017, %v3019
  %v3023 = vsel %vm150, %v3019, %v3021
  %3024 = vrot.lane.b32.xlu0 %v2972, 107
  %v3025 = vpop.permute.xlu0 %3024
  %3026 = vrot.lane.b32.xlu0 %v2969, 107
  %v3027 = vpop.permute.xlu0 %3026
  %3028 = vrot.lane.b32.xlu0 %v2973, 107
  %v3029 = vpop.permute.xlu0 %3028
  %v3030 = vsel %vm159, %v3025, %v3027
  %v3031 = vsel %vm159, %v3027, %v3029
  %3032 = vrot.lane.b32.xlu0 %v2972, 106
  %v3033 = vpop.permute.xlu0 %3032
  %3034 = vrot.lane.b32.xlu0 %v2969, 106
  %v3035 = vpop.permute.xlu0 %3034
  %3036 = vrot.lane.b32.xlu0 %v2973, 106
  %v3037 = vpop.permute.xlu0 %3036
  %v3038 = vsel %vm168, %v3033, %v3035
  %v3039 = vsel %vm168, %v3035, %v3037
  %s3040 = scalar_lea.vmem %s6, 128
  %v3041 = vld [vmem:[%s3040] sm:$0xff]
  %v3042 = vld [vmem:[%s3040 + $0x8] sm:$0xff]
  %v3043 = vld [vmem:[%s3040 + $0x10] sm:$0xff]
  %v3044 = vld [vmem:[%s3040 + $0x18] sm:$0xff]
  %v3045 = vld [vmem:[%s3040 + $0x20] sm:$0xff]
  %v3046 = vld [vmem:[%s3040 + $0x28] sm:$0xff]
  %v3047 = vld [vmem:[%s3040 + $0x30] sm:$0xff]
  %v3048 = vld [vmem:[%s3040 + $0x38] sm:$0xff]
  %s3049 = scalar_lea.vmem %s3, 64
  %v3050 = vld [vmem:[%s3049] sm:$0xff]
  %v3051 = vld [vmem:[%s3049 + $0x8] sm:$0xff]
  %v3052 = vld [vmem:[%s3049 + $0x10] sm:$0xff]
  %v3053 = vld [vmem:[%s3049 + $0x18] sm:$0xff]
  %3055 = vset.pattern.permute.xlu0 0
  %3056 = vperm.xlu0 %3055, %v3041
  %v3057 = vpop.permute.xlu0 %3056
  %3060 = vset.pattern.permute.xlu0 0
  %3061 = vperm.xlu0 %3060, %v3042
  %v3062 = vpop.permute.xlu0 %3061
  %3064 = vrot.lane.b32.xlu0 %v2972, 123
  %v3065 = vpop.permute.xlu0 %3064
  %3066 = vrot.lane.b32.xlu0 %v2969, 123
  %v3067 = vpop.permute.xlu0 %3066
  %3068 = vrot.lane.b32.xlu0 %v2973, 123
  %v3069 = vpop.permute.xlu0 %3068
  %3070 = vrot.lane.b32.xlu0 %v2982, 123
  %v3071 = vpop.permute.xlu0 %3070
  %3072 = vrot.lane.b32.xlu0 %v2983, 123
  %v3073 = vpop.permute.xlu0 %3072
  %3074 = vrot.lane.b32.xlu0 %v2981, 123
  %v3075 = vpop.permute.xlu0 %3074
  %3076 = vrot.lane.b32.xlu0 %v2990, 123
  %v3077 = vpop.permute.xlu0 %3076
  %3078 = vrot.lane.b32.xlu0 %v2991, 123
  %v3079 = vpop.permute.xlu0 %3078
  %3080 = vrot.lane.b32.xlu0 %v2989, 123
  %v3081 = vpop.permute.xlu0 %3080
  %3082 = vrot.lane.b32.xlu0 %v2998, 123
  %v3083 = vpop.permute.xlu0 %3082
  %3084 = vrot.lane.b32.xlu0 %v2999, 123
  %v3085 = vpop.permute.xlu0 %3084
  %3086 = vrot.lane.b32.xlu0 %v2997, 123
  %v3087 = vpop.permute.xlu0 %3086
  %3088 = vrot.lane.b32.xlu0 %v3006, 123
  %v3089 = vpop.permute.xlu0 %3088
  %3090 = vrot.lane.b32.xlu0 %v3007, 123
  %v3091 = vpop.permute.xlu0 %3090
  %3092 = vrot.lane.b32.xlu0 %v3005, 123
  %v3093 = vpop.permute.xlu0 %3092
  %3094 = vrot.lane.b32.xlu0 %v3014, 123
  %v3095 = vpop.permute.xlu0 %3094
  %3096 = vrot.lane.b32.xlu0 %v3015, 123
  %v3097 = vpop.permute.xlu0 %3096
  %3098 = vrot.lane.b32.xlu0 %v3013, 123
  %v3099 = vpop.permute.xlu0 %3098
  %3100 = vrot.lane.b32.xlu0 %v3022, 123
  %v3101 = vpop.permute.xlu0 %3100
  %3102 = vrot.lane.b32.xlu0 %v3023, 123
  %v3103 = vpop.permute.xlu0 %3102
  %3104 = vrot.lane.b32.xlu0 %v3021, 123
  %v3105 = vpop.permute.xlu0 %3104
  %3106 = vrot.lane.b32.xlu0 %v3030, 123
  %v3107 = vpop.permute.xlu0 %3106
  %3108 = vrot.lane.b32.xlu0 %v3031, 123
  %v3109 = vpop.permute.xlu0 %3108
  %3110 = vrot.lane.b32.xlu0 %v3029, 123
  %v3111 = vpop.permute.xlu0 %3110
  %3112 = vrot.lane.b32.xlu0 %v3038, 123
  %v3113 = vpop.permute.xlu0 %3112
  %3114 = vrot.lane.b32.xlu0 %v3039, 123
  %v3115 = vpop.permute.xlu0 %3114
  %3116 = vrot.lane.b32.xlu0 %v3037, 123
  %v3117 = vpop.permute.xlu0 %3116
  %v3118 = vsel %vm432, %v3065, %v3067
  %v3119 = vsel %vm432, %v3067, %v3069
  %v3120 = vsel %vm432, %v3071, %v3073
  %v3121 = vsel %vm432, %v3073, %v3075
  %v3122 = vsel %vm432, %v3077, %v3079
  %v3123 = vsel %vm432, %v3079, %v3081
  %v3124 = vsel %vm432, %v3083, %v3085
  %v3125 = vsel %vm432, %v3085, %v3087
  %v3126 = vsel %vm432, %v3089, %v3091
  %v3127 = vsel %vm432, %v3091, %v3093
  %v3128 = vsel %vm432, %v3095, %v3097
  %v3129 = vsel %vm432, %v3097, %v3099
  %v3130 = vsel %vm432, %v3101, %v3103
  %v3131 = vsel %vm432, %v3103, %v3105
  %v3132 = vsel %vm432, %v3107, %v3109
  %v3133 = vsel %vm432, %v3109, %v3111
  %v3134 = vsel %vm432, %v3113, %v3115
  %v3135 = vsel %vm432, %v3115, %v3117
  %v3155 = vsel %vm91, %v3051, 0
  %v3158 = vsel %vm91, %v3053, 0
  %3160 = vmatpush.msra.mxu0 %v463
  %3161 = vmatpush.msra.mxu0 %v461
  %3162 = vmatpush.msra.mxu0 %v459
  %3163 = vmatpush.msra.mxu0 %v457
  %3164 = vmatpush.msra.mxu0 %v455
  %3165 = vmatpush.msra.mxu0 %v453
  %3166 = vmatpush.msra.mxu0 %v451
  %3167 = vmatpush.msra.mxu0 %v3134
  %3168 = vmatpush.msra.mxu0 %v3132
  %3169 = vmatpush.msra.mxu0 %v3130
  %3170 = vmatpush.msra.mxu0 %v3128
  %3171 = vmatpush.msra.mxu0 %v3126
  %3172 = vmatpush.msra.mxu0 %v3124
  %3173 = vmatpush.msra.mxu0 %v3122
  %3174 = vmatpush.msra.mxu0 %v3120
  %3175 = vmatpush.msra.mxu0 %v3118
  %3176 = vmatmul.f32.gmra.mxu0 %v3050
  %v3177 = vpop.f32.mrf.mxu0
  %v3178 = vadd.f32 %v3057, %v3177
  %3179 = vmatmul.f32.gmra.mxu0 %v3052
  %v3180 = vpop.f32.mrf.mxu0
  %v3181 = vadd.f32 %v3062, %v3180
  %3182 = vdwg.mxu0
  %3183 = vmatpush.msra.mxu0 0.0
  %3184 = vmatpush.msra.mxu0 0.0
  %3185 = vmatpush.msra.mxu0 0.0
  %3186 = vmatpush.msra.mxu0 0.0
  %3187 = vmatpush.msra.mxu0 0.0
  %3188 = vmatpush.msra.mxu0 0.0
  %3189 = vmatpush.msra.mxu0 0.0
  %3190 = vmatpush.msra.mxu0 0.0
  %3191 = vmatpush.msra.mxu0 0.0
  %3192 = vmatpush.msra.mxu0 0.0
  %3193 = vmatpush.msra.mxu0 0.0
  %3194 = vmatpush.msra.mxu0 0.0
  %3195 = vmatpush.msra.mxu0 0.0
  %3196 = vmatpush.msra.mxu0 0.0
  %3197 = vmatpush.msra.mxu0 %v467
  %3198 = vmatpush.msra.mxu0 %v465
  %3199 = vmatmul.f32.gmra.mxu0 %v3155
  %v3200 = vpop.f32.mrf.mxu0
  %v3201 = vadd.f32 %v3178, %v3200
  %3202 = vmatmul.f32.gmra.mxu0 %v3158
  %v3203 = vpop.f32.mrf.mxu0
  %v3204 = vadd.f32 %v3181, %v3203
  %3205 = vdwg.mxu0
  %3206 = vmatpush.msra.mxu0 %v464
  %3207 = vmatpush.msra.mxu0 %v462
  %3208 = vmatpush.msra.mxu0 %v460
  %3209 = vmatpush.msra.mxu0 %v458
  %3210 = vmatpush.msra.mxu0 %v456
  %3211 = vmatpush.msra.mxu0 %v454
  %3212 = vmatpush.msra.mxu0 %v452
  %3213 = vmatpush.msra.mxu0 %v3135
  %3214 = vmatpush.msra.mxu0 %v3133
  %3215 = vmatpush.msra.mxu0 %v3131
  %3216 = vmatpush.msra.mxu0 %v3129
  %3217 = vmatpush.msra.mxu0 %v3127
  %3218 = vmatpush.msra.mxu0 %v3125
  %3219 = vmatpush.msra.mxu0 %v3123
  %3220 = vmatpush.msra.mxu0 %v3121
  %3221 = vmatpush.msra.mxu0 %v3119
  %3222 = vmatmul.f32.gmra.mxu0 %v3050
  %v3223 = vpop.f32.mrf.mxu0
  %v3224 = vadd.f32 %v3057, %v3223
  %3225 = vmatmul.f32.gmra.mxu0 %v3052
  %v3226 = vpop.f32.mrf.mxu0
  %v3227 = vadd.f32 %v3062, %v3226
  %3228 = vdwg.mxu0
  %3229 = vmatpush.msra.mxu0 0.0
  %3230 = vmatpush.msra.mxu0 0.0
  %3231 = vmatpush.msra.mxu0 0.0
  %3232 = vmatpush.msra.mxu0 0.0
  %3233 = vmatpush.msra.mxu0 0.0
  %3234 = vmatpush.msra.mxu0 0.0
  %3235 = vmatpush.msra.mxu0 0.0
  %3236 = vmatpush.msra.mxu0 0.0
  %3237 = vmatpush.msra.mxu0 0.0
  %3238 = vmatpush.msra.mxu0 0.0
  %3239 = vmatpush.msra.mxu0 0.0
  %3240 = vmatpush.msra.mxu0 0.0
  %3241 = vmatpush.msra.mxu0 0.0
  %3242 = vmatpush.msra.mxu0 0.0
  %3243 = vmatpush.msra.mxu0 %v468
  %3244 = vmatpush.msra.mxu0 %v466
  %3245 = vmatmul.f32.gmra.mxu0 %v3155
  %v3246 = vpop.f32.mrf.mxu0
  %v3247 = vadd.f32 %v3224, %v3246
  %3248 = vmatmul.f32.gmra.mxu0 %v3158
  %v3249 = vpop.f32.mrf.mxu0
  %v3250 = vadd.f32 %v3227, %v3249
  %3251 = vdwg.mxu0
  %v3252 = vmax.f32 %v3201, 0.0
  %v3253 = vmax.f32 %v3247, 0.0
  %v3254 = vmax.f32 %v3204, 0.0
  %v3255 = vmax.f32 %v3250, 0.0
  %v3256 = vmul.f32 %v3252, %v607
  %v3257 = vmul.f32 %v3253, %v608
  %v3258 = vmul.f32 %v3254, %v607
  %v3259 = vmul.f32 %v3255, %v608
  %s3260 = scalar_lea.vmem %s4, 64
  %v3261 = vld [vmem:[%s3260] sm:$0xff]
  %v3262 = vld [vmem:[%s3260 + $0x8] sm:$0xff]
  %v3263 = vld [vmem:[%s3260 + $0x10] sm:$0xff]
  %v3264 = vld [vmem:[%s3260 + $0x18] sm:$0xff]
  %3266 = vset.pattern.permute.xlu0 0
  %3267 = vperm.xlu0 %3266, %v3043
  %v3268 = vpop.permute.xlu0 %3267
  %3271 = vset.pattern.permute.xlu0 0
  %3272 = vperm.xlu0 %3271, %v3044
  %v3273 = vpop.permute.xlu0 %3272
  %3276 = vset.pattern.permute.xlu0 0
  %3277 = vperm.xlu0 %3276, %v3045
  %v3278 = vpop.permute.xlu0 %3277
  %3281 = vset.pattern.permute.xlu0 0
  %3282 = vperm.xlu0 %3281, %v3046
  %v3283 = vpop.permute.xlu0 %3282
  %v3286 = vsel %vm91, %v3261, 0
  %v3289 = vsel %vm91, %v3262, 0
  %v3292 = vsel %vm91, %v3263, 0
  %v3295 = vsel %vm91, %v3264, 0
  %3297 = vmatpush.msra.mxu0 0.0
  %3298 = vmatpush.msra.mxu0 0.0
  %3299 = vmatpush.msra.mxu0 0.0
  %3300 = vmatpush.msra.mxu0 0.0
  %3301 = vmatpush.msra.mxu0 0.0
  %3302 = vmatpush.msra.mxu0 0.0
  %3303 = vmatpush.msra.mxu0 0.0
  %3304 = vmatpush.msra.mxu0 0.0
  %3305 = vmatpush.msra.mxu0 0.0
  %3306 = vmatpush.msra.mxu0 0.0
  %3307 = vmatpush.msra.mxu0 0.0
  %3308 = vmatpush.msra.mxu0 0.0
  %3309 = vmatpush.msra.mxu0 0.0
  %3310 = vmatpush.msra.mxu0 0.0
  %3311 = vmatpush.msra.mxu0 %v3258
  %3312 = vmatpush.msra.mxu0 %v3256
  %3313 = vmatmul.f32.gmra.mxu0 %v3286
  %v3314 = vpop.f32.mrf.mxu0
  %v3315 = vadd.f32 %v3268, %v3314
  %3316 = vmatmul.f32.gmra.mxu0 %v3289
  %v3317 = vpop.f32.mrf.mxu0
  %v3318 = vadd.f32 %v3273, %v3317
  %3319 = vmatmul.f32.gmra.mxu0 %v3292
  %v3320 = vpop.f32.mrf.mxu0
  %v3321 = vadd.f32 %v3278, %v3320
  %3322 = vmatmul.f32.gmra.mxu0 %v3295
  %v3323 = vpop.f32.mrf.mxu0
  %v3324 = vadd.f32 %v3283, %v3323
  %3325 = vdwg.mxu0
  %3326 = vmatpush.msra.mxu0 0.0
  %3327 = vmatpush.msra.mxu0 0.0
  %3328 = vmatpush.msra.mxu0 0.0
  %3329 = vmatpush.msra.mxu0 0.0
  %3330 = vmatpush.msra.mxu0 0.0
  %3331 = vmatpush.msra.mxu0 0.0
  %3332 = vmatpush.msra.mxu0 0.0
  %3333 = vmatpush.msra.mxu0 0.0
  %3334 = vmatpush.msra.mxu0 0.0
  %3335 = vmatpush.msra.mxu0 0.0
  %3336 = vmatpush.msra.mxu0 0.0
  %3337 = vmatpush.msra.mxu0 0.0
  %3338 = vmatpush.msra.mxu0 0.0
  %3339 = vmatpush.msra.mxu0 0.0
  %3340 = vmatpush.msra.mxu0 %v3259
  %3341 = vmatpush.msra.mxu0 %v3257
  %3342 = vmatmul.f32.gmra.mxu0 %v3286
  %v3343 = vpop.f32.mrf.mxu0
  %v3344 = vadd.f32 %v3268, %v3343
  %3345 = vmatmul.f32.gmra.mxu0 %v3289
  %v3346 = vpop.f32.mrf.mxu0
  %v3347 = vadd.f32 %v3273, %v3346
  %3348 = vmatmul.f32.gmra.mxu0 %v3292
  %v3349 = vpop.f32.mrf.mxu0
  %v3350 = vadd.f32 %v3278, %v3349
  %3351 = vmatmul.f32.gmra.mxu0 %v3295
  %v3352 = vpop.f32.mrf.mxu0
  %v3353 = vadd.f32 %v3283, %v3352
  %3354 = vdwg.mxu0
  %v3355 = vmax.f32 %v3315, 0.0
  %v3356 = vmax.f32 %v3344, 0.0
  %v3357 = vmax.f32 %v3318, 0.0
  %v3358 = vmax.f32 %v3347, 0.0
  %v3359 = vmax.f32 %v3321, 0.0
  %v3360 = vmax.f32 %v3350, 0.0
  %v3361 = vmax.f32 %v3324, 0.0
  %v3362 = vmax.f32 %v3353, 0.0
  %v3363 = vmul.f32 %v3355, %v607
  %v3364 = vmul.f32 %v3356, %v608
  %v3365 = vmul.f32 %v3357, %v607
  %v3366 = vmul.f32 %v3358, %v608
  %v3367 = vmul.f32 %v3359, %v607
  %v3368 = vmul.f32 %v3360, %v608
  %v3369 = vmul.f32 %v3361, %v607
  %v3370 = vmul.f32 %v3362, %v608
  %s3371 = scalar_lea.vmem %s5, 96
  %v3372 = vld [vmem:[%s3371] sm:$0xff]
  %v3373 = vld [vmem:[%s3371 + $0x8] sm:$0xff]
  %v3374 = vld [vmem:[%s3371 + $0x10] sm:$0xff]
  %v3375 = vld [vmem:[%s3371 + $0x18] sm:$0xff]
  %v3376 = vld [vmem:[%s3371 + $0x20] sm:$0xff]
  %v3377 = vld [vmem:[%s3371 + $0x28] sm:$0xff]
  %3386 = vrot.lane.b32.xlu0 %v3363, 16
  %v3387 = vpop.permute.xlu0 %3386
  %3388 = vrot.lane.b32.xlu0 %v3364, 16
  %v3389 = vpop.permute.xlu0 %3388
  %3390 = vrot.lane.b32.xlu0 %v3365, 16
  %v3391 = vpop.permute.xlu0 %3390
  %3392 = vrot.lane.b32.xlu0 %v3366, 16
  %v3393 = vpop.permute.xlu0 %3392
  %3394 = vrot.lane.b32.xlu0 %v3367, 16
  %v3395 = vpop.permute.xlu0 %3394
  %3396 = vrot.lane.b32.xlu0 %v3368, 16
  %v3397 = vpop.permute.xlu0 %3396
  %3398 = vrot.lane.b32.xlu0 %v3369, 16
  %v3399 = vpop.permute.xlu0 %3398
  %3400 = vrot.lane.b32.xlu0 %v3370, 16
  %v3401 = vpop.permute.xlu0 %3400
  %v3402 = vsel %vm91, %v3387, %v3389
  %v3403 = vsel %vm91, %v3391, %v3393
  %v3404 = vsel %vm91, %v3395, %v3397
  %v3405 = vsel %vm91, %v3399, %v3401
  %v3414 = vsel %vm91, 0.0, %v3387
  %v3415 = vsel %vm91, 0.0, %v3391
  %v3416 = vsel %vm91, 0.0, %v3395
  %v3417 = vsel %vm91, 0.0, %v3399
  %v3418 = vsel %vm91, %v3389, 0.0
  %v3419 = vsel %vm91, %v3393, 0.0
  %v3420 = vsel %vm91, %v3397, 0.0
  %v3421 = vsel %vm91, %v3401, 0.0
  %3430 = vrot.lane.b32.xlu0 %v3414, 127
  %v3431 = vpop.permute.xlu0 %3430
  %3432 = vrot.lane.b32.xlu0 %v3402, 127
  %v3433 = vpop.permute.xlu0 %3432
  %3434 = vrot.lane.b32.xlu0 %v3418, 127
  %v3435 = vpop.permute.xlu0 %3434
  %3436 = vrot.lane.b32.xlu0 %v3415, 127
  %v3437 = vpop.permute.xlu0 %3436
  %3438 = vrot.lane.b32.xlu0 %v3403, 127
  %v3439 = vpop.permute.xlu0 %3438
  %3440 = vrot.lane.b32.xlu0 %v3419, 127
  %v3441 = vpop.permute.xlu0 %3440
  %3442 = vrot.lane.b32.xlu0 %v3416, 127
  %v3443 = vpop.permute.xlu0 %3442
  %3444 = vrot.lane.b32.xlu0 %v3404, 127
  %v3445 = vpop.permute.xlu0 %3444
  %3446 = vrot.lane.b32.xlu0 %v3420, 127
  %v3447 = vpop.permute.xlu0 %3446
  %3448 = vrot.lane.b32.xlu0 %v3417, 127
  %v3449 = vpop.permute.xlu0 %3448
  %3450 = vrot.lane.b32.xlu0 %v3405, 127
  %v3451 = vpop.permute.xlu0 %3450
  %3452 = vrot.lane.b32.xlu0 %v3421, 127
  %v3453 = vpop.permute.xlu0 %3452
  %v3454 = vsel %vm105, %v3431, %v3433
  %v3455 = vsel %vm105, %v3433, %v3435
  %v3456 = vsel %vm105, %v3437, %v3439
  %v3457 = vsel %vm105, %v3439, %v3441
  %v3458 = vsel %vm105, %v3443, %v3445
  %v3459 = vsel %vm105, %v3445, %v3447
  %v3460 = vsel %vm105, %v3449, %v3451
  %v3461 = vsel %vm105, %v3451, %v3453
  %3462 = vrot.lane.b32.xlu0 %v3414, 126
  %v3463 = vpop.permute.xlu0 %3462
  %3464 = vrot.lane.b32.xlu0 %v3402, 126
  %v3465 = vpop.permute.xlu0 %3464
  %3466 = vrot.lane.b32.xlu0 %v3418, 126
  %v3467 = vpop.permute.xlu0 %3466
  %3468 = vrot.lane.b32.xlu0 %v3415, 126
  %v3469 = vpop.permute.xlu0 %3468
  %3470 = vrot.lane.b32.xlu0 %v3403, 126
  %v3471 = vpop.permute.xlu0 %3470
  %3472 = vrot.lane.b32.xlu0 %v3419, 126
  %v3473 = vpop.permute.xlu0 %3472
  %3474 = vrot.lane.b32.xlu0 %v3416, 126
  %v3475 = vpop.permute.xlu0 %3474
  %3476 = vrot.lane.b32.xlu0 %v3404, 126
  %v3477 = vpop.permute.xlu0 %3476
  %3478 = vrot.lane.b32.xlu0 %v3420, 126
  %v3479 = vpop.permute.xlu0 %3478
  %3480 = vrot.lane.b32.xlu0 %v3417, 126
  %v3481 = vpop.permute.xlu0 %3480
  %3482 = vrot.lane.b32.xlu0 %v3405, 126
  %v3483 = vpop.permute.xlu0 %3482
  %3484 = vrot.lane.b32.xlu0 %v3421, 126
  %v3485 = vpop.permute.xlu0 %3484
  %v3486 = vsel %vm114, %v3463, %v3465
  %v3487 = vsel %vm114, %v3465, %v3467
  %v3488 = vsel %vm114, %v3469, %v3471
  %v3489 = vsel %vm114, %v3471, %v3473
  %v3490 = vsel %vm114, %v3475, %v3477
  %v3491 = vsel %vm114, %v3477, %v3479
  %v3492 = vsel %vm114, %v3481, %v3483
  %v3493 = vsel %vm114, %v3483, %v3485
  %3494 = vrot.lane.b32.xlu0 %v3414, 118
  %v3495 = vpop.permute.xlu0 %3494
  %3496 = vrot.lane.b32.xlu0 %v3402, 118
  %v3497 = vpop.permute.xlu0 %3496
  %3498 = vrot.lane.b32.xlu0 %v3418, 118
  %v3499 = vpop.permute.xlu0 %3498
  %3500 = vrot.lane.b32.xlu0 %v3415, 118
  %v3501 = vpop.permute.xlu0 %3500
  %3502 = vrot.lane.b32.xlu0 %v3403, 118
  %v3503 = vpop.permute.xlu0 %3502
  %3504 = vrot.lane.b32.xlu0 %v3419, 118
  %v3505 = vpop.permute.xlu0 %3504
  %3506 = vrot.lane.b32.xlu0 %v3416, 118
  %v3507 = vpop.permute.xlu0 %3506
  %3508 = vrot.lane.b32.xlu0 %v3404, 118
  %v3509 = vpop.permute.xlu0 %3508
  %3510 = vrot.lane.b32.xlu0 %v3420, 118
  %v3511 = vpop.permute.xlu0 %3510
  %3512 = vrot.lane.b32.xlu0 %v3417, 118
  %v3513 = vpop.permute.xlu0 %3512
  %3514 = vrot.lane.b32.xlu0 %v3405, 118
  %v3515 = vpop.permute.xlu0 %3514
  %3516 = vrot.lane.b32.xlu0 %v3421, 118
  %v3517 = vpop.permute.xlu0 %3516
  %v3518 = vsel %vm123, %v3495, %v3497
  %v3519 = vsel %vm123, %v3497, %v3499
  %v3520 = vsel %vm123, %v3501, %v3503
  %v3521 = vsel %vm123, %v3503, %v3505
  %v3522 = vsel %vm123, %v3507, %v3509
  %v3523 = vsel %vm123, %v3509, %v3511
  %v3524 = vsel %vm123, %v3513, %v3515
  %v3525 = vsel %vm123, %v3515, %v3517
  %3526 = vrot.lane.b32.xlu0 %v3414, 117
  %v3527 = vpop.permute.xlu0 %3526
  %3528 = vrot.lane.b32.xlu0 %v3402, 117
  %v3529 = vpop.permute.xlu0 %3528
  %3530 = vrot.lane.b32.xlu0 %v3418, 117
  %v3531 = vpop.permute.xlu0 %3530
  %3532 = vrot.lane.b32.xlu0 %v3415, 117
  %v3533 = vpop.permute.xlu0 %3532
  %3534 = vrot.lane.b32.xlu0 %v3403, 117
  %v3535 = vpop.permute.xlu0 %3534
  %3536 = vrot.lane.b32.xlu0 %v3419, 117
  %v3537 = vpop.permute.xlu0 %3536
  %3538 = vrot.lane.b32.xlu0 %v3416, 117
  %v3539 = vpop.permute.xlu0 %3538
  %3540 = vrot.lane.b32.xlu0 %v3404, 117
  %v3541 = vpop.permute.xlu0 %3540
  %3542 = vrot.lane.b32.xlu0 %v3420, 117
  %v3543 = vpop.permute.xlu0 %3542
  %3544 = vrot.lane.b32.xlu0 %v3417, 117
  %v3545 = vpop.permute.xlu0 %3544
  %3546 = vrot.lane.b32.xlu0 %v3405, 117
  %v3547 = vpop.permute.xlu0 %3546
  %3548 = vrot.lane.b32.xlu0 %v3421, 117
  %v3549 = vpop.permute.xlu0 %3548
  %v3550 = vsel %vm132, %v3527, %v3529
  %v3551 = vsel %vm132, %v3529, %v3531
  %v3552 = vsel %vm132, %v3533, %v3535
  %v3553 = vsel %vm132, %v3535, %v3537
  %v3554 = vsel %vm132, %v3539, %v3541
  %v3555 = vsel %vm132, %v3541, %v3543
  %v3556 = vsel %vm132, %v3545, %v3547
  %v3557 = vsel %vm132, %v3547, %v3549
  %3558 = vrot.lane.b32.xlu0 %v3414, 116
  %v3559 = vpop.permute.xlu0 %3558
  %3560 = vrot.lane.b32.xlu0 %v3402, 116
  %v3561 = vpop.permute.xlu0 %3560
  %3562 = vrot.lane.b32.xlu0 %v3418, 116
  %v3563 = vpop.permute.xlu0 %3562
  %3564 = vrot.lane.b32.xlu0 %v3415, 116
  %v3565 = vpop.permute.xlu0 %3564
  %3566 = vrot.lane.b32.xlu0 %v3403, 116
  %v3567 = vpop.permute.xlu0 %3566
  %3568 = vrot.lane.b32.xlu0 %v3419, 116
  %v3569 = vpop.permute.xlu0 %3568
  %3570 = vrot.lane.b32.xlu0 %v3416, 116
  %v3571 = vpop.permute.xlu0 %3570
  %3572 = vrot.lane.b32.xlu0 %v3404, 116
  %v3573 = vpop.permute.xlu0 %3572
  %3574 = vrot.lane.b32.xlu0 %v3420, 116
  %v3575 = vpop.permute.xlu0 %3574
  %3576 = vrot.lane.b32.xlu0 %v3417, 116
  %v3577 = vpop.permute.xlu0 %3576
  %3578 = vrot.lane.b32.xlu0 %v3405, 116
  %v3579 = vpop.permute.xlu0 %3578
  %3580 = vrot.lane.b32.xlu0 %v3421, 116
  %v3581 = vpop.permute.xlu0 %3580
  %v3582 = vsel %vm141, %v3559, %v3561
  %v3583 = vsel %vm141, %v3561, %v3563
  %v3584 = vsel %vm141, %v3565, %v3567
  %v3585 = vsel %vm141, %v3567, %v3569
  %v3586 = vsel %vm141, %v3571, %v3573
  %v3587 = vsel %vm141, %v3573, %v3575
  %v3588 = vsel %vm141, %v3577, %v3579
  %v3589 = vsel %vm141, %v3579, %v3581
  %3590 = vrot.lane.b32.xlu0 %v3414, 108
  %v3591 = vpop.permute.xlu0 %3590
  %3592 = vrot.lane.b32.xlu0 %v3402, 108
  %v3593 = vpop.permute.xlu0 %3592
  %3594 = vrot.lane.b32.xlu0 %v3418, 108
  %v3595 = vpop.permute.xlu0 %3594
  %3596 = vrot.lane.b32.xlu0 %v3415, 108
  %v3597 = vpop.permute.xlu0 %3596
  %3598 = vrot.lane.b32.xlu0 %v3403, 108
  %v3599 = vpop.permute.xlu0 %3598
  %3600 = vrot.lane.b32.xlu0 %v3419, 108
  %v3601 = vpop.permute.xlu0 %3600
  %3602 = vrot.lane.b32.xlu0 %v3416, 108
  %v3603 = vpop.permute.xlu0 %3602
  %3604 = vrot.lane.b32.xlu0 %v3404, 108
  %v3605 = vpop.permute.xlu0 %3604
  %3606 = vrot.lane.b32.xlu0 %v3420, 108
  %v3607 = vpop.permute.xlu0 %3606
  %3608 = vrot.lane.b32.xlu0 %v3417, 108
  %v3609 = vpop.permute.xlu0 %3608
  %3610 = vrot.lane.b32.xlu0 %v3405, 108
  %v3611 = vpop.permute.xlu0 %3610
  %3612 = vrot.lane.b32.xlu0 %v3421, 108
  %v3613 = vpop.permute.xlu0 %3612
  %v3614 = vsel %vm150, %v3591, %v3593
  %v3615 = vsel %vm150, %v3593, %v3595
  %v3616 = vsel %vm150, %v3597, %v3599
  %v3617 = vsel %vm150, %v3599, %v3601
  %v3618 = vsel %vm150, %v3603, %v3605
  %v3619 = vsel %vm150, %v3605, %v3607
  %v3620 = vsel %vm150, %v3609, %v3611
  %v3621 = vsel %vm150, %v3611, %v3613
  %3622 = vrot.lane.b32.xlu0 %v3414, 107
  %v3623 = vpop.permute.xlu0 %3622
  %3624 = vrot.lane.b32.xlu0 %v3402, 107
  %v3625 = vpop.permute.xlu0 %3624
  %3626 = vrot.lane.b32.xlu0 %v3418, 107
  %v3627 = vpop.permute.xlu0 %3626
  %3628 = vrot.lane.b32.xlu0 %v3415, 107
  %v3629 = vpop.permute.xlu0 %3628
  %3630 = vrot.lane.b32.xlu0 %v3403, 107
  %v3631 = vpop.permute.xlu0 %3630
  %3632 = vrot.lane.b32.xlu0 %v3419, 107
  %v3633 = vpop.permute.xlu0 %3632
  %3634 = vrot.lane.b32.xlu0 %v3416, 107
  %v3635 = vpop.permute.xlu0 %3634
  %3636 = vrot.lane.b32.xlu0 %v3404, 107
  %v3637 = vpop.permute.xlu0 %3636
  %3638 = vrot.lane.b32.xlu0 %v3420, 107
  %v3639 = vpop.permute.xlu0 %3638
  %3640 = vrot.lane.b32.xlu0 %v3417, 107
  %v3641 = vpop.permute.xlu0 %3640
  %3642 = vrot.lane.b32.xlu0 %v3405, 107
  %v3643 = vpop.permute.xlu0 %3642
  %3644 = vrot.lane.b32.xlu0 %v3421, 107
  %v3645 = vpop.permute.xlu0 %3644
  %v3646 = vsel %vm159, %v3623, %v3625
  %v3647 = vsel %vm159, %v3625, %v3627
  %v3648 = vsel %vm159, %v3629, %v3631
  %v3649 = vsel %vm159, %v3631, %v3633
  %v3650 = vsel %vm159, %v3635, %v3637
  %v3651 = vsel %vm159, %v3637, %v3639
  %v3652 = vsel %vm159, %v3641, %v3643
  %v3653 = vsel %vm159, %v3643, %v3645
  %3654 = vrot.lane.b32.xlu0 %v3414, 106
  %v3655 = vpop.permute.xlu0 %3654
  %3656 = vrot.lane.b32.xlu0 %v3402, 106
  %v3657 = vpop.permute.xlu0 %3656
  %3658 = vrot.lane.b32.xlu0 %v3418, 106
  %v3659 = vpop.permute.xlu0 %3658
  %3660 = vrot.lane.b32.xlu0 %v3415, 106
  %v3661 = vpop.permute.xlu0 %3660
  %3662 = vrot.lane.b32.xlu0 %v3403, 106
  %v3663 = vpop.permute.xlu0 %3662
  %3664 = vrot.lane.b32.xlu0 %v3419, 106
  %v3665 = vpop.permute.xlu0 %3664
  %3666 = vrot.lane.b32.xlu0 %v3416, 106
  %v3667 = vpop.permute.xlu0 %3666
  %3668 = vrot.lane.b32.xlu0 %v3404, 106
  %v3669 = vpop.permute.xlu0 %3668
  %3670 = vrot.lane.b32.xlu0 %v3420, 106
  %v3671 = vpop.permute.xlu0 %3670
  %3672 = vrot.lane.b32.xlu0 %v3417, 106
  %v3673 = vpop.permute.xlu0 %3672
  %3674 = vrot.lane.b32.xlu0 %v3405, 106
  %v3675 = vpop.permute.xlu0 %3674
  %3676 = vrot.lane.b32.xlu0 %v3421, 106
  %v3677 = vpop.permute.xlu0 %3676
  %v3678 = vsel %vm168, %v3655, %v3657
  %v3679 = vsel %vm168, %v3657, %v3659
  %v3680 = vsel %vm168, %v3661, %v3663
  %v3681 = vsel %vm168, %v3663, %v3665
  %v3682 = vsel %vm168, %v3667, %v3669
  %v3683 = vsel %vm168, %v3669, %v3671
  %v3684 = vsel %vm168, %v3673, %v3675
  %v3685 = vsel %vm168, %v3675, %v3677
  %3687 = vset.pattern.permute.xlu0 0
  %3688 = vperm.xlu0 %3687, %v3047
  %v3689 = vpop.permute.xlu0 %3688
  %3692 = vset.pattern.permute.xlu0 0
  %3693 = vperm.xlu0 %3692, %v3048
  %v3694 = vpop.permute.xlu0 %3693
  %3696 = vrot.lane.b32.xlu0 %v3414, 123
  %v3697 = vpop.permute.xlu0 %3696
  %3698 = vrot.lane.b32.xlu0 %v3402, 123
  %v3699 = vpop.permute.xlu0 %3698
  %3700 = vrot.lane.b32.xlu0 %v3418, 123
  %v3701 = vpop.permute.xlu0 %3700
  %3702 = vrot.lane.b32.xlu0 %v3415, 123
  %v3703 = vpop.permute.xlu0 %3702
  %3704 = vrot.lane.b32.xlu0 %v3403, 123
  %v3705 = vpop.permute.xlu0 %3704
  %3706 = vrot.lane.b32.xlu0 %v3419, 123
  %v3707 = vpop.permute.xlu0 %3706
  %3708 = vrot.lane.b32.xlu0 %v3416, 123
  %v3709 = vpop.permute.xlu0 %3708
  %3710 = vrot.lane.b32.xlu0 %v3404, 123
  %v3711 = vpop.permute.xlu0 %3710
  %3712 = vrot.lane.b32.xlu0 %v3420, 123
  %v3713 = vpop.permute.xlu0 %3712
  %3714 = vrot.lane.b32.xlu0 %v3417, 123
  %v3715 = vpop.permute.xlu0 %3714
  %3716 = vrot.lane.b32.xlu0 %v3405, 123
  %v3717 = vpop.permute.xlu0 %3716
  %3718 = vrot.lane.b32.xlu0 %v3421, 123
  %v3719 = vpop.permute.xlu0 %3718
  %3720 = vrot.lane.b32.xlu0 %v3454, 123
  %v3721 = vpop.permute.xlu0 %3720
  %3722 = vrot.lane.b32.xlu0 %v3455, 123
  %v3723 = vpop.permute.xlu0 %3722
  %3724 = vrot.lane.b32.xlu0 %v3435, 123
  %v3725 = vpop.permute.xlu0 %3724
  %3726 = vrot.lane.b32.xlu0 %v3456, 123
  %v3727 = vpop.permute.xlu0 %3726
  %3728 = vrot.lane.b32.xlu0 %v3457, 123
  %v3729 = vpop.permute.xlu0 %3728
  %3730 = vrot.lane.b32.xlu0 %v3441, 123
  %v3731 = vpop.permute.xlu0 %3730
  %3732 = vrot.lane.b32.xlu0 %v3458, 123
  %v3733 = vpop.permute.xlu0 %3732
  %3734 = vrot.lane.b32.xlu0 %v3459, 123
  %v3735 = vpop.permute.xlu0 %3734
  %3736 = vrot.lane.b32.xlu0 %v3447, 123
  %v3737 = vpop.permute.xlu0 %3736
  %3738 = vrot.lane.b32.xlu0 %v3460, 123
  %v3739 = vpop.permute.xlu0 %3738
  %3740 = vrot.lane.b32.xlu0 %v3461, 123
  %v3741 = vpop.permute.xlu0 %3740
  %3742 = vrot.lane.b32.xlu0 %v3453, 123
  %v3743 = vpop.permute.xlu0 %3742
  %3744 = vrot.lane.b32.xlu0 %v3486, 123
  %v3745 = vpop.permute.xlu0 %3744
  %3746 = vrot.lane.b32.xlu0 %v3487, 123
  %v3747 = vpop.permute.xlu0 %3746
  %3748 = vrot.lane.b32.xlu0 %v3467, 123
  %v3749 = vpop.permute.xlu0 %3748
  %3750 = vrot.lane.b32.xlu0 %v3488, 123
  %v3751 = vpop.permute.xlu0 %3750
  %3752 = vrot.lane.b32.xlu0 %v3489, 123
  %v3753 = vpop.permute.xlu0 %3752
  %3754 = vrot.lane.b32.xlu0 %v3473, 123
  %v3755 = vpop.permute.xlu0 %3754
  %3756 = vrot.lane.b32.xlu0 %v3490, 123
  %v3757 = vpop.permute.xlu0 %3756
  %3758 = vrot.lane.b32.xlu0 %v3491, 123
  %v3759 = vpop.permute.xlu0 %3758
  %3760 = vrot.lane.b32.xlu0 %v3479, 123
  %v3761 = vpop.permute.xlu0 %3760
  %3762 = vrot.lane.b32.xlu0 %v3492, 123
  %v3763 = vpop.permute.xlu0 %3762
  %3764 = vrot.lane.b32.xlu0 %v3493, 123
  %v3765 = vpop.permute.xlu0 %3764
  %3766 = vrot.lane.b32.xlu0 %v3485, 123
  %v3767 = vpop.permute.xlu0 %3766
  %3768 = vrot.lane.b32.xlu0 %v3518, 123
  %v3769 = vpop.permute.xlu0 %3768
  %3770 = vrot.lane.b32.xlu0 %v3519, 123
  %v3771 = vpop.permute.xlu0 %3770
  %3772 = vrot.lane.b32.xlu0 %v3499, 123
  %v3773 = vpop.permute.xlu0 %3772
  %3774 = vrot.lane.b32.xlu0 %v3520, 123
  %v3775 = vpop.permute.xlu0 %3774
  %3776 = vrot.lane.b32.xlu0 %v3521, 123
  %v3777 = vpop.permute.xlu0 %3776
  %3778 = vrot.lane.b32.xlu0 %v3505, 123
  %v3779 = vpop.permute.xlu0 %3778
  %3780 = vrot.lane.b32.xlu0 %v3522, 123
  %v3781 = vpop.permute.xlu0 %3780
  %3782 = vrot.lane.b32.xlu0 %v3523, 123
  %v3783 = vpop.permute.xlu0 %3782
  %3784 = vrot.lane.b32.xlu0 %v3511, 123
  %v3785 = vpop.permute.xlu0 %3784
  %3786 = vrot.lane.b32.xlu0 %v3524, 123
  %v3787 = vpop.permute.xlu0 %3786
  %3788 = vrot.lane.b32.xlu0 %v3525, 123
  %v3789 = vpop.permute.xlu0 %3788
  %3790 = vrot.lane.b32.xlu0 %v3517, 123
  %v3791 = vpop.permute.xlu0 %3790
  %3792 = vrot.lane.b32.xlu0 %v3550, 123
  %v3793 = vpop.permute.xlu0 %3792
  %3794 = vrot.lane.b32.xlu0 %v3551, 123
  %v3795 = vpop.permute.xlu0 %3794
  %3796 = vrot.lane.b32.xlu0 %v3531, 123
  %v3797 = vpop.permute.xlu0 %3796
  %3798 = vrot.lane.b32.xlu0 %v3552, 123
  %v3799 = vpop.permute.xlu0 %3798
  %3800 = vrot.lane.b32.xlu0 %v3553, 123
  %v3801 = vpop.permute.xlu0 %3800
  %3802 = vrot.lane.b32.xlu0 %v3537, 123
  %v3803 = vpop.permute.xlu0 %3802
  %3804 = vrot.lane.b32.xlu0 %v3554, 123
  %v3805 = vpop.permute.xlu0 %3804
  %3806 = vrot.lane.b32.xlu0 %v3555, 123
  %v3807 = vpop.permute.xlu0 %3806
  %3808 = vrot.lane.b32.xlu0 %v3543, 123
  %v3809 = vpop.permute.xlu0 %3808
  %3810 = vrot.lane.b32.xlu0 %v3556, 123
  %v3811 = vpop.permute.xlu0 %3810
  %3812 = vrot.lane.b32.xlu0 %v3557, 123
  %v3813 = vpop.permute.xlu0 %3812
  %3814 = vrot.lane.b32.xlu0 %v3549, 123
  %v3815 = vpop.permute.xlu0 %3814
  %3816 = vrot.lane.b32.xlu0 %v3582, 123
  %v3817 = vpop.permute.xlu0 %3816
  %3818 = vrot.lane.b32.xlu0 %v3583, 123
  %v3819 = vpop.permute.xlu0 %3818
  %3820 = vrot.lane.b32.xlu0 %v3563, 123
  %v3821 = vpop.permute.xlu0 %3820
  %3822 = vrot.lane.b32.xlu0 %v3584, 123
  %v3823 = vpop.permute.xlu0 %3822
  %3824 = vrot.lane.b32.xlu0 %v3585, 123
  %v3825 = vpop.permute.xlu0 %3824
  %3826 = vrot.lane.b32.xlu0 %v3569, 123
  %v3827 = vpop.permute.xlu0 %3826
  %3828 = vrot.lane.b32.xlu0 %v3586, 123
  %v3829 = vpop.permute.xlu0 %3828
  %3830 = vrot.lane.b32.xlu0 %v3587, 123
  %v3831 = vpop.permute.xlu0 %3830
  %3832 = vrot.lane.b32.xlu0 %v3575, 123
  %v3833 = vpop.permute.xlu0 %3832
  %3834 = vrot.lane.b32.xlu0 %v3588, 123
  %v3835 = vpop.permute.xlu0 %3834
  %3836 = vrot.lane.b32.xlu0 %v3589, 123
  %v3837 = vpop.permute.xlu0 %3836
  %3838 = vrot.lane.b32.xlu0 %v3581, 123
  %v3839 = vpop.permute.xlu0 %3838
  %3840 = vrot.lane.b32.xlu0 %v3614, 123
  %v3841 = vpop.permute.xlu0 %3840
  %3842 = vrot.lane.b32.xlu0 %v3615, 123
  %v3843 = vpop.permute.xlu0 %3842
  %3844 = vrot.lane.b32.xlu0 %v3595, 123
  %v3845 = vpop.permute.xlu0 %3844
  %3846 = vrot.lane.b32.xlu0 %v3616, 123
  %v3847 = vpop.permute.xlu0 %3846
  %3848 = vrot.lane.b32.xlu0 %v3617, 123
  %v3849 = vpop.permute.xlu0 %3848
  %3850 = vrot.lane.b32.xlu0 %v3601, 123
  %v3851 = vpop.permute.xlu0 %3850
  %3852 = vrot.lane.b32.xlu0 %v3618, 123
  %v3853 = vpop.permute.xlu0 %3852
  %3854 = vrot.lane.b32.xlu0 %v3619, 123
  %v3855 = vpop.permute.xlu0 %3854
  %3856 = vrot.lane.b32.xlu0 %v3607, 123
  %v3857 = vpop.permute.xlu0 %3856
  %3858 = vrot.lane.b32.xlu0 %v3620, 123
  %v3859 = vpop.permute.xlu0 %3858
  %3860 = vrot.lane.b32.xlu0 %v3621, 123
  %v3861 = vpop.permute.xlu0 %3860
  %3862 = vrot.lane.b32.xlu0 %v3613, 123
  %v3863 = vpop.permute.xlu0 %3862
  %3864 = vrot.lane.b32.xlu0 %v3646, 123
  %v3865 = vpop.permute.xlu0 %3864
  %3866 = vrot.lane.b32.xlu0 %v3647, 123
  %v3867 = vpop.permute.xlu0 %3866
  %3868 = vrot.lane.b32.xlu0 %v3627, 123
  %v3869 = vpop.permute.xlu0 %3868
  %3870 = vrot.lane.b32.xlu0 %v3648, 123
  %v3871 = vpop.permute.xlu0 %3870
  %3872 = vrot.lane.b32.xlu0 %v3649, 123
  %v3873 = vpop.permute.xlu0 %3872
  %3874 = vrot.lane.b32.xlu0 %v3633, 123
  %v3875 = vpop.permute.xlu0 %3874
  %3876 = vrot.lane.b32.xlu0 %v3650, 123
  %v3877 = vpop.permute.xlu0 %3876
  %3878 = vrot.lane.b32.xlu0 %v3651, 123
  %v3879 = vpop.permute.xlu0 %3878
  %3880 = vrot.lane.b32.xlu0 %v3639, 123
  %v3881 = vpop.permute.xlu0 %3880
  %3882 = vrot.lane.b32.xlu0 %v3652, 123
  %v3883 = vpop.permute.xlu0 %3882
  %3884 = vrot.lane.b32.xlu0 %v3653, 123
  %v3885 = vpop.permute.xlu0 %3884
  %3886 = vrot.lane.b32.xlu0 %v3645, 123
  %v3887 = vpop.permute.xlu0 %3886
  %3888 = vrot.lane.b32.xlu0 %v3678, 123
  %v3889 = vpop.permute.xlu0 %3888
  %3890 = vrot.lane.b32.xlu0 %v3679, 123
  %v3891 = vpop.permute.xlu0 %3890
  %3892 = vrot.lane.b32.xlu0 %v3659, 123
  %v3893 = vpop.permute.xlu0 %3892
  %3894 = vrot.lane.b32.xlu0 %v3680, 123
  %v3895 = vpop.permute.xlu0 %3894
  %3896 = vrot.lane.b32.xlu0 %v3681, 123
  %v3897 = vpop.permute.xlu0 %3896
  %3898 = vrot.lane.b32.xlu0 %v3665, 123
  %v3899 = vpop.permute.xlu0 %3898
  %3900 = vrot.lane.b32.xlu0 %v3682, 123
  %v3901 = vpop.permute.xlu0 %3900
  %3902 = vrot.lane.b32.xlu0 %v3683, 123
  %v3903 = vpop.permute.xlu0 %3902
  %3904 = vrot.lane.b32.xlu0 %v3671, 123
  %v3905 = vpop.permute.xlu0 %3904
  %3906 = vrot.lane.b32.xlu0 %v3684, 123
  %v3907 = vpop.permute.xlu0 %3906
  %3908 = vrot.lane.b32.xlu0 %v3685, 123
  %v3909 = vpop.permute.xlu0 %3908
  %3910 = vrot.lane.b32.xlu0 %v3677, 123
  %v3911 = vpop.permute.xlu0 %3910
  %v3912 = vsel %vm432, %v3697, %v3699
  %v3913 = vsel %vm432, %v3699, %v3701
  %v3914 = vsel %vm432, %v3703, %v3705
  %v3915 = vsel %vm432, %v3705, %v3707
  %v3916 = vsel %vm432, %v3709, %v3711
  %v3917 = vsel %vm432, %v3711, %v3713
  %v3918 = vsel %vm432, %v3715, %v3717
  %v3919 = vsel %vm432, %v3717, %v3719
  %v3920 = vsel %vm432, %v3721, %v3723
  %v3921 = vsel %vm432, %v3723, %v3725
  %v3922 = vsel %vm432, %v3727, %v3729
  %v3923 = vsel %vm432, %v3729, %v3731
  %v3924 = vsel %vm432, %v3733, %v3735
  %v3925 = vsel %vm432, %v3735, %v3737
  %v3926 = vsel %vm432, %v3739, %v3741
  %v3927 = vsel %vm432, %v3741, %v3743
  %v3928 = vsel %vm432, %v3745, %v3747
  %v3929 = vsel %vm432, %v3747, %v3749
  %v3930 = vsel %vm432, %v3751, %v3753
  %v3931 = vsel %vm432, %v3753, %v3755
  %v3932 = vsel %vm432, %v3757, %v3759
  %v3933 = vsel %vm432, %v3759, %v3761
  %v3934 = vsel %vm432, %v3763, %v3765
  %v3935 = vsel %vm432, %v3765, %v3767
  %v3936 = vsel %vm432, %v3769, %v3771
  %v3937 = vsel %vm432, %v3771, %v3773
  %v3938 = vsel %vm432, %v3775, %v3777
  %v3939 = vsel %vm432, %v3777, %v3779
  %v3940 = vsel %vm432, %v3781, %v3783
  %v3941 = vsel %vm432, %v3783, %v3785
  %v3942 = vsel %vm432, %v3787, %v3789
  %v3943 = vsel %vm432, %v3789, %v3791
  %v3944 = vsel %vm432, %v3793, %v3795
  %v3945 = vsel %vm432, %v3795, %v3797
  %v3946 = vsel %vm432, %v3799, %v3801
  %v3947 = vsel %vm432, %v3801, %v3803
  %v3948 = vsel %vm432, %v3805, %v3807
  %v3949 = vsel %vm432, %v3807, %v3809
  %v3950 = vsel %vm432, %v3811, %v3813
  %v3951 = vsel %vm432, %v3813, %v3815
  %v3952 = vsel %vm432, %v3817, %v3819
  %v3953 = vsel %vm432, %v3819, %v3821
  %v3954 = vsel %vm432, %v3823, %v3825
  %v3955 = vsel %vm432, %v3825, %v3827
  %v3956 = vsel %vm432, %v3829, %v3831
  %v3957 = vsel %vm432, %v3831, %v3833
  %v3958 = vsel %vm432, %v3835, %v3837
  %v3959 = vsel %vm432, %v3837, %v3839
  %v3960 = vsel %vm432, %v3841, %v3843
  %v3961 = vsel %vm432, %v3843, %v3845
  %v3962 = vsel %vm432, %v3847, %v3849
  %v3963 = vsel %vm432, %v3849, %v3851
  %v3964 = vsel %vm432, %v3853, %v3855
  %v3965 = vsel %vm432, %v3855, %v3857
  %v3966 = vsel %vm432, %v3859, %v3861
  %v3967 = vsel %vm432, %v3861, %v3863
  %v3968 = vsel %vm432, %v3865, %v3867
  %v3969 = vsel %vm432, %v3867, %v3869
  %v3970 = vsel %vm432, %v3871, %v3873
  %v3971 = vsel %vm432, %v3873, %v3875
  %v3972 = vsel %vm432, %v3877, %v3879
  %v3973 = vsel %vm432, %v3879, %v3881
  %v3974 = vsel %vm432, %v3883, %v3885
  %v3975 = vsel %vm432, %v3885, %v3887
  %v3976 = vsel %vm432, %v3889, %v3891
  %v3977 = vsel %vm432, %v3891, %v3893
  %v3978 = vsel %vm432, %v3895, %v3897
  %v3979 = vsel %vm432, %v3897, %v3899
  %v3980 = vsel %vm432, %v3901, %v3903
  %v3981 = vsel %vm432, %v3903, %v3905
  %v3982 = vsel %vm432, %v3907, %v3909
  %v3983 = vsel %vm432, %v3909, %v3911
  %v4057 = vsel %vm39, %v3374, 0
  %v4060 = vsel %vm39, %v3377, 0
  %4062 = vmatpush.msra.mxu0 %v3942
  %4063 = vmatpush.msra.mxu0 %v3940
  %4064 = vmatpush.msra.mxu0 %v3938
  %4065 = vmatpush.msra.mxu0 %v3936
  %4066 = vmatpush.msra.mxu0 %v3934
  %4067 = vmatpush.msra.mxu0 %v3932
  %4068 = vmatpush.msra.mxu0 %v3930
  %4069 = vmatpush.msra.mxu0 %v3928
  %4070 = vmatpush.msra.mxu0 %v3926
  %4071 = vmatpush.msra.mxu0 %v3924
  %4072 = vmatpush.msra.mxu0 %v3922
  %4073 = vmatpush.msra.mxu0 %v3920
  %4074 = vmatpush.msra.mxu0 %v3918
  %4075 = vmatpush.msra.mxu0 %v3916
  %4076 = vmatpush.msra.mxu0 %v3914
  %4077 = vmatpush.msra.mxu0 %v3912
  %4078 = vmatmul.f32.gmra.mxu0 %v3372
  %v4079 = vpop.f32.mrf.mxu0
  %v4080 = vadd.f32 %v3689, %v4079
  %4081 = vmatmul.f32.gmra.mxu0 %v3375
  %v4082 = vpop.f32.mrf.mxu0
  %v4083 = vadd.f32 %v3694, %v4082
  %4084 = vdwg.mxu0
  %4085 = vmatpush.msra.mxu0 %v3974
  %4086 = vmatpush.msra.mxu0 %v3972
  %4087 = vmatpush.msra.mxu0 %v3970
  %4088 = vmatpush.msra.mxu0 %v3968
  %4089 = vmatpush.msra.mxu0 %v3966
  %4090 = vmatpush.msra.mxu0 %v3964
  %4091 = vmatpush.msra.mxu0 %v3962
  %4092 = vmatpush.msra.mxu0 %v3960
  %4093 = vmatpush.msra.mxu0 %v3958
  %4094 = vmatpush.msra.mxu0 %v3956
  %4095 = vmatpush.msra.mxu0 %v3954
  %4096 = vmatpush.msra.mxu0 %v3952
  %4097 = vmatpush.msra.mxu0 %v3950
  %4098 = vmatpush.msra.mxu0 %v3948
  %4099 = vmatpush.msra.mxu0 %v3946
  %4100 = vmatpush.msra.mxu0 %v3944
  %4101 = vmatmul.f32.gmra.mxu0 %v3373
  %v4102 = vpop.f32.mrf.mxu0
  %v4103 = vadd.f32 %v4080, %v4102
  %4104 = vmatmul.f32.gmra.mxu0 %v3376
  %v4105 = vpop.f32.mrf.mxu0
  %v4106 = vadd.f32 %v4083, %v4105
  %4107 = vdwg.mxu0
  %4108 = vmatpush.msra.mxu0 0.0
  %4109 = vmatpush.msra.mxu0 0.0
  %4110 = vmatpush.msra.mxu0 0.0
  %4111 = vmatpush.msra.mxu0 0.0
  %4112 = vmatpush.msra.mxu0 0.0
  %4113 = vmatpush.msra.mxu0 0.0
  %4114 = vmatpush.msra.mxu0 0.0
  %4115 = vmatpush.msra.mxu0 0.0
  %4116 = vmatpush.msra.mxu0 0.0
  %4117 = vmatpush.msra.mxu0 0.0
  %4118 = vmatpush.msra.mxu0 0.0
  %4119 = vmatpush.msra.mxu0 0.0
  %4120 = vmatpush.msra.mxu0 %v3982
  %4121 = vmatpush.msra.mxu0 %v3980
  %4122 = vmatpush.msra.mxu0 %v3978
  %4123 = vmatpush.msra.mxu0 %v3976
  %4124 = vmatmul.f32.gmra.mxu0 %v4057
  %v4125 = vpop.f32.mrf.mxu0
  %v4126 = vadd.f32 %v4103, %v4125
  %4127 = vmatmul.f32.gmra.mxu0 %v4060
  %v4128 = vpop.f32.mrf.mxu0
  %v4129 = vadd.f32 %v4106, %v4128
  %4130 = vdwg.mxu0
  %4131 = vmatpush.msra.mxu0 %v3943
  %4132 = vmatpush.msra.mxu0 %v3941
  %4133 = vmatpush.msra.mxu0 %v3939
  %4134 = vmatpush.msra.mxu0 %v3937
  %4135 = vmatpush.msra.mxu0 %v3935
  %4136 = vmatpush.msra.mxu0 %v3933
  %4137 = vmatpush.msra.mxu0 %v3931
  %4138 = vmatpush.msra.mxu0 %v3929
  %4139 = vmatpush.msra.mxu0 %v3927
  %4140 = vmatpush.msra.mxu0 %v3925
  %4141 = vmatpush.msra.mxu0 %v3923
  %4142 = vmatpush.msra.mxu0 %v3921
  %4143 = vmatpush.msra.mxu0 %v3919
  %4144 = vmatpush.msra.mxu0 %v3917
  %4145 = vmatpush.msra.mxu0 %v3915
  %4146 = vmatpush.msra.mxu0 %v3913
  %4147 = vmatmul.f32.gmra.mxu0 %v3372
  %v4148 = vpop.f32.mrf.mxu0
  %v4149 = vadd.f32 %v3689, %v4148
  %4150 = vmatmul.f32.gmra.mxu0 %v3375
  %v4151 = vpop.f32.mrf.mxu0
  %v4152 = vadd.f32 %v3694, %v4151
  %4153 = vdwg.mxu0
  %4154 = vmatpush.msra.mxu0 %v3975
  %4155 = vmatpush.msra.mxu0 %v3973
  %4156 = vmatpush.msra.mxu0 %v3971
  %4157 = vmatpush.msra.mxu0 %v3969
  %4158 = vmatpush.msra.mxu0 %v3967
  %4159 = vmatpush.msra.mxu0 %v3965
  %4160 = vmatpush.msra.mxu0 %v3963
  %4161 = vmatpush.msra.mxu0 %v3961
  %4162 = vmatpush.msra.mxu0 %v3959
  %4163 = vmatpush.msra.mxu0 %v3957
  %4164 = vmatpush.msra.mxu0 %v3955
  %4165 = vmatpush.msra.mxu0 %v3953
  %4166 = vmatpush.msra.mxu0 %v3951
  %4167 = vmatpush.msra.mxu0 %v3949
  %4168 = vmatpush.msra.mxu0 %v3947
  %4169 = vmatpush.msra.mxu0 %v3945
  %4170 = vmatmul.f32.gmra.mxu0 %v3373
  %v4171 = vpop.f32.mrf.mxu0
  %v4172 = vadd.f32 %v4149, %v4171
  %4173 = vmatmul.f32.gmra.mxu0 %v3376
  %v4174 = vpop.f32.mrf.mxu0
  %v4175 = vadd.f32 %v4152, %v4174
  %4176 = vdwg.mxu0
  %4177 = vmatpush.msra.mxu0 0.0
  %4178 = vmatpush.msra.mxu0 0.0
  %4179 = vmatpush.msra.mxu0 0.0
  %4180 = vmatpush.msra.mxu0 0.0
  %4181 = vmatpush.msra.mxu0 0.0
  %4182 = vmatpush.msra.mxu0 0.0
  %4183 = vmatpush.msra.mxu0 0.0
  %4184 = vmatpush.msra.mxu0 0.0
  %4185 = vmatpush.msra.mxu0 0.0
  %4186 = vmatpush.msra.mxu0 0.0
  %4187 = vmatpush.msra.mxu0 0.0
  %4188 = vmatpush.msra.mxu0 0.0
  %4189 = vmatpush.msra.mxu0 %v3983
  %4190 = vmatpush.msra.mxu0 %v3981
  %4191 = vmatpush.msra.mxu0 %v3979
  %4192 = vmatpush.msra.mxu0 %v3977
  %4193 = vmatmul.f32.gmra.mxu0 %v4057
  %v4194 = vpop.f32.mrf.mxu0
  %v4195 = vadd.f32 %v4172, %v4194
  %4196 = vmatmul.f32.gmra.mxu0 %v4060
  %v4197 = vpop.f32.mrf.mxu0
  %v4198 = vadd.f32 %v4175, %v4197
  %4199 = vdwg.mxu0
  %v4200 = vmul.f32 %v4126, 0.5263158
  %v4201 = vmul.f32 %v4195, 0.5263158
  %v4202 = vand.u32 2147483647, %v4200
  %v4203 = vand.u32 2147483647, %v4201
  %v4204 = vmax.f32 %v4202, 1.0
  %v4205 = vmax.f32 %v4203, 1.0
  %v4206 = vrcp.pop %v4204
  %v4207 = vrcp.pop %v4205
  %v4208 = vmul.f32 %v4204, %v4206
  %v4209 = vmul.f32 %v4205, %v4207
  %v4210 = vsub.f32 2.0, %v4208
  %v4211 = vsub.f32 2.0, %v4209
  %v4212 = vmul.f32 %v4206, %v4210
  %v4213 = vmul.f32 %v4207, %v4211
  %vm4214 = vcmp.gt.f32.partialorder %v4202, 1.0
  %vm4215 = vcmp.gt.f32.partialorder %v4203, 1.0
  %v4216 = vsel %vm4214, %v4212, %v4202
  %v4217 = vsel %vm4215, %v4213, %v4203
  %v4218 = vmul.f32 %v4216, %v4216
  %v4219 = vmul.f32 %v4217, %v4217
  %v4220 = vmul.f32 %v4218, 0.0208351
  %v4221 = vmul.f32 %v4219, 0.0208351
  %v4222 = vadd.f32 %v4220, -0.085133
  %v4223 = vadd.f32 %v4221, -0.085133
  %v4224 = vmul.f32 %v4218, %v4222
  %v4225 = vmul.f32 %v4219, %v4223
  %v4226 = vadd.f32 %v4224, 0.180141
  %v4227 = vadd.f32 %v4225, 0.180141
  %v4228 = vmul.f32 %v4218, %v4226
  %v4229 = vmul.f32 %v4219, %v4227
  %v4230 = vadd.f32 %v4228, -0.3302995
  %v4231 = vadd.f32 %v4229, -0.3302995
  %v4232 = vmul.f32 %v4218, %v4230
  %v4233 = vmul.f32 %v4219, %v4231
  %v4234 = vadd.f32 %v4232, 0.999866
  %v4235 = vadd.f32 %v4233, 0.999866
  %v4236 = vmul.f32 %v4216, %v4234
  %v4237 = vmul.f32 %v4217, %v4235
  %v4238 = vsub.f32 1.5707964, %v4236
  %v4239 = vsub.f32 1.5707964, %v4237
  %v4240 = vsel %vm4214, %v4238, %v4236
  %v4241 = vsel %vm4215, %v4239, %v4237
  %vm4242 = vcmp.lt.f32.partialorder %v4200, 0.0
  %vm4243 = vcmp.lt.f32.partialorder %v4201, 0.0
  %v4244 = vsub.f32 0.0, %v4240
  %v4245 = vsub.f32 0.0, %v4241
  %v4246 = vsel %vm4242, %v4244, %v4240
  %v4247 = vsel %vm4243, %v4245, %v4241
  %v4248 = vmul.f32 %v4246, 1.2084
  %v4249 = vmul.f32 %v4247, 1.2084
  %v4250 = vmul.f32 %v4248, 1.442695
  %v4251 = vpow.pop %v4250
  %v4252 = vmul.f32 %v4249, 1.442695
  %v4253 = vpow.pop %v4252
  %v4254 = vmul.f32 %v4251, %v2935
  %v4255 = vmul.f32 %v4253, %v2958
  %v4256 = vadd.f32 %v4254, %v4129
  %v4257 = vadd.f32 %v4255, %v4198
  %v4258 = vmul.f32 %v4256, %v607
  %v4259 = vmul.f32 %v4257, %v608
  %4262 = vrot.lane.b32.xlu0 %v4258, 16
  %v4263 = vpop.permute.xlu0 %4262
  %4264 = vrot.lane.b32.xlu0 %v4259, 16
  %v4265 = vpop.permute.xlu0 %4264
  %v4266 = vsel %vm91, %v4263, %v4265
  %v4269 = vsel %vm91, 0.0, %v4263
  %v4270 = vsel %vm91, %v4265, 0.0
  %4273 = vrot.lane.b32.xlu0 %v4269, 127
  %v4274 = vpop.permute.xlu0 %4273
  %4275 = vrot.lane.b32.xlu0 %v4266, 127
  %v4276 = vpop.permute.xlu0 %4275
  %4277 = vrot.lane.b32.xlu0 %v4270, 127
  %v4278 = vpop.permute.xlu0 %4277
  %v4279 = vsel %vm105, %v4274, %v4276
  %v4280 = vsel %vm105, %v4276, %v4278
  %4281 = vrot.lane.b32.xlu0 %v4269, 126
  %v4282 = vpop.permute.xlu0 %4281
  %4283 = vrot.lane.b32.xlu0 %v4266, 126
  %v4284 = vpop.permute.xlu0 %4283
  %4285 = vrot.lane.b32.xlu0 %v4270, 126
  %v4286 = vpop.permute.xlu0 %4285
  %v4287 = vsel %vm114, %v4282, %v4284
  %v4288 = vsel %vm114, %v4284, %v4286
  %4289 = vrot.lane.b32.xlu0 %v4269, 118
  %v4290 = vpop.permute.xlu0 %4289
  %4291 = vrot.lane.b32.xlu0 %v4266, 118
  %v4292 = vpop.permute.xlu0 %4291
  %4293 = vrot.lane.b32.xlu0 %v4270, 118
  %v4294 = vpop.permute.xlu0 %4293
  %v4295 = vsel %vm123, %v4290, %v4292
  %v4296 = vsel %vm123, %v4292, %v4294
  %4297 = vrot.lane.b32.xlu0 %v4269, 117
  %v4298 = vpop.permute.xlu0 %4297
  %4299 = vrot.lane.b32.xlu0 %v4266, 117
  %v4300 = vpop.permute.xlu0 %4299
  %4301 = vrot.lane.b32.xlu0 %v4270, 117
  %v4302 = vpop.permute.xlu0 %4301
  %v4303 = vsel %vm132, %v4298, %v4300
  %v4304 = vsel %vm132, %v4300, %v4302
  %4305 = vrot.lane.b32.xlu0 %v4269, 116
  %v4306 = vpop.permute.xlu0 %4305
  %4307 = vrot.lane.b32.xlu0 %v4266, 116
  %v4308 = vpop.permute.xlu0 %4307
  %4309 = vrot.lane.b32.xlu0 %v4270, 116
  %v4310 = vpop.permute.xlu0 %4309
  %v4311 = vsel %vm141, %v4306, %v4308
  %v4312 = vsel %vm141, %v4308, %v4310
  %4313 = vrot.lane.b32.xlu0 %v4269, 108
  %v4314 = vpop.permute.xlu0 %4313
  %4315 = vrot.lane.b32.xlu0 %v4266, 108
  %v4316 = vpop.permute.xlu0 %4315
  %4317 = vrot.lane.b32.xlu0 %v4270, 108
  %v4318 = vpop.permute.xlu0 %4317
  %v4319 = vsel %vm150, %v4314, %v4316
  %v4320 = vsel %vm150, %v4316, %v4318
  %4321 = vrot.lane.b32.xlu0 %v4269, 107
  %v4322 = vpop.permute.xlu0 %4321
  %4323 = vrot.lane.b32.xlu0 %v4266, 107
  %v4324 = vpop.permute.xlu0 %4323
  %4325 = vrot.lane.b32.xlu0 %v4270, 107
  %v4326 = vpop.permute.xlu0 %4325
  %v4327 = vsel %vm159, %v4322, %v4324
  %v4328 = vsel %vm159, %v4324, %v4326
  %4329 = vrot.lane.b32.xlu0 %v4269, 106
  %v4330 = vpop.permute.xlu0 %4329
  %4331 = vrot.lane.b32.xlu0 %v4266, 106
  %v4332 = vpop.permute.xlu0 %4331
  %4333 = vrot.lane.b32.xlu0 %v4270, 106
  %v4334 = vpop.permute.xlu0 %4333
  %v4335 = vsel %vm168, %v4330, %v4332
  %v4336 = vsel %vm168, %v4332, %v4334
  %s4337 = scalar_lea.vmem %s6, 192
  %v4338 = vld [vmem:[%s4337] sm:$0xff]
  %v4339 = vld [vmem:[%s4337 + $0x8] sm:$0xff]
  %v4340 = vld [vmem:[%s4337 + $0x10] sm:$0xff]
  %v4341 = vld [vmem:[%s4337 + $0x18] sm:$0xff]
  %v4342 = vld [vmem:[%s4337 + $0x20] sm:$0xff]
  %v4343 = vld [vmem:[%s4337 + $0x28] sm:$0xff]
  %v4344 = vld [vmem:[%s4337 + $0x30] sm:$0xff]
  %v4345 = vld [vmem:[%s4337 + $0x38] sm:$0xff]
  %s4346 = scalar_lea.vmem %s3, 96
  %v4347 = vld [vmem:[%s4346] sm:$0xff]
  %v4348 = vld [vmem:[%s4346 + $0x8] sm:$0xff]
  %v4349 = vld [vmem:[%s4346 + $0x10] sm:$0xff]
  %v4350 = vld [vmem:[%s4346 + $0x18] sm:$0xff]
  %4352 = vset.pattern.permute.xlu0 0
  %4353 = vperm.xlu0 %4352, %v4338
  %v4354 = vpop.permute.xlu0 %4353
  %4357 = vset.pattern.permute.xlu0 0
  %4358 = vperm.xlu0 %4357, %v4339
  %v4359 = vpop.permute.xlu0 %4358
  %4361 = vrot.lane.b32.xlu0 %v4269, 123
  %v4362 = vpop.permute.xlu0 %4361
  %4363 = vrot.lane.b32.xlu0 %v4266, 123
  %v4364 = vpop.permute.xlu0 %4363
  %4365 = vrot.lane.b32.xlu0 %v4270, 123
  %v4366 = vpop.permute.xlu0 %4365
  %4367 = vrot.lane.b32.xlu0 %v4279, 123
  %v4368 = vpop.permute.xlu0 %4367
  %4369 = vrot.lane.b32.xlu0 %v4280, 123
  %v4370 = vpop.permute.xlu0 %4369
  %4371 = vrot.lane.b32.xlu0 %v4278, 123
  %v4372 = vpop.permute.xlu0 %4371
  %4373 = vrot.lane.b32.xlu0 %v4287, 123
  %v4374 = vpop.permute.xlu0 %4373
  %4375 = vrot.lane.b32.xlu0 %v4288, 123
  %v4376 = vpop.permute.xlu0 %4375
  %4377 = vrot.lane.b32.xlu0 %v4286, 123
  %v4378 = vpop.permute.xlu0 %4377
  %4379 = vrot.lane.b32.xlu0 %v4295, 123
  %v4380 = vpop.permute.xlu0 %4379
  %4381 = vrot.lane.b32.xlu0 %v4296, 123
  %v4382 = vpop.permute.xlu0 %4381
  %4383 = vrot.lane.b32.xlu0 %v4294, 123
  %v4384 = vpop.permute.xlu0 %4383
  %4385 = vrot.lane.b32.xlu0 %v4303, 123
  %v4386 = vpop.permute.xlu0 %4385
  %4387 = vrot.lane.b32.xlu0 %v4304, 123
  %v4388 = vpop.permute.xlu0 %4387
  %4389 = vrot.lane.b32.xlu0 %v4302, 123
  %v4390 = vpop.permute.xlu0 %4389
  %4391 = vrot.lane.b32.xlu0 %v4311, 123
  %v4392 = vpop.permute.xlu0 %4391
  %4393 = vrot.lane.b32.xlu0 %v4312, 123
  %v4394 = vpop.permute.xlu0 %4393
  %4395 = vrot.lane.b32.xlu0 %v4310, 123
  %v4396 = vpop.permute.xlu0 %4395
  %4397 = vrot.lane.b32.xlu0 %v4319, 123
  %v4398 = vpop.permute.xlu0 %4397
  %4399 = vrot.lane.b32.xlu0 %v4320, 123
  %v4400 = vpop.permute.xlu0 %4399
  %4401 = vrot.lane.b32.xlu0 %v4318, 123
  %v4402 = vpop.permute.xlu0 %4401
  %4403 = vrot.lane.b32.xlu0 %v4327, 123
  %v4404 = vpop.permute.xlu0 %4403
  %4405 = vrot.lane.b32.xlu0 %v4328, 123
  %v4406 = vpop.permute.xlu0 %4405
  %4407 = vrot.lane.b32.xlu0 %v4326, 123
  %v4408 = vpop.permute.xlu0 %4407
  %4409 = vrot.lane.b32.xlu0 %v4335, 123
  %v4410 = vpop.permute.xlu0 %4409
  %4411 = vrot.lane.b32.xlu0 %v4336, 123
  %v4412 = vpop.permute.xlu0 %4411
  %4413 = vrot.lane.b32.xlu0 %v4334, 123
  %v4414 = vpop.permute.xlu0 %4413
  %v4415 = vsel %vm432, %v4362, %v4364
  %v4416 = vsel %vm432, %v4364, %v4366
  %v4417 = vsel %vm432, %v4368, %v4370
  %v4418 = vsel %vm432, %v4370, %v4372
  %v4419 = vsel %vm432, %v4374, %v4376
  %v4420 = vsel %vm432, %v4376, %v4378
  %v4421 = vsel %vm432, %v4380, %v4382
  %v4422 = vsel %vm432, %v4382, %v4384
  %v4423 = vsel %vm432, %v4386, %v4388
  %v4424 = vsel %vm432, %v4388, %v4390
  %v4425 = vsel %vm432, %v4392, %v4394
  %v4426 = vsel %vm432, %v4394, %v4396
  %v4427 = vsel %vm432, %v4398, %v4400
  %v4428 = vsel %vm432, %v4400, %v4402
  %v4429 = vsel %vm432, %v4404, %v4406
  %v4430 = vsel %vm432, %v4406, %v4408
  %v4431 = vsel %vm432, %v4410, %v4412
  %v4432 = vsel %vm432, %v4412, %v4414
  %v4452 = vsel %vm91, %v4348, 0
  %v4455 = vsel %vm91, %v4350, 0
  %4457 = vmatpush.msra.mxu0 %v463
  %4458 = vmatpush.msra.mxu0 %v461
  %4459 = vmatpush.msra.mxu0 %v459
  %4460 = vmatpush.msra.mxu0 %v457
  %4461 = vmatpush.msra.mxu0 %v455
  %4462 = vmatpush.msra.mxu0 %v453
  %4463 = vmatpush.msra.mxu0 %v451
  %4464 = vmatpush.msra.mxu0 %v4431
  %4465 = vmatpush.msra.mxu0 %v4429
  %4466 = vmatpush.msra.mxu0 %v4427
  %4467 = vmatpush.msra.mxu0 %v4425
  %4468 = vmatpush.msra.mxu0 %v4423
  %4469 = vmatpush.msra.mxu0 %v4421
  %4470 = vmatpush.msra.mxu0 %v4419
  %4471 = vmatpush.msra.mxu0 %v4417
  %4472 = vmatpush.msra.mxu0 %v4415
  %4473 = vmatmul.f32.gmra.mxu0 %v4347
  %v4474 = vpop.f32.mrf.mxu0
  %v4475 = vadd.f32 %v4354, %v4474
  %4476 = vmatmul.f32.gmra.mxu0 %v4349
  %v4477 = vpop.f32.mrf.mxu0
  %v4478 = vadd.f32 %v4359, %v4477
  %4479 = vdwg.mxu0
  %4480 = vmatpush.msra.mxu0 0.0
  %4481 = vmatpush.msra.mxu0 0.0
  %4482 = vmatpush.msra.mxu0 0.0
  %4483 = vmatpush.msra.mxu0 0.0
  %4484 = vmatpush.msra.mxu0 0.0
  %4485 = vmatpush.msra.mxu0 0.0
  %4486 = vmatpush.msra.mxu0 0.0
  %4487 = vmatpush.msra.mxu0 0.0
  %4488 = vmatpush.msra.mxu0 0.0
  %4489 = vmatpush.msra.mxu0 0.0
  %4490 = vmatpush.msra.mxu0 0.0
  %4491 = vmatpush.msra.mxu0 0.0
  %4492 = vmatpush.msra.mxu0 0.0
  %4493 = vmatpush.msra.mxu0 0.0
  %4494 = vmatpush.msra.mxu0 %v467
  %4495 = vmatpush.msra.mxu0 %v465
  %4496 = vmatmul.f32.gmra.mxu0 %v4452
  %v4497 = vpop.f32.mrf.mxu0
  %v4498 = vadd.f32 %v4475, %v4497
  %4499 = vmatmul.f32.gmra.mxu0 %v4455
  %v4500 = vpop.f32.mrf.mxu0
  %v4501 = vadd.f32 %v4478, %v4500
  %4502 = vdwg.mxu0
  %4503 = vmatpush.msra.mxu0 %v464
  %4504 = vmatpush.msra.mxu0 %v462
  %4505 = vmatpush.msra.mxu0 %v460
  %4506 = vmatpush.msra.mxu0 %v458
  %4507 = vmatpush.msra.mxu0 %v456
  %4508 = vmatpush.msra.mxu0 %v454
  %4509 = vmatpush.msra.mxu0 %v452
  %4510 = vmatpush.msra.mxu0 %v4432
  %4511 = vmatpush.msra.mxu0 %v4430
  %4512 = vmatpush.msra.mxu0 %v4428
  %4513 = vmatpush.msra.mxu0 %v4426
  %4514 = vmatpush.msra.mxu0 %v4424
  %4515 = vmatpush.msra.mxu0 %v4422
  %4516 = vmatpush.msra.mxu0 %v4420
  %4517 = vmatpush.msra.mxu0 %v4418
  %4518 = vmatpush.msra.mxu0 %v4416
  %4519 = vmatmul.f32.gmra.mxu0 %v4347
  %v4520 = vpop.f32.mrf.mxu0
  %v4521 = vadd.f32 %v4354, %v4520
  %4522 = vmatmul.f32.gmra.mxu0 %v4349
  %v4523 = vpop.f32.mrf.mxu0
  %v4524 = vadd.f32 %v4359, %v4523
  %4525 = vdwg.mxu0
  %4526 = vmatpush.msra.mxu0 0.0
  %4527 = vmatpush.msra.mxu0 0.0
  %4528 = vmatpush.msra.mxu0 0.0
  %4529 = vmatpush.msra.mxu0 0.0
  %4530 = vmatpush.msra.mxu0 0.0
  %4531 = vmatpush.msra.mxu0 0.0
  %4532 = vmatpush.msra.mxu0 0.0
  %4533 = vmatpush.msra.mxu0 0.0
  %4534 = vmatpush.msra.mxu0 0.0
  %4535 = vmatpush.msra.mxu0 0.0
  %4536 = vmatpush.msra.mxu0 0.0
  %4537 = vmatpush.msra.mxu0 0.0
  %4538 = vmatpush.msra.mxu0 0.0
  %4539 = vmatpush.msra.mxu0 0.0
  %4540 = vmatpush.msra.mxu0 %v468
  %4541 = vmatpush.msra.mxu0 %v466
  %4542 = vmatmul.f32.gmra.mxu0 %v4452
  %v4543 = vpop.f32.mrf.mxu0
  %v4544 = vadd.f32 %v4521, %v4543
  %4545 = vmatmul.f32.gmra.mxu0 %v4455
  %v4546 = vpop.f32.mrf.mxu0
  %v4547 = vadd.f32 %v4524, %v4546
  %4548 = vdwg.mxu0
  %v4549 = vmax.f32 %v4498, 0.0
  %v4550 = vmax.f32 %v4544, 0.0
  %v4551 = vmax.f32 %v4501, 0.0
  %v4552 = vmax.f32 %v4547, 0.0
  %v4553 = vmul.f32 %v4549, %v607
  %v4554 = vmul.f32 %v4550, %v608
  %v4555 = vmul.f32 %v4551, %v607
  %v4556 = vmul.f32 %v4552, %v608
  %s4557 = scalar_lea.vmem %s4, 96
  %v4558 = vld [vmem:[%s4557] sm:$0xff]
  %v4559 = vld [vmem:[%s4557 + $0x8] sm:$0xff]
  %v4560 = vld [vmem:[%s4557 + $0x10] sm:$0xff]
  %v4561 = vld [vmem:[%s4557 + $0x18] sm:$0xff]
  %4563 = vset.pattern.permute.xlu0 0
  %4564 = vperm.xlu0 %4563, %v4340
  %v4565 = vpop.permute.xlu0 %4564
  %4568 = vset.pattern.permute.xlu0 0
  %4569 = vperm.xlu0 %4568, %v4341
  %v4570 = vpop.permute.xlu0 %4569
  %4573 = vset.pattern.permute.xlu0 0
  %4574 = vperm.xlu0 %4573, %v4342
  %v4575 = vpop.permute.xlu0 %4574
  %4578 = vset.pattern.permute.xlu0 0
  %4579 = vperm.xlu0 %4578, %v4343
  %v4580 = vpop.permute.xlu0 %4579
  %v4583 = vsel %vm91, %v4558, 0
  %v4586 = vsel %vm91, %v4559, 0
  %v4589 = vsel %vm91, %v4560, 0
  %v4592 = vsel %vm91, %v4561, 0
  %4594 = vmatpush.msra.mxu0 0.0
  %4595 = vmatpush.msra.mxu0 0.0
  %4596 = vmatpush.msra.mxu0 0.0
  %4597 = vmatpush.msra.mxu0 0.0
  %4598 = vmatpush.msra.mxu0 0.0
  %4599 = vmatpush.msra.mxu0 0.0
  %4600 = vmatpush.msra.mxu0 0.0
  %4601 = vmatpush.msra.mxu0 0.0
  %4602 = vmatpush.msra.mxu0 0.0
  %4603 = vmatpush.msra.mxu0 0.0
  %4604 = vmatpush.msra.mxu0 0.0
  %4605 = vmatpush.msra.mxu0 0.0
  %4606 = vmatpush.msra.mxu0 0.0
  %4607 = vmatpush.msra.mxu0 0.0
  %4608 = vmatpush.msra.mxu0 %v4555
  %4609 = vmatpush.msra.mxu0 %v4553
  %4610 = vmatmul.f32.gmra.mxu0 %v4583
  %v4611 = vpop.f32.mrf.mxu0
  %v4612 = vadd.f32 %v4565, %v4611
  %4613 = vmatmul.f32.gmra.mxu0 %v4586
  %v4614 = vpop.f32.mrf.mxu0
  %v4615 = vadd.f32 %v4570, %v4614
  %4616 = vmatmul.f32.gmra.mxu0 %v4589
  %v4617 = vpop.f32.mrf.mxu0
  %v4618 = vadd.f32 %v4575, %v4617
  %4619 = vmatmul.f32.gmra.mxu0 %v4592
  %v4620 = vpop.f32.mrf.mxu0
  %v4621 = vadd.f32 %v4580, %v4620
  %4622 = vdwg.mxu0
  %4623 = vmatpush.msra.mxu0 0.0
  %4624 = vmatpush.msra.mxu0 0.0
  %4625 = vmatpush.msra.mxu0 0.0
  %4626 = vmatpush.msra.mxu0 0.0
  %4627 = vmatpush.msra.mxu0 0.0
  %4628 = vmatpush.msra.mxu0 0.0
  %4629 = vmatpush.msra.mxu0 0.0
  %4630 = vmatpush.msra.mxu0 0.0
  %4631 = vmatpush.msra.mxu0 0.0
  %4632 = vmatpush.msra.mxu0 0.0
  %4633 = vmatpush.msra.mxu0 0.0
  %4634 = vmatpush.msra.mxu0 0.0
  %4635 = vmatpush.msra.mxu0 0.0
  %4636 = vmatpush.msra.mxu0 0.0
  %4637 = vmatpush.msra.mxu0 %v4556
  %4638 = vmatpush.msra.mxu0 %v4554
  %4639 = vmatmul.f32.gmra.mxu0 %v4583
  %v4640 = vpop.f32.mrf.mxu0
  %v4641 = vadd.f32 %v4565, %v4640
  %4642 = vmatmul.f32.gmra.mxu0 %v4586
  %v4643 = vpop.f32.mrf.mxu0
  %v4644 = vadd.f32 %v4570, %v4643
  %4645 = vmatmul.f32.gmra.mxu0 %v4589
  %v4646 = vpop.f32.mrf.mxu0
  %v4647 = vadd.f32 %v4575, %v4646
  %4648 = vmatmul.f32.gmra.mxu0 %v4592
  %v4649 = vpop.f32.mrf.mxu0
  %v4650 = vadd.f32 %v4580, %v4649
  %4651 = vdwg.mxu0
  %v4652 = vmax.f32 %v4612, 0.0
  %v4653 = vmax.f32 %v4641, 0.0
  %v4654 = vmax.f32 %v4615, 0.0
  %v4655 = vmax.f32 %v4644, 0.0
  %v4656 = vmax.f32 %v4618, 0.0
  %v4657 = vmax.f32 %v4647, 0.0
  %v4658 = vmax.f32 %v4621, 0.0
  %v4659 = vmax.f32 %v4650, 0.0
  %v4660 = vmul.f32 %v4652, %v607
  %v4661 = vmul.f32 %v4653, %v608
  %v4662 = vmul.f32 %v4654, %v607
  %v4663 = vmul.f32 %v4655, %v608
  %v4664 = vmul.f32 %v4656, %v607
  %v4665 = vmul.f32 %v4657, %v608
  %v4666 = vmul.f32 %v4658, %v607
  %v4667 = vmul.f32 %v4659, %v608
  %s4668 = scalar_lea.vmem %s5, 144
  %v4669 = vld [vmem:[%s4668] sm:$0xff]
  %v4670 = vld [vmem:[%s4668 + $0x8] sm:$0xff]
  %v4671 = vld [vmem:[%s4668 + $0x10] sm:$0xff]
  %v4672 = vld [vmem:[%s4668 + $0x18] sm:$0xff]
  %v4673 = vld [vmem:[%s4668 + $0x20] sm:$0xff]
  %v4674 = vld [vmem:[%s4668 + $0x28] sm:$0xff]
  %4683 = vrot.lane.b32.xlu0 %v4660, 16
  %v4684 = vpop.permute.xlu0 %4683
  %4685 = vrot.lane.b32.xlu0 %v4661, 16
  %v4686 = vpop.permute.xlu0 %4685
  %4687 = vrot.lane.b32.xlu0 %v4662, 16
  %v4688 = vpop.permute.xlu0 %4687
  %4689 = vrot.lane.b32.xlu0 %v4663, 16
  %v4690 = vpop.permute.xlu0 %4689
  %4691 = vrot.lane.b32.xlu0 %v4664, 16
  %v4692 = vpop.permute.xlu0 %4691
  %4693 = vrot.lane.b32.xlu0 %v4665, 16
  %v4694 = vpop.permute.xlu0 %4693
  %4695 = vrot.lane.b32.xlu0 %v4666, 16
  %v4696 = vpop.permute.xlu0 %4695
  %4697 = vrot.lane.b32.xlu0 %v4667, 16
  %v4698 = vpop.permute.xlu0 %4697
  %v4699 = vsel %vm91, %v4684, %v4686
  %v4700 = vsel %vm91, %v4688, %v4690
  %v4701 = vsel %vm91, %v4692, %v4694
  %v4702 = vsel %vm91, %v4696, %v4698
  %v4711 = vsel %vm91, 0.0, %v4684
  %v4712 = vsel %vm91, 0.0, %v4688
  %v4713 = vsel %vm91, 0.0, %v4692
  %v4714 = vsel %vm91, 0.0, %v4696
  %v4715 = vsel %vm91, %v4686, 0.0
  %v4716 = vsel %vm91, %v4690, 0.0
  %v4717 = vsel %vm91, %v4694, 0.0
  %v4718 = vsel %vm91, %v4698, 0.0
  %4727 = vrot.lane.b32.xlu0 %v4711, 127
  %v4728 = vpop.permute.xlu0 %4727
  %4729 = vrot.lane.b32.xlu0 %v4699, 127
  %v4730 = vpop.permute.xlu0 %4729
  %4731 = vrot.lane.b32.xlu0 %v4715, 127
  %v4732 = vpop.permute.xlu0 %4731
  %4733 = vrot.lane.b32.xlu0 %v4712, 127
  %v4734 = vpop.permute.xlu0 %4733
  %4735 = vrot.lane.b32.xlu0 %v4700, 127
  %v4736 = vpop.permute.xlu0 %4735
  %4737 = vrot.lane.b32.xlu0 %v4716, 127
  %v4738 = vpop.permute.xlu0 %4737
  %4739 = vrot.lane.b32.xlu0 %v4713, 127
  %v4740 = vpop.permute.xlu0 %4739
  %4741 = vrot.lane.b32.xlu0 %v4701, 127
  %v4742 = vpop.permute.xlu0 %4741
  %4743 = vrot.lane.b32.xlu0 %v4717, 127
  %v4744 = vpop.permute.xlu0 %4743
  %4745 = vrot.lane.b32.xlu0 %v4714, 127
  %v4746 = vpop.permute.xlu0 %4745
  %4747 = vrot.lane.b32.xlu0 %v4702, 127
  %v4748 = vpop.permute.xlu0 %4747
  %4749 = vrot.lane.b32.xlu0 %v4718, 127
  %v4750 = vpop.permute.xlu0 %4749
  %v4751 = vsel %vm105, %v4728, %v4730
  %v4752 = vsel %vm105, %v4730, %v4732
  %v4753 = vsel %vm105, %v4734, %v4736
  %v4754 = vsel %vm105, %v4736, %v4738
  %v4755 = vsel %vm105, %v4740, %v4742
  %v4756 = vsel %vm105, %v4742, %v4744
  %v4757 = vsel %vm105, %v4746, %v4748
  %v4758 = vsel %vm105, %v4748, %v4750
  %4759 = vrot.lane.b32.xlu0 %v4711, 126
  %v4760 = vpop.permute.xlu0 %4759
  %4761 = vrot.lane.b32.xlu0 %v4699, 126
  %v4762 = vpop.permute.xlu0 %4761
  %4763 = vrot.lane.b32.xlu0 %v4715, 126
  %v4764 = vpop.permute.xlu0 %4763
  %4765 = vrot.lane.b32.xlu0 %v4712, 126
  %v4766 = vpop.permute.xlu0 %4765
  %4767 = vrot.lane.b32.xlu0 %v4700, 126
  %v4768 = vpop.permute.xlu0 %4767
  %4769 = vrot.lane.b32.xlu0 %v4716, 126
  %v4770 = vpop.permute.xlu0 %4769
  %4771 = vrot.lane.b32.xlu0 %v4713, 126
  %v4772 = vpop.permute.xlu0 %4771
  %4773 = vrot.lane.b32.xlu0 %v4701, 126
  %v4774 = vpop.permute.xlu0 %4773
  %4775 = vrot.lane.b32.xlu0 %v4717, 126
  %v4776 = vpop.permute.xlu0 %4775
  %4777 = vrot.lane.b32.xlu0 %v4714, 126
  %v4778 = vpop.permute.xlu0 %4777
  %4779 = vrot.lane.b32.xlu0 %v4702, 126
  %v4780 = vpop.permute.xlu0 %4779
  %4781 = vrot.lane.b32.xlu0 %v4718, 126
  %v4782 = vpop.permute.xlu0 %4781
  %v4783 = vsel %vm114, %v4760, %v4762
  %v4784 = vsel %vm114, %v4762, %v4764
  %v4785 = vsel %vm114, %v4766, %v4768
  %v4786 = vsel %vm114, %v4768, %v4770
  %v4787 = vsel %vm114, %v4772, %v4774
  %v4788 = vsel %vm114, %v4774, %v4776
  %v4789 = vsel %vm114, %v4778, %v4780
  %v4790 = vsel %vm114, %v4780, %v4782
  %4791 = vrot.lane.b32.xlu0 %v4711, 118
  %v4792 = vpop.permute.xlu0 %4791
  %4793 = vrot.lane.b32.xlu0 %v4699, 118
  %v4794 = vpop.permute.xlu0 %4793
  %4795 = vrot.lane.b32.xlu0 %v4715, 118
  %v4796 = vpop.permute.xlu0 %4795
  %4797 = vrot.lane.b32.xlu0 %v4712, 118
  %v4798 = vpop.permute.xlu0 %4797
  %4799 = vrot.lane.b32.xlu0 %v4700, 118
  %v4800 = vpop.permute.xlu0 %4799
  %4801 = vrot.lane.b32.xlu0 %v4716, 118
  %v4802 = vpop.permute.xlu0 %4801
  %4803 = vrot.lane.b32.xlu0 %v4713, 118
  %v4804 = vpop.permute.xlu0 %4803
  %4805 = vrot.lane.b32.xlu0 %v4701, 118
  %v4806 = vpop.permute.xlu0 %4805
  %4807 = vrot.lane.b32.xlu0 %v4717, 118
  %v4808 = vpop.permute.xlu0 %4807
  %4809 = vrot.lane.b32.xlu0 %v4714, 118
  %v4810 = vpop.permute.xlu0 %4809
  %4811 = vrot.lane.b32.xlu0 %v4702, 118
  %v4812 = vpop.permute.xlu0 %4811
  %4813 = vrot.lane.b32.xlu0 %v4718, 118
  %v4814 = vpop.permute.xlu0 %4813
  %v4815 = vsel %vm123, %v4792, %v4794
  %v4816 = vsel %vm123, %v4794, %v4796
  %v4817 = vsel %vm123, %v4798, %v4800
  %v4818 = vsel %vm123, %v4800, %v4802
  %v4819 = vsel %vm123, %v4804, %v4806
  %v4820 = vsel %vm123, %v4806, %v4808
  %v4821 = vsel %vm123, %v4810, %v4812
  %v4822 = vsel %vm123, %v4812, %v4814
  %4823 = vrot.lane.b32.xlu0 %v4711, 117
  %v4824 = vpop.permute.xlu0 %4823
  %4825 = vrot.lane.b32.xlu0 %v4699, 117
  %v4826 = vpop.permute.xlu0 %4825
  %4827 = vrot.lane.b32.xlu0 %v4715, 117
  %v4828 = vpop.permute.xlu0 %4827
  %4829 = vrot.lane.b32.xlu0 %v4712, 117
  %v4830 = vpop.permute.xlu0 %4829
  %4831 = vrot.lane.b32.xlu0 %v4700, 117
  %v4832 = vpop.permute.xlu0 %4831
  %4833 = vrot.lane.b32.xlu0 %v4716, 117
  %v4834 = vpop.permute.xlu0 %4833
  %4835 = vrot.lane.b32.xlu0 %v4713, 117
  %v4836 = vpop.permute.xlu0 %4835
  %4837 = vrot.lane.b32.xlu0 %v4701, 117
  %v4838 = vpop.permute.xlu0 %4837
  %4839 = vrot.lane.b32.xlu0 %v4717, 117
  %v4840 = vpop.permute.xlu0 %4839
  %4841 = vrot.lane.b32.xlu0 %v4714, 117
  %v4842 = vpop.permute.xlu0 %4841
  %4843 = vrot.lane.b32.xlu0 %v4702, 117
  %v4844 = vpop.permute.xlu0 %4843
  %4845 = vrot.lane.b32.xlu0 %v4718, 117
  %v4846 = vpop.permute.xlu0 %4845
  %v4847 = vsel %vm132, %v4824, %v4826
  %v4848 = vsel %vm132, %v4826, %v4828
  %v4849 = vsel %vm132, %v4830, %v4832
  %v4850 = vsel %vm132, %v4832, %v4834
  %v4851 = vsel %vm132, %v4836, %v4838
  %v4852 = vsel %vm132, %v4838, %v4840
  %v4853 = vsel %vm132, %v4842, %v4844
  %v4854 = vsel %vm132, %v4844, %v4846
  %4855 = vrot.lane.b32.xlu0 %v4711, 116
  %v4856 = vpop.permute.xlu0 %4855
  %4857 = vrot.lane.b32.xlu0 %v4699, 116
  %v4858 = vpop.permute.xlu0 %4857
  %4859 = vrot.lane.b32.xlu0 %v4715, 116
  %v4860 = vpop.permute.xlu0 %4859
  %4861 = vrot.lane.b32.xlu0 %v4712, 116
  %v4862 = vpop.permute.xlu0 %4861
  %4863 = vrot.lane.b32.xlu0 %v4700, 116
  %v4864 = vpop.permute.xlu0 %4863
  %4865 = vrot.lane.b32.xlu0 %v4716, 116
  %v4866 = vpop.permute.xlu0 %4865
  %4867 = vrot.lane.b32.xlu0 %v4713, 116
  %v4868 = vpop.permute.xlu0 %4867
  %4869 = vrot.lane.b32.xlu0 %v4701, 116
  %v4870 = vpop.permute.xlu0 %4869
  %4871 = vrot.lane.b32.xlu0 %v4717, 116
  %v4872 = vpop.permute.xlu0 %4871
  %4873 = vrot.lane.b32.xlu0 %v4714, 116
  %v4874 = vpop.permute.xlu0 %4873
  %4875 = vrot.lane.b32.xlu0 %v4702, 116
  %v4876 = vpop.permute.xlu0 %4875
  %4877 = vrot.lane.b32.xlu0 %v4718, 116
  %v4878 = vpop.permute.xlu0 %4877
  %v4879 = vsel %vm141, %v4856, %v4858
  %v4880 = vsel %vm141, %v4858, %v4860
  %v4881 = vsel %vm141, %v4862, %v4864
  %v4882 = vsel %vm141, %v4864, %v4866
  %v4883 = vsel %vm141, %v4868, %v4870
  %v4884 = vsel %vm141, %v4870, %v4872
  %v4885 = vsel %vm141, %v4874, %v4876
  %v4886 = vsel %vm141, %v4876, %v4878
  %4887 = vrot.lane.b32.xlu0 %v4711, 108
  %v4888 = vpop.permute.xlu0 %4887
  %4889 = vrot.lane.b32.xlu0 %v4699, 108
  %v4890 = vpop.permute.xlu0 %4889
  %4891 = vrot.lane.b32.xlu0 %v4715, 108
  %v4892 = vpop.permute.xlu0 %4891
  %4893 = vrot.lane.b32.xlu0 %v4712, 108
  %v4894 = vpop.permute.xlu0 %4893
  %4895 = vrot.lane.b32.xlu0 %v4700, 108
  %v4896 = vpop.permute.xlu0 %4895
  %4897 = vrot.lane.b32.xlu0 %v4716, 108
  %v4898 = vpop.permute.xlu0 %4897
  %4899 = vrot.lane.b32.xlu0 %v4713, 108
  %v4900 = vpop.permute.xlu0 %4899
  %4901 = vrot.lane.b32.xlu0 %v4701, 108
  %v4902 = vpop.permute.xlu0 %4901
  %4903 = vrot.lane.b32.xlu0 %v4717, 108
  %v4904 = vpop.permute.xlu0 %4903
  %4905 = vrot.lane.b32.xlu0 %v4714, 108
  %v4906 = vpop.permute.xlu0 %4905
  %4907 = vrot.lane.b32.xlu0 %v4702, 108
  %v4908 = vpop.permute.xlu0 %4907
  %4909 = vrot.lane.b32.xlu0 %v4718, 108
  %v4910 = vpop.permute.xlu0 %4909
  %v4911 = vsel %vm150, %v4888, %v4890
  %v4912 = vsel %vm150, %v4890, %v4892
  %v4913 = vsel %vm150, %v4894, %v4896
  %v4914 = vsel %vm150, %v4896, %v4898
  %v4915 = vsel %vm150, %v4900, %v4902
  %v4916 = vsel %vm150, %v4902, %v4904
  %v4917 = vsel %vm150, %v4906, %v4908
  %v4918 = vsel %vm150, %v4908, %v4910
  %4919 = vrot.lane.b32.xlu0 %v4711, 107
  %v4920 = vpop.permute.xlu0 %4919
  %4921 = vrot.lane.b32.xlu0 %v4699, 107
  %v4922 = vpop.permute.xlu0 %4921
  %4923 = vrot.lane.b32.xlu0 %v4715, 107
  %v4924 = vpop.permute.xlu0 %4923
  %4925 = vrot.lane.b32.xlu0 %v4712, 107
  %v4926 = vpop.permute.xlu0 %4925
  %4927 = vrot.lane.b32.xlu0 %v4700, 107
  %v4928 = vpop.permute.xlu0 %4927
  %4929 = vrot.lane.b32.xlu0 %v4716, 107
  %v4930 = vpop.permute.xlu0 %4929
  %4931 = vrot.lane.b32.xlu0 %v4713, 107
  %v4932 = vpop.permute.xlu0 %4931
  %4933 = vrot.lane.b32.xlu0 %v4701, 107
  %v4934 = vpop.permute.xlu0 %4933
  %4935 = vrot.lane.b32.xlu0 %v4717, 107
  %v4936 = vpop.permute.xlu0 %4935
  %4937 = vrot.lane.b32.xlu0 %v4714, 107
  %v4938 = vpop.permute.xlu0 %4937
  %4939 = vrot.lane.b32.xlu0 %v4702, 107
  %v4940 = vpop.permute.xlu0 %4939
  %4941 = vrot.lane.b32.xlu0 %v4718, 107
  %v4942 = vpop.permute.xlu0 %4941
  %v4943 = vsel %vm159, %v4920, %v4922
  %v4944 = vsel %vm159, %v4922, %v4924
  %v4945 = vsel %vm159, %v4926, %v4928
  %v4946 = vsel %vm159, %v4928, %v4930
  %v4947 = vsel %vm159, %v4932, %v4934
  %v4948 = vsel %vm159, %v4934, %v4936
  %v4949 = vsel %vm159, %v4938, %v4940
  %v4950 = vsel %vm159, %v4940, %v4942
  %4951 = vrot.lane.b32.xlu0 %v4711, 106
  %v4952 = vpop.permute.xlu0 %4951
  %4953 = vrot.lane.b32.xlu0 %v4699, 106
  %v4954 = vpop.permute.xlu0 %4953
  %4955 = vrot.lane.b32.xlu0 %v4715, 106
  %v4956 = vpop.permute.xlu0 %4955
  %4957 = vrot.lane.b32.xlu0 %v4712, 106
  %v4958 = vpop.permute.xlu0 %4957
  %4959 = vrot.lane.b32.xlu0 %v4700, 106
  %v4960 = vpop.permute.xlu0 %4959
  %4961 = vrot.lane.b32.xlu0 %v4716, 106
  %v4962 = vpop.permute.xlu0 %4961
  %4963 = vrot.lane.b32.xlu0 %v4713, 106
  %v4964 = vpop.permute.xlu0 %4963
  %4965 = vrot.lane.b32.xlu0 %v4701, 106
  %v4966 = vpop.permute.xlu0 %4965
  %4967 = vrot.lane.b32.xlu0 %v4717, 106
  %v4968 = vpop.permute.xlu0 %4967
  %4969 = vrot.lane.b32.xlu0 %v4714, 106
  %v4970 = vpop.permute.xlu0 %4969
  %4971 = vrot.lane.b32.xlu0 %v4702, 106
  %v4972 = vpop.permute.xlu0 %4971
  %4973 = vrot.lane.b32.xlu0 %v4718, 106
  %v4974 = vpop.permute.xlu0 %4973
  %v4975 = vsel %vm168, %v4952, %v4954
  %v4976 = vsel %vm168, %v4954, %v4956
  %v4977 = vsel %vm168, %v4958, %v4960
  %v4978 = vsel %vm168, %v4960, %v4962
  %v4979 = vsel %vm168, %v4964, %v4966
  %v4980 = vsel %vm168, %v4966, %v4968
  %v4981 = vsel %vm168, %v4970, %v4972
  %v4982 = vsel %vm168, %v4972, %v4974
  %4984 = vset.pattern.permute.xlu0 0
  %4985 = vperm.xlu0 %4984, %v4344
  %v4986 = vpop.permute.xlu0 %4985
  %4989 = vset.pattern.permute.xlu0 0
  %4990 = vperm.xlu0 %4989, %v4345
  %v4991 = vpop.permute.xlu0 %4990
  %4993 = vrot.lane.b32.xlu0 %v4711, 123
  %v4994 = vpop.permute.xlu0 %4993
  %4995 = vrot.lane.b32.xlu0 %v4699, 123
  %v4996 = vpop.permute.xlu0 %4995
  %4997 = vrot.lane.b32.xlu0 %v4715, 123
  %v4998 = vpop.permute.xlu0 %4997
  %4999 = vrot.lane.b32.xlu0 %v4712, 123
  %v5000 = vpop.permute.xlu0 %4999
  %5001 = vrot.lane.b32.xlu0 %v4700, 123
  %v5002 = vpop.permute.xlu0 %5001
  %5003 = vrot.lane.b32.xlu0 %v4716, 123
  %v5004 = vpop.permute.xlu0 %5003
  %5005 = vrot.lane.b32.xlu0 %v4713, 123
  %v5006 = vpop.permute.xlu0 %5005
  %5007 = vrot.lane.b32.xlu0 %v4701, 123
  %v5008 = vpop.permute.xlu0 %5007
  %5009 = vrot.lane.b32.xlu0 %v4717, 123
  %v5010 = vpop.permute.xlu0 %5009
  %5011 = vrot.lane.b32.xlu0 %v4714, 123
  %v5012 = vpop.permute.xlu0 %5011
  %5013 = vrot.lane.b32.xlu0 %v4702, 123
  %v5014 = vpop.permute.xlu0 %5013
  %5015 = vrot.lane.b32.xlu0 %v4718, 123
  %v5016 = vpop.permute.xlu0 %5015
  %5017 = vrot.lane.b32.xlu0 %v4751, 123
  %v5018 = vpop.permute.xlu0 %5017
  %5019 = vrot.lane.b32.xlu0 %v4752, 123
  %v5020 = vpop.permute.xlu0 %5019
  %5021 = vrot.lane.b32.xlu0 %v4732, 123
  %v5022 = vpop.permute.xlu0 %5021
  %5023 = vrot.lane.b32.xlu0 %v4753, 123
  %v5024 = vpop.permute.xlu0 %5023
  %5025 = vrot.lane.b32.xlu0 %v4754, 123
  %v5026 = vpop.permute.xlu0 %5025
  %5027 = vrot.lane.b32.xlu0 %v4738, 123
  %v5028 = vpop.permute.xlu0 %5027
  %5029 = vrot.lane.b32.xlu0 %v4755, 123
  %v5030 = vpop.permute.xlu0 %5029
  %5031 = vrot.lane.b32.xlu0 %v4756, 123
  %v5032 = vpop.permute.xlu0 %5031
  %5033 = vrot.lane.b32.xlu0 %v4744, 123
  %v5034 = vpop.permute.xlu0 %5033
  %5035 = vrot.lane.b32.xlu0 %v4757, 123
  %v5036 = vpop.permute.xlu0 %5035
  %5037 = vrot.lane.b32.xlu0 %v4758, 123
  %v5038 = vpop.permute.xlu0 %5037
  %5039 = vrot.lane.b32.xlu0 %v4750, 123
  %v5040 = vpop.permute.xlu0 %5039
  %5041 = vrot.lane.b32.xlu0 %v4783, 123
  %v5042 = vpop.permute.xlu0 %5041
  %5043 = vrot.lane.b32.xlu0 %v4784, 123
  %v5044 = vpop.permute.xlu0 %5043
  %5045 = vrot.lane.b32.xlu0 %v4764, 123
  %v5046 = vpop.permute.xlu0 %5045
  %5047 = vrot.lane.b32.xlu0 %v4785, 123
  %v5048 = vpop.permute.xlu0 %5047
  %5049 = vrot.lane.b32.xlu0 %v4786, 123
  %v5050 = vpop.permute.xlu0 %5049
  %5051 = vrot.lane.b32.xlu0 %v4770, 123
  %v5052 = vpop.permute.xlu0 %5051
  %5053 = vrot.lane.b32.xlu0 %v4787, 123
  %v5054 = vpop.permute.xlu0 %5053
  %5055 = vrot.lane.b32.xlu0 %v4788, 123
  %v5056 = vpop.permute.xlu0 %5055
  %5057 = vrot.lane.b32.xlu0 %v4776, 123
  %v5058 = vpop.permute.xlu0 %5057
  %5059 = vrot.lane.b32.xlu0 %v4789, 123
  %v5060 = vpop.permute.xlu0 %5059
  %5061 = vrot.lane.b32.xlu0 %v4790, 123
  %v5062 = vpop.permute.xlu0 %5061
  %5063 = vrot.lane.b32.xlu0 %v4782, 123
  %v5064 = vpop.permute.xlu0 %5063
  %5065 = vrot.lane.b32.xlu0 %v4815, 123
  %v5066 = vpop.permute.xlu0 %5065
  %5067 = vrot.lane.b32.xlu0 %v4816, 123
  %v5068 = vpop.permute.xlu0 %5067
  %5069 = vrot.lane.b32.xlu0 %v4796, 123
  %v5070 = vpop.permute.xlu0 %5069
  %5071 = vrot.lane.b32.xlu0 %v4817, 123
  %v5072 = vpop.permute.xlu0 %5071
  %5073 = vrot.lane.b32.xlu0 %v4818, 123
  %v5074 = vpop.permute.xlu0 %5073
  %5075 = vrot.lane.b32.xlu0 %v4802, 123
  %v5076 = vpop.permute.xlu0 %5075
  %5077 = vrot.lane.b32.xlu0 %v4819, 123
  %v5078 = vpop.permute.xlu0 %5077
  %5079 = vrot.lane.b32.xlu0 %v4820, 123
  %v5080 = vpop.permute.xlu0 %5079
  %5081 = vrot.lane.b32.xlu0 %v4808, 123
  %v5082 = vpop.permute.xlu0 %5081
  %5083 = vrot.lane.b32.xlu0 %v4821, 123
  %v5084 = vpop.permute.xlu0 %5083
  %5085 = vrot.lane.b32.xlu0 %v4822, 123
  %v5086 = vpop.permute.xlu0 %5085
  %5087 = vrot.lane.b32.xlu0 %v4814, 123
  %v5088 = vpop.permute.xlu0 %5087
  %5089 = vrot.lane.b32.xlu0 %v4847, 123
  %v5090 = vpop.permute.xlu0 %5089
  %5091 = vrot.lane.b32.xlu0 %v4848, 123
  %v5092 = vpop.permute.xlu0 %5091
  %5093 = vrot.lane.b32.xlu0 %v4828, 123
  %v5094 = vpop.permute.xlu0 %5093
  %5095 = vrot.lane.b32.xlu0 %v4849, 123
  %v5096 = vpop.permute.xlu0 %5095
  %5097 = vrot.lane.b32.xlu0 %v4850, 123
  %v5098 = vpop.permute.xlu0 %5097
  %5099 = vrot.lane.b32.xlu0 %v4834, 123
  %v5100 = vpop.permute.xlu0 %5099
  %5101 = vrot.lane.b32.xlu0 %v4851, 123
  %v5102 = vpop.permute.xlu0 %5101
  %5103 = vrot.lane.b32.xlu0 %v4852, 123
  %v5104 = vpop.permute.xlu0 %5103
  %5105 = vrot.lane.b32.xlu0 %v4840, 123
  %v5106 = vpop.permute.xlu0 %5105
  %5107 = vrot.lane.b32.xlu0 %v4853, 123
  %v5108 = vpop.permute.xlu0 %5107
  %5109 = vrot.lane.b32.xlu0 %v4854, 123
  %v5110 = vpop.permute.xlu0 %5109
  %5111 = vrot.lane.b32.xlu0 %v4846, 123
  %v5112 = vpop.permute.xlu0 %5111
  %5113 = vrot.lane.b32.xlu0 %v4879, 123
  %v5114 = vpop.permute.xlu0 %5113
  %5115 = vrot.lane.b32.xlu0 %v4880, 123
  %v5116 = vpop.permute.xlu0 %5115
  %5117 = vrot.lane.b32.xlu0 %v4860, 123
  %v5118 = vpop.permute.xlu0 %5117
  %5119 = vrot.lane.b32.xlu0 %v4881, 123
  %v5120 = vpop.permute.xlu0 %5119
  %5121 = vrot.lane.b32.xlu0 %v4882, 123
  %v5122 = vpop.permute.xlu0 %5121
  %5123 = vrot.lane.b32.xlu0 %v4866, 123
  %v5124 = vpop.permute.xlu0 %5123
  %5125 = vrot.lane.b32.xlu0 %v4883, 123
  %v5126 = vpop.permute.xlu0 %5125
  %5127 = vrot.lane.b32.xlu0 %v4884, 123
  %v5128 = vpop.permute.xlu0 %5127
  %5129 = vrot.lane.b32.xlu0 %v4872, 123
  %v5130 = vpop.permute.xlu0 %5129
  %5131 = vrot.lane.b32.xlu0 %v4885, 123
  %v5132 = vpop.permute.xlu0 %5131
  %5133 = vrot.lane.b32.xlu0 %v4886, 123
  %v5134 = vpop.permute.xlu0 %5133
  %5135 = vrot.lane.b32.xlu0 %v4878, 123
  %v5136 = vpop.permute.xlu0 %5135
  %5137 = vrot.lane.b32.xlu0 %v4911, 123
  %v5138 = vpop.permute.xlu0 %5137
  %5139 = vrot.lane.b32.xlu0 %v4912, 123
  %v5140 = vpop.permute.xlu0 %5139
  %5141 = vrot.lane.b32.xlu0 %v4892, 123
  %v5142 = vpop.permute.xlu0 %5141
  %5143 = vrot.lane.b32.xlu0 %v4913, 123
  %v5144 = vpop.permute.xlu0 %5143
  %5145 = vrot.lane.b32.xlu0 %v4914, 123
  %v5146 = vpop.permute.xlu0 %5145
  %5147 = vrot.lane.b32.xlu0 %v4898, 123
  %v5148 = vpop.permute.xlu0 %5147
  %5149 = vrot.lane.b32.xlu0 %v4915, 123
  %v5150 = vpop.permute.xlu0 %5149
  %5151 = vrot.lane.b32.xlu0 %v4916, 123
  %v5152 = vpop.permute.xlu0 %5151
  %5153 = vrot.lane.b32.xlu0 %v4904, 123
  %v5154 = vpop.permute.xlu0 %5153
  %5155 = vrot.lane.b32.xlu0 %v4917, 123
  %v5156 = vpop.permute.xlu0 %5155
  %5157 = vrot.lane.b32.xlu0 %v4918, 123
  %v5158 = vpop.permute.xlu0 %5157
  %5159 = vrot.lane.b32.xlu0 %v4910, 123
  %v5160 = vpop.permute.xlu0 %5159
  %5161 = vrot.lane.b32.xlu0 %v4943, 123
  %v5162 = vpop.permute.xlu0 %5161
  %5163 = vrot.lane.b32.xlu0 %v4944, 123
  %v5164 = vpop.permute.xlu0 %5163
  %5165 = vrot.lane.b32.xlu0 %v4924, 123
  %v5166 = vpop.permute.xlu0 %5165
  %5167 = vrot.lane.b32.xlu0 %v4945, 123
  %v5168 = vpop.permute.xlu0 %5167
  %5169 = vrot.lane.b32.xlu0 %v4946, 123
  %v5170 = vpop.permute.xlu0 %5169
  %5171 = vrot.lane.b32.xlu0 %v4930, 123
  %v5172 = vpop.permute.xlu0 %5171
  %5173 = vrot.lane.b32.xlu0 %v4947, 123
  %v5174 = vpop.permute.xlu0 %5173
  %5175 = vrot.lane.b32.xlu0 %v4948, 123
  %v5176 = vpop.permute.xlu0 %5175
  %5177 = vrot.lane.b32.xlu0 %v4936, 123
  %v5178 = vpop.permute.xlu0 %5177
  %5179 = vrot.lane.b32.xlu0 %v4949, 123
  %v5180 = vpop.permute.xlu0 %5179
  %5181 = vrot.lane.b32.xlu0 %v4950, 123
  %v5182 = vpop.permute.xlu0 %5181
  %5183 = vrot.lane.b32.xlu0 %v4942, 123
  %v5184 = vpop.permute.xlu0 %5183
  %5185 = vrot.lane.b32.xlu0 %v4975, 123
  %v5186 = vpop.permute.xlu0 %5185
  %5187 = vrot.lane.b32.xlu0 %v4976, 123
  %v5188 = vpop.permute.xlu0 %5187
  %5189 = vrot.lane.b32.xlu0 %v4956, 123
  %v5190 = vpop.permute.xlu0 %5189
  %5191 = vrot.lane.b32.xlu0 %v4977, 123
  %v5192 = vpop.permute.xlu0 %5191
  %5193 = vrot.lane.b32.xlu0 %v4978, 123
  %v5194 = vpop.permute.xlu0 %5193
  %5195 = vrot.lane.b32.xlu0 %v4962, 123
  %v5196 = vpop.permute.xlu0 %5195
  %5197 = vrot.lane.b32.xlu0 %v4979, 123
  %v5198 = vpop.permute.xlu0 %5197
  %5199 = vrot.lane.b32.xlu0 %v4980, 123
  %v5200 = vpop.permute.xlu0 %5199
  %5201 = vrot.lane.b32.xlu0 %v4968, 123
  %v5202 = vpop.permute.xlu0 %5201
  %5203 = vrot.lane.b32.xlu0 %v4981, 123
  %v5204 = vpop.permute.xlu0 %5203
  %5205 = vrot.lane.b32.xlu0 %v4982, 123
  %v5206 = vpop.permute.xlu0 %5205
  %5207 = vrot.lane.b32.xlu0 %v4974, 123
  %v5208 = vpop.permute.xlu0 %5207
  %v5209 = vsel %vm432, %v4994, %v4996
  %v5210 = vsel %vm432, %v4996, %v4998
  %v5211 = vsel %vm432, %v5000, %v5002
  %v5212 = vsel %vm432, %v5002, %v5004
  %v5213 = vsel %vm432, %v5006, %v5008
  %v5214 = vsel %vm432, %v5008, %v5010
  %v5215 = vsel %vm432, %v5012, %v5014
  %v5216 = vsel %vm432, %v5014, %v5016
  %v5217 = vsel %vm432, %v5018, %v5020
  %v5218 = vsel %vm432, %v5020, %v5022
  %v5219 = vsel %vm432, %v5024, %v5026
  %v5220 = vsel %vm432, %v5026, %v5028
  %v5221 = vsel %vm432, %v5030, %v5032
  %v5222 = vsel %vm432, %v5032, %v5034
  %v5223 = vsel %vm432, %v5036, %v5038
  %v5224 = vsel %vm432, %v5038, %v5040
  %v5225 = vsel %vm432, %v5042, %v5044
  %v5226 = vsel %vm432, %v5044, %v5046
  %v5227 = vsel %vm432, %v5048, %v5050
  %v5228 = vsel %vm432, %v5050, %v5052
  %v5229 = vsel %vm432, %v5054, %v5056
  %v5230 = vsel %vm432, %v5056, %v5058
  %v5231 = vsel %vm432, %v5060, %v5062
  %v5232 = vsel %vm432, %v5062, %v5064
  %v5233 = vsel %vm432, %v5066, %v5068
  %v5234 = vsel %vm432, %v5068, %v5070
  %v5235 = vsel %vm432, %v5072, %v5074
  %v5236 = vsel %vm432, %v5074, %v5076
  %v5237 = vsel %vm432, %v5078, %v5080
  %v5238 = vsel %vm432, %v5080, %v5082
  %v5239 = vsel %vm432, %v5084, %v5086
  %v5240 = vsel %vm432, %v5086, %v5088
  %v5241 = vsel %vm432, %v5090, %v5092
  %v5242 = vsel %vm432, %v5092, %v5094
  %v5243 = vsel %vm432, %v5096, %v5098
  %v5244 = vsel %vm432, %v5098, %v5100
  %v5245 = vsel %vm432, %v5102, %v5104
  %v5246 = vsel %vm432, %v5104, %v5106
  %v5247 = vsel %vm432, %v5108, %v5110
  %v5248 = vsel %vm432, %v5110, %v5112
  %v5249 = vsel %vm432, %v5114, %v5116
  %v5250 = vsel %vm432, %v5116, %v5118
  %v5251 = vsel %vm432, %v5120, %v5122
  %v5252 = vsel %vm432, %v5122, %v5124
  %v5253 = vsel %vm432, %v5126, %v5128
  %v5254 = vsel %vm432, %v5128, %v5130
  %v5255 = vsel %vm432, %v5132, %v5134
  %v5256 = vsel %vm432, %v5134, %v5136
  %v5257 = vsel %vm432, %v5138, %v5140
  %v5258 = vsel %vm432, %v5140, %v5142
  %v5259 = vsel %vm432, %v5144, %v5146
  %v5260 = vsel %vm432, %v5146, %v5148
  %v5261 = vsel %vm432, %v5150, %v5152
  %v5262 = vsel %vm432, %v5152, %v5154
  %v5263 = vsel %vm432, %v5156, %v5158
  %v5264 = vsel %vm432, %v5158, %v5160
  %v5265 = vsel %vm432, %v5162, %v5164
  %v5266 = vsel %vm432, %v5164, %v5166
  %v5267 = vsel %vm432, %v5168, %v5170
  %v5268 = vsel %vm432, %v5170, %v5172
  %v5269 = vsel %vm432, %v5174, %v5176
  %v5270 = vsel %vm432, %v5176, %v5178
  %v5271 = vsel %vm432, %v5180, %v5182
  %v5272 = vsel %vm432, %v5182, %v5184
  %v5273 = vsel %vm432, %v5186, %v5188
  %v5274 = vsel %vm432, %v5188, %v5190
  %v5275 = vsel %vm432, %v5192, %v5194
  %v5276 = vsel %vm432, %v5194, %v5196
  %v5277 = vsel %vm432, %v5198, %v5200
  %v5278 = vsel %vm432, %v5200, %v5202
  %v5279 = vsel %vm432, %v5204, %v5206
  %v5280 = vsel %vm432, %v5206, %v5208
  %v5354 = vsel %vm39, %v4671, 0
  %v5357 = vsel %vm39, %v4674, 0
  %5359 = vmatpush.msra.mxu0 %v5239
  %5360 = vmatpush.msra.mxu0 %v5237
  %5361 = vmatpush.msra.mxu0 %v5235
  %5362 = vmatpush.msra.mxu0 %v5233
  %5363 = vmatpush.msra.mxu0 %v5231
  %5364 = vmatpush.msra.mxu0 %v5229
  %5365 = vmatpush.msra.mxu0 %v5227
  %5366 = vmatpush.msra.mxu0 %v5225
  %5367 = vmatpush.msra.mxu0 %v5223
  %5368 = vmatpush.msra.mxu0 %v5221
  %5369 = vmatpush.msra.mxu0 %v5219
  %5370 = vmatpush.msra.mxu0 %v5217
  %5371 = vmatpush.msra.mxu0 %v5215
  %5372 = vmatpush.msra.mxu0 %v5213
  %5373 = vmatpush.msra.mxu0 %v5211
  %5374 = vmatpush.msra.mxu0 %v5209
  %5375 = vmatmul.f32.gmra.mxu0 %v4669
  %v5376 = vpop.f32.mrf.mxu0
  %v5377 = vadd.f32 %v4986, %v5376
  %5378 = vmatmul.f32.gmra.mxu0 %v4672
  %v5379 = vpop.f32.mrf.mxu0
  %v5380 = vadd.f32 %v4991, %v5379
  %5381 = vdwg.mxu0
  %5382 = vmatpush.msra.mxu0 %v5271
  %5383 = vmatpush.msra.mxu0 %v5269
  %5384 = vmatpush.msra.mxu0 %v5267
  %5385 = vmatpush.msra.mxu0 %v5265
  %5386 = vmatpush.msra.mxu0 %v5263
  %5387 = vmatpush.msra.mxu0 %v5261
  %5388 = vmatpush.msra.mxu0 %v5259
  %5389 = vmatpush.msra.mxu0 %v5257
  %5390 = vmatpush.msra.mxu0 %v5255
  %5391 = vmatpush.msra.mxu0 %v5253
  %5392 = vmatpush.msra.mxu0 %v5251
  %5393 = vmatpush.msra.mxu0 %v5249
  %5394 = vmatpush.msra.mxu0 %v5247
  %5395 = vmatpush.msra.mxu0 %v5245
  %5396 = vmatpush.msra.mxu0 %v5243
  %5397 = vmatpush.msra.mxu0 %v5241
  %5398 = vmatmul.f32.gmra.mxu0 %v4670
  %v5399 = vpop.f32.mrf.mxu0
  %v5400 = vadd.f32 %v5377, %v5399
  %5401 = vmatmul.f32.gmra.mxu0 %v4673
  %v5402 = vpop.f32.mrf.mxu0
  %v5403 = vadd.f32 %v5380, %v5402
  %5404 = vdwg.mxu0
  %5405 = vmatpush.msra.mxu0 0.0
  %5406 = vmatpush.msra.mxu0 0.0
  %5407 = vmatpush.msra.mxu0 0.0
  %5408 = vmatpush.msra.mxu0 0.0
  %5409 = vmatpush.msra.mxu0 0.0
  %5410 = vmatpush.msra.mxu0 0.0
  %5411 = vmatpush.msra.mxu0 0.0
  %5412 = vmatpush.msra.mxu0 0.0
  %5413 = vmatpush.msra.mxu0 0.0
  %5414 = vmatpush.msra.mxu0 0.0
  %5415 = vmatpush.msra.mxu0 0.0
  %5416 = vmatpush.msra.mxu0 0.0
  %5417 = vmatpush.msra.mxu0 %v5279
  %5418 = vmatpush.msra.mxu0 %v5277
  %5419 = vmatpush.msra.mxu0 %v5275
  %5420 = vmatpush.msra.mxu0 %v5273
  %5421 = vmatmul.f32.gmra.mxu0 %v5354
  %v5422 = vpop.f32.mrf.mxu0
  %v5423 = vadd.f32 %v5400, %v5422
  %5424 = vmatmul.f32.gmra.mxu0 %v5357
  %v5425 = vpop.f32.mrf.mxu0
  %v5426 = vadd.f32 %v5403, %v5425
  %5427 = vdwg.mxu0
  %5428 = vmatpush.msra.mxu0 %v5240
  %5429 = vmatpush.msra.mxu0 %v5238
  %5430 = vmatpush.msra.mxu0 %v5236
  %5431 = vmatpush.msra.mxu0 %v5234
  %5432 = vmatpush.msra.mxu0 %v5232
  %5433 = vmatpush.msra.mxu0 %v5230
  %5434 = vmatpush.msra.mxu0 %v5228
  %5435 = vmatpush.msra.mxu0 %v5226
  %5436 = vmatpush.msra.mxu0 %v5224
  %5437 = vmatpush.msra.mxu0 %v5222
  %5438 = vmatpush.msra.mxu0 %v5220
  %5439 = vmatpush.msra.mxu0 %v5218
  %5440 = vmatpush.msra.mxu0 %v5216
  %5441 = vmatpush.msra.mxu0 %v5214
  %5442 = vmatpush.msra.mxu0 %v5212
  %5443 = vmatpush.msra.mxu0 %v5210
  %5444 = vmatmul.f32.gmra.mxu0 %v4669
  %v5445 = vpop.f32.mrf.mxu0
  %v5446 = vadd.f32 %v4986, %v5445
  %5447 = vmatmul.f32.gmra.mxu0 %v4672
  %v5448 = vpop.f32.mrf.mxu0
  %v5449 = vadd.f32 %v4991, %v5448
  %5450 = vdwg.mxu0
  %5451 = vmatpush.msra.mxu0 %v5272
  %5452 = vmatpush.msra.mxu0 %v5270
  %5453 = vmatpush.msra.mxu0 %v5268
  %5454 = vmatpush.msra.mxu0 %v5266
  %5455 = vmatpush.msra.mxu0 %v5264
  %5456 = vmatpush.msra.mxu0 %v5262
  %5457 = vmatpush.msra.mxu0 %v5260
  %5458 = vmatpush.msra.mxu0 %v5258
  %5459 = vmatpush.msra.mxu0 %v5256
  %5460 = vmatpush.msra.mxu0 %v5254
  %5461 = vmatpush.msra.mxu0 %v5252
  %5462 = vmatpush.msra.mxu0 %v5250
  %5463 = vmatpush.msra.mxu0 %v5248
  %5464 = vmatpush.msra.mxu0 %v5246
  %5465 = vmatpush.msra.mxu0 %v5244
  %5466 = vmatpush.msra.mxu0 %v5242
  %5467 = vmatmul.f32.gmra.mxu0 %v4670
  %v5468 = vpop.f32.mrf.mxu0
  %v5469 = vadd.f32 %v5446, %v5468
  %5470 = vmatmul.f32.gmra.mxu0 %v4673
  %v5471 = vpop.f32.mrf.mxu0
  %v5472 = vadd.f32 %v5449, %v5471
  %5473 = vdwg.mxu0
  %5474 = vmatpush.msra.mxu0 0.0
  %5475 = vmatpush.msra.mxu0 0.0
  %5476 = vmatpush.msra.mxu0 0.0
  %5477 = vmatpush.msra.mxu0 0.0
  %5478 = vmatpush.msra.mxu0 0.0
  %5479 = vmatpush.msra.mxu0 0.0
  %5480 = vmatpush.msra.mxu0 0.0
  %5481 = vmatpush.msra.mxu0 0.0
  %5482 = vmatpush.msra.mxu0 0.0
  %5483 = vmatpush.msra.mxu0 0.0
  %5484 = vmatpush.msra.mxu0 0.0
  %5485 = vmatpush.msra.mxu0 0.0
  %5486 = vmatpush.msra.mxu0 %v5280
  %5487 = vmatpush.msra.mxu0 %v5278
  %5488 = vmatpush.msra.mxu0 %v5276
  %5489 = vmatpush.msra.mxu0 %v5274
  %5490 = vmatmul.f32.gmra.mxu0 %v5354
  %v5491 = vpop.f32.mrf.mxu0
  %v5492 = vadd.f32 %v5469, %v5491
  %5493 = vmatmul.f32.gmra.mxu0 %v5357
  %v5494 = vpop.f32.mrf.mxu0
  %v5495 = vadd.f32 %v5472, %v5494
  %5496 = vdwg.mxu0
  %v5497 = vmul.f32 %v5423, 0.5263158
  %v5498 = vmul.f32 %v5492, 0.5263158
  %v5499 = vand.u32 2147483647, %v5497
  %v5500 = vand.u32 2147483647, %v5498
  %v5501 = vmax.f32 %v5499, 1.0
  %v5502 = vmax.f32 %v5500, 1.0
  %v5503 = vrcp.pop %v5501
  %v5504 = vrcp.pop %v5502
  %v5505 = vmul.f32 %v5501, %v5503
  %v5506 = vmul.f32 %v5502, %v5504
  %v5507 = vsub.f32 2.0, %v5505
  %v5508 = vsub.f32 2.0, %v5506
  %v5509 = vmul.f32 %v5503, %v5507
  %v5510 = vmul.f32 %v5504, %v5508
  %vm5511 = vcmp.gt.f32.partialorder %v5499, 1.0
  %vm5512 = vcmp.gt.f32.partialorder %v5500, 1.0
  %v5513 = vsel %vm5511, %v5509, %v5499
  %v5514 = vsel %vm5512, %v5510, %v5500
  %v5515 = vmul.f32 %v5513, %v5513
  %v5516 = vmul.f32 %v5514, %v5514
  %v5517 = vmul.f32 %v5515, 0.0208351
  %v5518 = vmul.f32 %v5516, 0.0208351
  %v5519 = vadd.f32 %v5517, -0.085133
  %v5520 = vadd.f32 %v5518, -0.085133
  %v5521 = vmul.f32 %v5515, %v5519
  %v5522 = vmul.f32 %v5516, %v5520
  %v5523 = vadd.f32 %v5521, 0.180141
  %v5524 = vadd.f32 %v5522, 0.180141
  %v5525 = vmul.f32 %v5515, %v5523
  %v5526 = vmul.f32 %v5516, %v5524
  %v5527 = vadd.f32 %v5525, -0.3302995
  %v5528 = vadd.f32 %v5526, -0.3302995
  %v5529 = vmul.f32 %v5515, %v5527
  %v5530 = vmul.f32 %v5516, %v5528
  %v5531 = vadd.f32 %v5529, 0.999866
  %v5532 = vadd.f32 %v5530, 0.999866
  %v5533 = vmul.f32 %v5513, %v5531
  %v5534 = vmul.f32 %v5514, %v5532
  %v5535 = vsub.f32 1.5707964, %v5533
  %v5536 = vsub.f32 1.5707964, %v5534
  %v5537 = vsel %vm5511, %v5535, %v5533
  %v5538 = vsel %vm5512, %v5536, %v5534
  %vm5539 = vcmp.lt.f32.partialorder %v5497, 0.0
  %vm5540 = vcmp.lt.f32.partialorder %v5498, 0.0
  %v5541 = vsub.f32 0.0, %v5537
  %v5542 = vsub.f32 0.0, %v5538
  %v5543 = vsel %vm5539, %v5541, %v5537
  %v5544 = vsel %vm5540, %v5542, %v5538
  %v5545 = vmul.f32 %v5543, 1.2084
  %v5546 = vmul.f32 %v5544, 1.2084
  %v5547 = vmul.f32 %v5545, 1.442695
  %v5548 = vpow.pop %v5547
  %v5549 = vmul.f32 %v5546, 1.442695
  %v5550 = vpow.pop %v5549
  %v5551 = vmul.f32 %v5548, %v2938
  %v5552 = vmul.f32 %v5550, %v2961
  %v5553 = vadd.f32 %v5551, %v5426
  %v5554 = vadd.f32 %v5552, %v5495
  %v5555 = vmul.f32 %v5553, %v607
  %v5556 = vmul.f32 %v5554, %v608
  %5557 = vst [vmem:[%s7] sm:$0xff] %v4258
  %5558 = vst [vmem:[%s7 + $0x8] sm:$0xff] %v4259
  %5559 = vst [vmem:[%s7 + $0x10] sm:$0xff] %v5555
  %5560 = vst [vmem:[%s7 + $0x18] sm:$0xff] %v5556
  // Predicated region
  $region30: #{_lambda_.1} parent=0 // pred_check
    _
  $region31: #{_lambda_.1} parent=0 // pred_check_branch
    %5562 = sbr.rel (0) target = $region33
  $region32: #{_lambda_.1} parent=0 // pred_region
    _
  $region33: #{_lambda_.1} parent=0 // pred_fallthru
    _
  // Predicated region
  $region34: #{_lambda_.1} parent=0 // pred_check
    _
  $region35: #{_lambda_.1} parent=0 // pred_check_branch
    %5564 = sbr.rel (0) target = $region37
  $region36: #{_lambda_.1} parent=0 // pred_region
    _
  $region37: #{_lambda_.1} parent=0 // pred_fallthru
    _

</llo_original>
